<compile_context>
chip_gen: v5e
topology: v5e:2x2
jax: 0.10.0
libtpu: 0.0.40
codegen_flags: <defaults>
</compile_context>

<pallas_src>
import functools

import numpy as np

import jax
import jax.numpy as jnp
from jax.experimental import pallas as pl
from jax.experimental.pallas import tpu as pltpu


LANE = 128               # lane width: pad small output class dims up to this
ROW_TILE = 256           # row tile: fills 256-wide MXU on v6e/v7x (use 128 on v5e)
VMEM_LIMIT = 48 * 1024 * 1024   # explicit scoped-VMEM budget, safe on v5e/v6e/v7x


def _round_up(x, m):
    return (x + m - 1) // m * m


def _cost(flops, bytes_accessed):
    return pl.CostEstimate(flops=flops, transcendentals=0,
                           bytes_accessed=bytes_accessed)


# ---------------------------------------------------------------------------
# Pallas kernels
# ---------------------------------------------------------------------------
def _box_extractor_kernel(x_ref, w6_ref, b6_ref, w7_ref, b7_ref,
                          wh_ref, bh_ref, roi_ref, heads_ref):
    """Fused fc6->relu->fc7->relu plus lane-dense heads matmul.

    heads = x7 @ [cls_w_pad | Wp_subj | Wp_obj] + [cls_b_pad | 0 | 0]
    """
    x6 = jnp.dot(x_ref[...], w6_ref[...], preferred_element_type=jnp.float32)
    x6 = jnp.maximum(x6 + b6_ref[...], 0.0)
    x7 = jnp.dot(x6.astype(w7_ref.dtype), w7_ref[...],
                 preferred_element_type=jnp.float32)
    x7 = jnp.maximum(x7 + b7_ref[...], 0.0)
    roi_ref[...] = x7.astype(roi_ref.dtype)
    heads = jnp.dot(x7.astype(wh_ref.dtype), wh_ref[...],
                    preferred_element_type=jnp.float32)
    heads_ref[...] = (heads + bh_ref[...]).astype(heads_ref.dtype)


def _union_relation_kernel(idx_ref, up_ref, w6_ref, b6_ref, w7_ref, b7_ref,
                           ps_ref, po_ref, bp_ref, wr_ref, br_ref, o_ref):
    """Fused union feature extractor + relation predictor for one row tile.

      u   = relu(relu(up @ W6 + b6) @ W7 + b7)                 (union branch)
      pre = onehot(s) @ proj_s + onehot(o) @ proj_o            (pair gather)
      o   = (relu(pre + bp) * u) @ Wr + br
    """
    # ---- union branch: fc6 -> relu -> fc7 -> relu (stays in VMEM) ----
    x6 = jnp.dot(up_ref[...], w6_ref[...], preferred_element_type=jnp.float32)
    x6 = jnp.maximum(x6 + b6_ref[...], 0.0)
    x7 = jnp.dot(x6.astype(w7_ref.dtype), w7_ref[...],
                 preferred_element_type=jnp.float32)
    u = jnp.maximum(x7 + b7_ref[...], 0.0).astype(jnp.bfloat16)

    # ---- pair branch: one-hot gather-matmul against resident proj tables ----
    n = ps_ref.shape[0]                       # number of proposals (small)
    rows = up_ref.shape[0]                    # row tile
    idx = idx_ref[...]                        # [rows, 2] int32 (s, o)
    col = jax.lax.broadcasted_iota(jnp.int32, (rows, n), 1)
    onehot_s = (col == idx[:, 0:1]).astype(jnp.bfloat16)
    onehot_o = (col == idx[:, 1:2]).astype(jnp.bfloat16)
    pre = (jnp.dot(onehot_s, ps_ref[...], preferred_element_type=jnp.float32)
           + jnp.dot(onehot_o, po_ref[...], preferred_element_type=jnp.float32))
    h = jnp.maximum(pre + bp_ref[...], 0.0).astype(jnp.bfloat16)

    # ---- relation head ----
    g = h * u                                 # bf16 elementwise (halved vregs)
    y = jnp.dot(g, wr_ref[...], preferred_element_type=jnp.float32)
    o_ref[...] = (y + br_ref[...]).astype(o_ref.dtype)


# ---------------------------------------------------------------------------
# Pallas wrappers
# ---------------------------------------------------------------------------
def pallas_box_extractor(pooled_bf16, p):
    """pooled: [M, Kin] bf16 -> (roi_features [M, H] f32, heads [M, Nh] bf16)."""
    M, Kin = pooled_bf16.shape
    H = p["box_b6"].shape[-1]
    Nh = p["w_heads"].shape[-1]
    grid_m = pl.cdiv(M, ROW_TILE)

    flops = 2 * M * (Kin * H + H * H + H * Nh)
    bytes_acc = (M * Kin * 2 + Kin * H * 2 + H * H * 2 + H * Nh * 2
                 + M * H * 4 + M * Nh * 2)

    roi, heads = pl.pallas_call(
        _box_extractor_kernel,
        out_shape=(jax.ShapeDtypeStruct((M, H), jnp.float32),
                   jax.ShapeDtypeStruct((M, Nh), jnp.bfloat16)),
        grid_spec=pltpu.PrefetchScalarGridSpec(
            num_scalar_prefetch=0,
            grid=(grid_m,),
            in_specs=[
                pl.BlockSpec((ROW_TILE, Kin), lambda i: (i, 0)),
                pl.BlockSpec((Kin, H), lambda i: (0, 0)),
                pl.BlockSpec((1, H), lambda i: (0, 0)),
                pl.BlockSpec((H, H), lambda i: (0, 0)),
                pl.BlockSpec((1, H), lambda i: (0, 0)),
                pl.BlockSpec((H, Nh), lambda i: (0, 0)),
                pl.BlockSpec((1, Nh), lambda i: (0, 0)),
            ],
            out_specs=(pl.BlockSpec((ROW_TILE, H), lambda i: (i, 0)),
                       pl.BlockSpec((ROW_TILE, Nh), lambda i: (i, 0))),
        ),
        # NOTE(v7x): with few proposals this grid has a single step and one of
        # the two TensorCores idles; at production N, multiple row tiles keep
        # both busy via the "parallel" axis.
        compiler_params=pltpu.CompilerParams(
            dimension_semantics=("parallel",),
            vmem_limit_bytes=VMEM_LIMIT),
        cost_estimate=_cost(flops, bytes_acc),
    )(pooled_bf16, p["box_w6"], p["box_b6"], p["box_w7"], p["box_b7"],
      p["w_heads"], p["b_heads"])
    return roi, heads


def pallas_union_relation(pair_idx, u_pooled_bf16, proj_s, proj_o, p):
    """Fused union extractor + relation predictor.

    pair_idx      : [R, 2] int32 (subject, object) proposal indices
    u_pooled_bf16 : [R, Kin] bf16 pooled union-box features
    proj_s/proj_o : [N, H] bf16 per-proposal pair projections (VMEM resident)
    returns       : relation logits [R, Crel_pad] f32 (lane-padded)
    """
    R, Kin = u_pooled_bf16.shape
    Np, H = proj_s.shape
    Crel = p["rel_w_pad"].shape[-1]
    grid_r = pl.cdiv(R, ROW_TILE)

    flops = 2 * R * (Kin * H + H * H + 2 * Np * H + H * Crel) + 4 * R * H
    bytes_acc = (R * Kin * 2 + R * 2 * 4 + Kin * H * 2 + H * H * 2
                 + 2 * Np * H * 2 + H * Crel * 2 + R * Crel * 4)

    out = pl.pallas_call(
        _union_relation_kernel,
        out_shape=jax.ShapeDtypeStruct((R, Crel), jnp.float32),
        grid_spec=pltpu.PrefetchScalarGridSpec(
            num_scalar_prefetch=0,
            grid=(grid_r,),
            in_specs=[
                pl.BlockSpec((ROW_TILE, 2), lambda i: (i, 0)),      # pair idx
                pl.BlockSpec((ROW_TILE, Kin), lambda i: (i, 0)),    # u_pooled
                pl.BlockSpec((Kin, H), lambda i: (0, 0)),           # uni_w6
                pl.BlockSpec((1, H), lambda i: (0, 0)),             # uni_b6
                pl.BlockSpec((H, H), lambda i: (0, 0)),             # uni_w7
                pl.BlockSpec((1, H), lambda i: (0, 0)),             # uni_b7
                pl.BlockSpec((Np, H), lambda i: (0, 0)),            # proj_s
                pl.BlockSpec((Np, H), lambda i: (0, 0)),            # proj_o
                pl.BlockSpec((1, H), lambda i: (0, 0)),             # pair_b
                pl.BlockSpec((H, Crel), lambda i: (0, 0)),          # rel_w
                pl.BlockSpec((1, Crel), lambda i: (0, 0)),          # rel_b
            ],
            out_specs=pl.BlockSpec((ROW_TILE, Crel), lambda i: (i, 0)),
        ),
        compiler_params=pltpu.CompilerParams(
            dimension_semantics=("parallel",),
            vmem_limit_bytes=VMEM_LIMIT),
        cost_estimate=_cost(flops, bytes_acc),
    )(pair_idx, u_pooled_bf16, p["uni_w6"], p["uni_b6"], p["uni_w7"],
      p["uni_b7"], proj_s, proj_o, p["pair_b"], p["rel_w_pad"], p["rel_b_pad"])
    return out


# ---------------------------------------------------------------------------
# JAX glue: ROI align (bilinear, sampling ratio 1), pair / union boxes
# ---------------------------------------------------------------------------
def roi_align(feat_hwc, boxes, out_size):
    """feat_hwc: [H, W, C]; boxes: [N, 4] (x1, y1, x2, y2) in feature-map coords.
       Returns pooled features [N, out_size, out_size, C]."""
    # TODO(synk): not torchvision-ROIAlign-equivalent (sampling_ratio=1, no
    # aligned=-0.5 offset, clamped indices, no min-size clamp for degenerate
    # boxes) — acceptable for this simplified head.
    H, W, C = feat_hwc.shape

    def one_box(box):
        x1, y1, x2, y2 = box[0], box[1], box[2], box[3]
        bin_w = (x2 - x1) / out_size
        bin_h = (y2 - y1) / out_size
        xs = x1 + (jnp.arange(out_size, dtype=jnp.float32) + 0.5) * bin_w
        ys = y1 + (jnp.arange(out_size, dtype=jnp.float32) + 0.5) * bin_h
        yy, xx = jnp.meshgrid(ys, xs, indexing="ij")

        def bilinear(y, x):
            x0 = jnp.floor(x)
            y0 = jnp.floor(y)
            x0i = jnp.clip(x0.astype(jnp.int32), 0, W - 1)
            x1i = jnp.clip(x0i + 1, 0, W - 1)
            y0i = jnp.clip(y0.astype(jnp.int32), 0, H - 1)
            y1i = jnp.clip(y0i + 1, 0, H - 1)
            wx = x - x0
            wy = y - y0
            v00 = feat_hwc[y0i, x0i]
            v01 = feat_hwc[y0i, x1i]
            v10 = feat_hwc[y1i, x0i]
            v11 = feat_hwc[y1i, x1i]
            return (v00 * (1.0 - wy) * (1.0 - wx) + v01 * (1.0 - wy) * wx
                    + v10 * wy * (1.0 - wx) + v11 * wy * wx)

        return jax.vmap(jax.vmap(bilinear))(yy, xx)  # [P, P, C]

    return jax.vmap(one_box)(boxes)


def all_ordered_pairs(n):
    """prepare_test_pairs: all ordered (i, j), i != j.  n is static -> numpy."""
    ii, jj = np.meshgrid(np.arange(n), np.arange(n), indexing="ij")
    mask = ii.reshape(-1) != jj.reshape(-1)
    pairs = np.stack([ii.reshape(-1), jj.reshape(-1)], axis=-1)[mask]
    return jnp.asarray(pairs, dtype=jnp.int32)  # [n*(n-1), 2]


def union_boxes(boxes, pair_idxs):
    b_s = boxes[pair_idxs[:, 0]]
    b_o = boxes[pair_idxs[:, 1]]
    x1 = jnp.minimum(b_s[:, 0], b_o[:, 0])
    y1 = jnp.minimum(b_s[:, 1], b_o[:, 1])
    x2 = jnp.maximum(b_s[:, 2], b_o[:, 2])
    y2 = jnp.maximum(b_s[:, 3], b_o[:, 3])
    return jnp.stack([x1, y1, x2, y2], axis=-1)


# ---------------------------------------------------------------------------
# ROIRelationHead forward (eval mode)
# ---------------------------------------------------------------------------
def roi_relation_head_forward(params, feature_map_nhwc, boxes, *,
                              pool_size, hidden, n_obj_cls, n_rel_cls):
    feat = feature_map_nhwc[0]          # single image, [H, W, C]
    n_prop = boxes.shape[0]

    # samp_processor.prepare_test_pairs (static -> built with numpy)
    rel_pair_idxs = all_ordered_pairs(n_prop)

    # box_feature_extractor + classifier + split pair projections (fused)
    pooled = roi_align(feat, boxes, pool_size).reshape(n_prop, -1)  # NHWC flatten
    roi_features, heads = pallas_box_extractor(
        pooled.astype(jnp.bfloat16), params)
    ncls_pad = _round_up(n_obj_cls, LANE)
    refine_logits = heads[:, :n_obj_cls].astype(jnp.float32)   # bf16 storage drift ok (eval)
    proj_s = heads[:, ncls_pad:ncls_pad + hidden]               # [N, H] bf16
    proj_o = heads[:, ncls_pad + hidden:ncls_pad + 2 * hidden]  # [N, H] bf16

    # union_feature_extractor + relation predictor (fused in one Pallas kernel;
    # pair gather happens in-kernel via one-hot matmul against proj_s/proj_o)
    u_boxes = union_boxes(boxes, rel_pair_idxs)
    u_pooled = roi_align(feat, u_boxes, pool_size).reshape(u_boxes.shape[0], -1)
    rel_pad = pallas_union_relation(
        rel_pair_idxs, u_pooled.astype(jnp.bfloat16), proj_s, proj_o, params)
    relation_logits = rel_pad[:, :n_rel_cls]

    # post_processor (eval): softmax scoring of (relation_logits, refine_logits)
    obj_probs = jax.nn.softmax(refine_logits, axis=-1)
    rel_probs = jax.nn.softmax(relation_logits, axis=-1)
    obj_scores = jnp.max(obj_probs[:, 1:], axis=-1)          # exclude background
    obj_labels = jnp.argmax(obj_probs[:, 1:], axis=-1) + 1
    rel_scores = jnp.max(rel_probs[:, 1:], axis=-1)
    rel_labels = jnp.argmax(rel_probs[:, 1:], axis=-1) + 1
    triple_scores = (obj_scores[rel_pair_idxs[:, 0]]
                     * obj_scores[rel_pair_idxs[:, 1]]
                     * rel_scores)
    result = {
        "pred_labels": obj_labels,
        "pred_scores": obj_scores,
        "rel_pair_idxs": rel_pair_idxs,
        "pred_rel_labels": rel_labels,
        "pred_rel_scores": rel_probs,
        "triple_scores": triple_scores,
    }
    # eval path of the reference returns (roi_features, result, {})
    return roi_features, result, {}


# ---------------------------------------------------------------------------
# Parameter construction / preparation
# ---------------------------------------------------------------------------
def make_params(key, in_channels, pool_size, hidden, n_obj_cls, n_rel_cls):
    """Raw (PyTorch-layout) parameters: fc6 rows are in NCHW-flatten order."""
    pooled_dim = in_channels * pool_size * pool_size
    ks = jax.random.split(key, 10)
    s = 0.02

    def w(k, shape):
        return (s * jax.random.normal(k, shape)).astype(jnp.float32)

    return {
        "box_fc6_w": w(ks[0], (pooled_dim, hidden)),
        "box_fc6_b": jnp.zeros((hidden,), jnp.float32),
        "box_fc7_w": w(ks[1], (hidden, hidden)),
        "box_fc7_b": jnp.zeros((hidden,), jnp.float32),
        "uni_fc6_w": w(ks[2], (pooled_dim, hidden)),
        "uni_fc6_b": jnp.zeros((hidden,), jnp.float32),
        "uni_fc7_w": w(ks[3], (hidden, hidden)),
        "uni_fc7_b": jnp.zeros((hidden,), jnp.float32),
        "cls_w": w(ks[4], (hidden, n_obj_cls)),
        "cls_b": jnp.zeros((n_obj_cls,), jnp.float32),
        "pair_w": w(ks[5], (2 * hidden, hidden)),
        "pair_b": jnp.zeros((hidden,), jnp.float32),
        "rel_w": w(ks[6], (hidden, n_rel_cls)),
        "rel_b": jnp.zeros((n_rel_cls,), jnp.float32),
    }


def _nchw_to_nhwc_row_perm(c, p):
    """Row permutation mapping NCHW-flatten fc6 weights to NHWC-flatten input."""
    idx = np.arange(c * p * p).reshape(c, p, p)            # (c, ph, pw) -> nchw idx
    return np.transpose(idx, (1, 2, 0)).reshape(-1)        # (ph, pw, c) order


def prep_params(raw, in_channels, pool_size, hidden, n_obj_cls, n_rel_cls):
    """One-time conversion: weight-row permutation, lane padding, bf16 cast."""
    perm = _nchw_to_nhwc_row_perm(in_channels, pool_size)
    ncls_pad = _round_up(n_obj_cls, LANE)
    crel_pad = _round_up(n_rel_cls, LANE)

    cls_w_pad = jnp.zeros((hidden, ncls_pad), jnp.float32).at[:, :n_obj_cls].set(
        raw["cls_w"])
    cls_b_pad = jnp.zeros((ncls_pad,), jnp.float32).at[:n_obj_cls].set(raw["cls_b"])
    wp_s = raw["pair_w"][:hidden]
    wp_o = raw["pair_w"][hidden:]
    w_heads = jnp.concatenate([cls_w_pad, wp_s, wp_o], axis=1)
    b_heads = jnp.concatenate(
        [cls_b_pad, jnp.zeros((2 * hidden,), jnp.float32)]).reshape(1, -1)

    rel_w_pad = jnp.zeros((hidden, crel_pad), jnp.float32).at[:, :n_rel_cls].set(
        raw["rel_w"])
    rel_b_pad = jnp.zeros((crel_pad,), jnp.float32).at[:n_rel_cls].set(
        raw["rel_b"]).reshape(1, -1)

    return {
        "box_w6": raw["box_fc6_w"][perm].astype(jnp.bfloat16),
        "box_b6": raw["box_fc6_b"].reshape(1, -1),
        "box_w7": raw["box_fc7_w"].astype(jnp.bfloat16),
        "box_b7": raw["box_fc7_b"].reshape(1, -1),
        "uni_w6": raw["uni_fc6_w"][perm].astype(jnp.bfloat16),
        "uni_b6": raw["uni_fc6_b"].reshape(1, -1),
        "uni_w7": raw["uni_fc7_w"].astype(jnp.bfloat16),
        "uni_b7": raw["uni_fc7_b"].reshape(1, -1),
        "w_heads": w_heads.astype(jnp.bfloat16),
        "b_heads": b_heads,
        "pair_b": raw["pair_b"].reshape(1, -1),
        "rel_w_pad": rel_w_pad.astype(jnp.bfloat16),
        "rel_b_pad": rel_b_pad,
    }


if __name__ == "__main__":
    key = jax.random.PRNGKey(0)
    k_feat, k_box, k_par = jax.random.split(key, 3)

    # small config
    in_channels = 16
    fh = fw = 16
    pool_size = 4
    hidden = 128
    n_obj_cls = 16
    n_rel_cls = 8
    n_prop = 8          # -> 56 ordered relation pairs

    # feature map: 1 image, layout NHWC (see layout comment at top)
    features = jax.random.normal(k_feat, (1, fh, fw, in_channels), jnp.float32)

    # deterministic proposal boxes (x1, y1, x2, y2) in feature-map coords
    kb1, kb2 = jax.random.split(k_box)
    xy1 = jax.random.uniform(kb1, (n_prop, 2), minval=0.0, maxval=10.0)
    wh = jax.random.uniform(kb2, (n_prop, 2), minval=2.0, maxval=5.0)
    xy2 = xy1 + wh
    x2 = jnp.clip(xy2[:, 0], 0.0, float(fw - 1))
    y2 = jnp.clip(xy2[:, 1], 0.0, float(fh - 1))
    boxes = jnp.stack([xy1[:, 0], xy1[:, 1], x2, y2], axis=-1).astype(jnp.float32)

    raw_params = make_params(k_par, in_channels, pool_size, hidden,
                             n_obj_cls, n_rel_cls)
    params = prep_params(raw_params, in_channels, pool_size, hidden,
                         n_obj_cls, n_rel_cls)

    fwd = jax.jit(functools.partial(
        roi_relation_head_forward,
        pool_size=pool_size, hidden=hidden,
        n_obj_cls=n_obj_cls, n_rel_cls=n_rel_cls))
    roi_features, result, losses = fwd(params, features, boxes)

    jax.block_until_ready(roi_features)
    jax.block_until_ready(result["triple_scores"])

    n_rel = n_prop * (n_prop - 1)
    assert roi_features.shape == (n_prop, hidden)
    assert result["pred_labels"].shape == (n_prop,)
    assert result["pred_rel_scores"].shape == (n_rel, n_rel_cls)
    assert result["triple_scores"].shape == (n_rel,)
    assert losses == {}
    assert bool(jnp.all(jnp.isfinite(roi_features)))
    assert bool(jnp.all(jnp.isfinite(result["pred_rel_scores"])))
    print("KERNEL_OK")
</pallas_src>

<mosaic_0001>
module attributes {stable_mosaic.version = 11 : i64} {
  func.func @_box_extractor_kernel(%arg0: i32, %arg1: memref<256x256xbf16, #tpu.memory_space<vmem>>, %arg2: memref<256x128xbf16, #tpu.memory_space<vmem>>, %arg3: memref<1x128xf32, #tpu.memory_space<vmem>>, %arg4: memref<128x128xbf16, #tpu.memory_space<vmem>>, %arg5: memref<1x128xf32, #tpu.memory_space<vmem>>, %arg6: memref<128x384xbf16, #tpu.memory_space<vmem>>, %arg7: memref<1x384xf32, #tpu.memory_space<vmem>>, %arg8: memref<256x128xf32, #tpu.memory_space<vmem>>, %arg9: memref<256x384xbf16, #tpu.memory_space<vmem>>) attributes {dimension_semantics = [#tpu.dimension_semantics<parallel>], iteration_bounds = array<i64: 1>, scalar_prefetch = 0 : i64, scratch_operands = 0 : i64, tpu.core_type = #tpu.core_type<tc>, window_params = [{transform_indices = @transform_0, window_bounds = array<i64: 256, 256>}, {pipeline_mode = #tpu.pipeline_mode<synchronous>, transform_indices = @transform_1, window_bounds = array<i64: 256, 128>}, {pipeline_mode = #tpu.pipeline_mode<synchronous>, transform_indices = @transform_2, window_bounds = array<i64: 1, 128>}, {pipeline_mode = #tpu.pipeline_mode<synchronous>, transform_indices = @transform_3, window_bounds = array<i64: 128, 128>}, {pipeline_mode = #tpu.pipeline_mode<synchronous>, transform_indices = @transform_4, window_bounds = array<i64: 1, 128>}, {pipeline_mode = #tpu.pipeline_mode<synchronous>, transform_indices = @transform_5, window_bounds = array<i64: 128, 384>}, {pipeline_mode = #tpu.pipeline_mode<synchronous>, transform_indices = @transform_6, window_bounds = array<i64: 1, 384>}, {transform_indices = @transform_7, window_bounds = array<i64: 256, 128>}, {transform_indices = @transform_8, window_bounds = array<i64: 256, 384>}]} {
    %c0 = arith.constant 0 : index
    %c0_0 = arith.constant 0 : index
    %0 = vector.load %arg1[%c0, %c0_0] : memref<256x256xbf16, #tpu.memory_space<vmem>>, vector<256x256xbf16>
    %c0_1 = arith.constant 0 : index
    %c0_2 = arith.constant 0 : index
    %1 = vector.load %arg2[%c0_1, %c0_2] : memref<256x128xbf16, #tpu.memory_space<vmem>>, vector<256x128xbf16>
    %cst = arith.constant dense<0.000000e+00> : vector<256x128xf32>
    %2 = tpu.matmul %0, %1, %cst {dimension_numbers = #tpu.dot_dimension_numbers<[1], [0], [0], [1], [0, 0, 1, 1], [], []>} : vector<256x256xbf16>, vector<256x128xbf16>, vector<256x128xf32> -> vector<256x128xf32>
    %c0_3 = arith.constant 0 : index
    %c0_4 = arith.constant 0 : index
    %3 = vector.load %arg3[%c0_3, %c0_4] : memref<1x128xf32, #tpu.memory_space<vmem>>, vector<1x128xf32>
    %4 = vector.broadcast %3 : vector<1x128xf32> to vector<256x128xf32>
    %5 = arith.addf %2, %4 : vector<256x128xf32>
    %cst_5 = arith.constant 0.000000e+00 : f32
    %6 = vector.broadcast %cst_5 : f32 to vector<256x128xf32>
    %7 = arith.maximumf %5, %6 : vector<256x128xf32>
    %8 = arith.truncf %7 : vector<256x128xf32> to vector<256x128xbf16>
    %c0_6 = arith.constant 0 : index
    %c0_7 = arith.constant 0 : index
    %9 = vector.load %arg4[%c0_6, %c0_7] : memref<128x128xbf16, #tpu.memory_space<vmem>>, vector<128x128xbf16>
    %cst_8 = arith.constant dense<0.000000e+00> : vector<256x128xf32>
    %10 = tpu.matmul %8, %9, %cst_8 {dimension_numbers = #tpu.dot_dimension_numbers<[1], [0], [0], [1], [0, 0, 1, 1], [], []>} : vector<256x128xbf16>, vector<128x128xbf16>, vector<256x128xf32> -> vector<256x128xf32>
    %c0_9 = arith.constant 0 : index
    %c0_10 = arith.constant 0 : index
    %11 = vector.load %arg5[%c0_9, %c0_10] : memref<1x128xf32, #tpu.memory_space<vmem>>, vector<1x128xf32>
    %12 = vector.broadcast %11 : vector<1x128xf32> to vector<256x128xf32>
    %13 = arith.addf %10, %12 : vector<256x128xf32>
    %cst_11 = arith.constant 0.000000e+00 : f32
    %14 = vector.broadcast %cst_11 : f32 to vector<256x128xf32>
    %15 = arith.maximumf %13, %14 : vector<256x128xf32>
    %c0_12 = arith.constant 0 : index
    %c0_13 = arith.constant 0 : index
    %16 = vector.load %arg8[%c0_12, %c0_13] : memref<256x128xf32, #tpu.memory_space<vmem>>, vector<256x128xf32>
    tpu.vector_store %arg8[%c0_12, %c0_13], %15 {strides = array<i32>} : memref<256x128xf32, #tpu.memory_space<vmem>>, vector<256x128xf32>,
    %17 = arith.truncf %15 : vector<256x128xf32> to vector<256x128xbf16>
    %c0_14 = arith.constant 0 : index
    %c0_15 = arith.constant 0 : index
    %18 = vector.load %arg6[%c0_14, %c0_15] : memref<128x384xbf16, #tpu.memory_space<vmem>>, vector<128x384xbf16>
    %cst_16 = arith.constant dense<0.000000e+00> : vector<256x384xf32>
    %19 = tpu.matmul %17, %18, %cst_16 {dimension_numbers = #tpu.dot_dimension_numbers<[1], [0], [0], [1], [0, 0, 1, 1], [], []>} : vector<256x128xbf16>, vector<128x384xbf16>, vector<256x384xf32> -> vector<256x384xf32>
    %c0_17 = arith.constant 0 : index
    %c0_18 = arith.constant 0 : index
    %20 = vector.load %arg7[%c0_17, %c0_18] : memref<1x384xf32, #tpu.memory_space<vmem>>, vector<1x384xf32>
    %21 = vector.broadcast %20 : vector<1x384xf32> to vector<256x384xf32>
    %22 = arith.addf %19, %21 : vector<256x384xf32>
    %23 = arith.truncf %22 : vector<256x384xf32> to vector<256x384xbf16>
    %c0_19 = arith.constant 0 : index
    %c0_20 = arith.constant 0 : index
    %24 = vector.load %arg9[%c0_19, %c0_20] : memref<256x384xbf16, #tpu.memory_space<vmem>>, vector<256x384xbf16>
    tpu.vector_store %arg9[%c0_19, %c0_20], %23 {strides = array<i32>} : memref<256x384xbf16, #tpu.memory_space<vmem>>, vector<256x384xbf16>,
    return
  }
  func.func @transform_0(%arg0: i32) -> (i32, i32) {
    %c0_i32 = arith.constant 0 : i32
    %c0_i32_0 = arith.constant 0 : i32
    return %arg0, %c0_i32 : i32, i32
  }
  func.func @transform_1(%arg0: i32) -> (i32, i32) {
    %c0_i32 = arith.constant 0 : i32
    %c0_i32_0 = arith.constant 0 : i32
    %c0_i32_1 = arith.constant 0 : i32
    return %c0_i32, %c0_i32_0 : i32, i32
  }
  func.func @transform_2(%arg0: i32) -> (i32, i32) {
    %c0_i32 = arith.constant 0 : i32
    %c0_i32_0 = arith.constant 0 : i32
    %c0_i32_1 = arith.constant 0 : i32
    return %c0_i32, %c0_i32_0 : i32, i32
  }
  func.func @transform_3(%arg0: i32) -> (i32, i32) {
    %c0_i32 = arith.constant 0 : i32
    %c0_i32_0 = arith.constant 0 : i32
    %c0_i32_1 = arith.constant 0 : i32
    return %c0_i32, %c0_i32_0 : i32, i32
  }
  func.func @transform_4(%arg0: i32) -> (i32, i32) {
    %c0_i32 = arith.constant 0 : i32
    %c0_i32_0 = arith.constant 0 : i32
    %c0_i32_1 = arith.constant 0 : i32
    return %c0_i32, %c0_i32_0 : i32, i32
  }
  func.func @transform_5(%arg0: i32) -> (i32, i32) {
    %c0_i32 = arith.constant 0 : i32
    %c0_i32_0 = arith.constant 0 : i32
    %c0_i32_1 = arith.constant 0 : i32
    return %c0_i32, %c0_i32_0 : i32, i32
  }
  func.func @transform_6(%arg0: i32) -> (i32, i32) {
    %c0_i32 = arith.constant 0 : i32
    %c0_i32_0 = arith.constant 0 : i32
    %c0_i32_1 = arith.constant 0 : i32
    return %c0_i32, %c0_i32_0 : i32, i32
  }
  func.func @transform_7(%arg0: i32) -> (i32, i32) {
    %c0_i32 = arith.constant 0 : i32
    %c0_i32_0 = arith.constant 0 : i32
    return %arg0, %c0_i32 : i32, i32
  }
  func.func @transform_8(%arg0: i32) -> (i32, i32) {
    %c0_i32 = arith.constant 0 : i32
    %c0_i32_0 = arith.constant 0 : i32
    return %arg0, %c0_i32 : i32, i32
  }
}

module attributes {stable_mosaic.version = 11 : i64} {
  func.func @_union_relation_kernel(%arg0: i32, %arg1: memref<256x2xi32, #tpu.memory_space<vmem>>, %arg2: memref<256x256xbf16, #tpu.memory_space<vmem>>, %arg3: memref<256x128xbf16, #tpu.memory_space<vmem>>, %arg4: memref<1x128xf32, #tpu.memory_space<vmem>>, %arg5: memref<128x128xbf16, #tpu.memory_space<vmem>>, %arg6: memref<1x128xf32, #tpu.memory_space<vmem>>, %arg7: memref<8x128xbf16, #tpu.memory_space<vmem>>, %arg8: memref<8x128xbf16, #tpu.memory_space<vmem>>, %arg9: memref<1x128xf32, #tpu.memory_space<vmem>>, %arg10: memref<128x128xbf16, #tpu.memory_space<vmem>>, %arg11: memref<1x128xf32, #tpu.memory_space<vmem>>, %arg12: memref<256x128xf32, #tpu.memory_space<vmem>>) attributes {dimension_semantics = [#tpu.dimension_semantics<parallel>], iteration_bounds = array<i64: 1>, scalar_prefetch = 0 : i64, scratch_operands = 0 : i64, tpu.core_type = #tpu.core_type<tc>, window_params = [{transform_indices = @transform_0, window_bounds = array<i64: 256, 2>}, {transform_indices = @transform_1, window_bounds = array<i64: 256, 256>}, {pipeline_mode = #tpu.pipeline_mode<synchronous>, transform_indices = @transform_2, window_bounds = array<i64: 256, 128>}, {pipeline_mode = #tpu.pipeline_mode<synchronous>, transform_indices = @transform_3, window_bounds = array<i64: 1, 128>}, {pipeline_mode = #tpu.pipeline_mode<synchronous>, transform_indices = @transform_4, window_bounds = array<i64: 128, 128>}, {pipeline_mode = #tpu.pipeline_mode<synchronous>, transform_indices = @transform_5, window_bounds = array<i64: 1, 128>}, {pipeline_mode = #tpu.pipeline_mode<synchronous>, transform_indices = @transform_6, window_bounds = array<i64: 8, 128>}, {pipeline_mode = #tpu.pipeline_mode<synchronous>, transform_indices = @transform_7, window_bounds = array<i64: 8, 128>}, {pipeline_mode = #tpu.pipeline_mode<synchronous>, transform_indices = @transform_8, window_bounds = array<i64: 1, 128>}, {pipeline_mode = #tpu.pipeline_mode<synchronous>, transform_indices = @transform_9, window_bounds = array<i64: 128, 128>}, {pipeline_mode = #tpu.pipeline_mode<synchronous>, transform_indices = @transform_10, window_bounds = array<i64: 1, 128>}, {transform_indices = @transform_11, window_bounds = array<i64: 256, 128>}]} {
    %c0 = arith.constant 0 : index
    %c0_0 = arith.constant 0 : index
    %0 = vector.load %arg2[%c0, %c0_0] : memref<256x256xbf16, #tpu.memory_space<vmem>>, vector<256x256xbf16>
    %c0_1 = arith.constant 0 : index
    %c0_2 = arith.constant 0 : index
    %1 = vector.load %arg3[%c0_1, %c0_2] : memref<256x128xbf16, #tpu.memory_space<vmem>>, vector<256x128xbf16>
    %cst = arith.constant dense<0.000000e+00> : vector<256x128xf32>
    %2 = tpu.matmul %0, %1, %cst {dimension_numbers = #tpu.dot_dimension_numbers<[1], [0], [0], [1], [0, 0, 1, 1], [], []>} : vector<256x256xbf16>, vector<256x128xbf16>, vector<256x128xf32> -> vector<256x128xf32>
    %c0_3 = arith.constant 0 : index
    %c0_4 = arith.constant 0 : index
    %3 = vector.load %arg4[%c0_3, %c0_4] : memref<1x128xf32, #tpu.memory_space<vmem>>, vector<1x128xf32>
    %4 = vector.broadcast %3 : vector<1x128xf32> to vector<256x128xf32>
    %5 = arith.addf %2, %4 : vector<256x128xf32>
    %cst_5 = arith.constant 0.000000e+00 : f32
    %6 = vector.broadcast %cst_5 : f32 to vector<256x128xf32>
    %7 = arith.maximumf %5, %6 : vector<256x128xf32>
    %8 = arith.truncf %7 : vector<256x128xf32> to vector<256x128xbf16>
    %c0_6 = arith.constant 0 : index
    %c0_7 = arith.constant 0 : index
    %9 = vector.load %arg5[%c0_6, %c0_7] : memref<128x128xbf16, #tpu.memory_space<vmem>>, vector<128x128xbf16>
    %cst_8 = arith.constant dense<0.000000e+00> : vector<256x128xf32>
    %10 = tpu.matmul %8, %9, %cst_8 {dimension_numbers = #tpu.dot_dimension_numbers<[1], [0], [0], [1], [0, 0, 1, 1], [], []>} : vector<256x128xbf16>, vector<128x128xbf16>, vector<256x128xf32> -> vector<256x128xf32>
    %c0_9 = arith.constant 0 : index
    %c0_10 = arith.constant 0 : index
    %11 = vector.load %arg6[%c0_9, %c0_10] : memref<1x128xf32, #tpu.memory_space<vmem>>, vector<1x128xf32>
    %12 = vector.broadcast %11 : vector<1x128xf32> to vector<256x128xf32>
    %13 = arith.addf %10, %12 : vector<256x128xf32>
    %cst_11 = arith.constant 0.000000e+00 : f32
    %14 = vector.broadcast %cst_11 : f32 to vector<256x128xf32>
    %15 = arith.maximumf %13, %14 : vector<256x128xf32>
    %16 = arith.truncf %15 : vector<256x128xf32> to vector<256x128xbf16>
    %c0_12 = arith.constant 0 : index
    %c0_13 = arith.constant 0 : index
    %17 = vector.load %arg1[%c0_12, %c0_13] : memref<256x2xi32, #tpu.memory_space<vmem>>, vector<256x2xi32>
    %18 = tpu.iota {dimensions = array<i32: 1>} : vector<256x8xi32>
    %19 = vector.extract_strided_slice %17 {offsets = [0, 0], sizes = [256, 1], strides = [1, 1]} : vector<256x2xi32> to vector<256x1xi32>
    %20 = vector.broadcast %19 : vector<256x1xi32> to vector<256x8xi32>
    %21 = arith.cmpi eq, %18, %20 : vector<256x8xi32>
    %22 = arith.extui %21 : vector<256x8xi1> to vector<256x8xi32>
    %23 = arith.sitofp %22 : vector<256x8xi32> to vector<256x8xf32>
    %24 = arith.truncf %23 : vector<256x8xf32> to vector<256x8xbf16>
    %25 = vector.extract_strided_slice %17 {offsets = [0, 1], sizes = [256, 1], strides = [1, 1]} : vector<256x2xi32> to vector<256x1xi32>
    %26 = vector.broadcast %25 : vector<256x1xi32> to vector<256x8xi32>
    %27 = arith.cmpi eq, %18, %26 : vector<256x8xi32>
    %28 = arith.extui %27 : vector<256x8xi1> to vector<256x8xi32>
    %29 = arith.sitofp %28 : vector<256x8xi32> to vector<256x8xf32>
    %30 = arith.truncf %29 : vector<256x8xf32> to vector<256x8xbf16>
    %c0_14 = arith.constant 0 : index
    %c0_15 = arith.constant 0 : index
    %31 = vector.load %arg7[%c0_14, %c0_15] : memref<8x128xbf16, #tpu.memory_space<vmem>>, vector<8x128xbf16>
    %cst_16 = arith.constant dense<0.000000e+00> : vector<256x128xf32>
    %32 = tpu.matmul %24, %31, %cst_16 {dimension_numbers = #tpu.dot_dimension_numbers<[1], [0], [0], [1], [0, 0, 1, 1], [], []>} : vector<256x8xbf16>, vector<8x128xbf16>, vector<256x128xf32> -> vector<256x128xf32>
    %c0_17 = arith.constant 0 : index
    %c0_18 = arith.constant 0 : index
    %33 = vector.load %arg8[%c0_17, %c0_18] : memref<8x128xbf16, #tpu.memory_space<vmem>>, vector<8x128xbf16>
    %cst_19 = arith.constant dense<0.000000e+00> : vector<256x128xf32>
    %34 = tpu.matmul %30, %33, %cst_19 {dimension_numbers = #tpu.dot_dimension_numbers<[1], [0], [0], [1], [0, 0, 1, 1], [], []>} : vector<256x8xbf16>, vector<8x128xbf16>, vector<256x128xf32> -> vector<256x128xf32>
    %35 = arith.addf %32, %34 : vector<256x128xf32>
    %c0_20 = arith.constant 0 : index
    %c0_21 = arith.constant 0 : index
    %36 = vector.load %arg9[%c0_20, %c0_21] : memref<1x128xf32, #tpu.memory_space<vmem>>, vector<1x128xf32>
    %37 = vector.broadcast %36 : vector<1x128xf32> to vector<256x128xf32>
    %38 = arith.addf %35, %37 : vector<256x128xf32>
    %cst_22 = arith.constant 0.000000e+00 : f32
    %39 = vector.broadcast %cst_22 : f32 to vector<256x128xf32>
    %40 = arith.maximumf %38, %39 : vector<256x128xf32>
    %41 = arith.truncf %40 : vector<256x128xf32> to vector<256x128xbf16>
    %42 = arith.mulf %41, %16 : vector<256x128xbf16>
    %c0_23 = arith.constant 0 : index
    %c0_24 = arith.constant 0 : index
    %43 = vector.load %arg10[%c0_23, %c0_24] : memref<128x128xbf16, #tpu.memory_space<vmem>>, vector<128x128xbf16>
    %cst_25 = arith.constant dense<0.000000e+00> : vector<256x128xf32>
    %44 = tpu.matmul %42, %43, %cst_25 {dimension_numbers = #tpu.dot_dimension_numbers<[1], [0], [0], [1], [0, 0, 1, 1], [], []>} : vector<256x128xbf16>, vector<128x128xbf16>, vector<256x128xf32> -> vector<256x128xf32>
    %c0_26 = arith.constant 0 : index
    %c0_27 = arith.constant 0 : index
    %45 = vector.load %arg11[%c0_26, %c0_27] : memref<1x128xf32, #tpu.memory_space<vmem>>, vector<1x128xf32>
    %46 = vector.broadcast %45 : vector<1x128xf32> to vector<256x128xf32>
    %47 = arith.addf %44, %46 : vector<256x128xf32>
    %c0_28 = arith.constant 0 : index
    %c0_29 = arith.constant 0 : index
    %48 = vector.load %arg12[%c0_28, %c0_29] : memref<256x128xf32, #tpu.memory_space<vmem>>, vector<256x128xf32>
    tpu.vector_store %arg12[%c0_28, %c0_29], %47 {strides = array<i32>} : memref<256x128xf32, #tpu.memory_space<vmem>>, vector<256x128xf32>,
    return
  }
  func.func @transform_0(%arg0: i32) -> (i32, i32) {
    %c0_i32 = arith.constant 0 : i32
    %c0_i32_0 = arith.constant 0 : i32
    return %arg0, %c0_i32 : i32, i32
  }
  func.func @transform_1(%arg0: i32) -> (i32, i32) {
    %c0_i32 = arith.constant 0 : i32
    %c0_i32_0 = arith.constant 0 : i32
    return %arg0, %c0_i32 : i32, i32
  }
  func.func @transform_2(%arg0: i32) -> (i32, i32) {
    %c0_i32 = arith.constant 0 : i32
    %c0_i32_0 = arith.constant 0 : i32
    %c0_i32_1 = arith.constant 0 : i32
    return %c0_i32, %c0_i32_0 : i32, i32
  }
  func.func @transform_3(%arg0: i32) -> (i32, i32) {
    %c0_i32 = arith.constant 0 : i32
    %c0_i32_0 = arith.constant 0 : i32
    %c0_i32_1 = arith.constant 0 : i32
    return %c0_i32, %c0_i32_0 : i32, i32
  }
  func.func @transform_4(%arg0: i32) -> (i32, i32) {
    %c0_i32 = arith.constant 0 : i32
    %c0_i32_0 = arith.constant 0 : i32
    %c0_i32_1 = arith.constant 0 : i32
    return %c0_i32, %c0_i32_0 : i32, i32
  }
  func.func @transform_5(%arg0: i32) -> (i32, i32) {
    %c0_i32 = arith.constant 0 : i32
    %c0_i32_0 = arith.constant 0 : i32
    %c0_i32_1 = arith.constant 0 : i32
    return %c0_i32, %c0_i32_0 : i32, i32
  }
  func.func @transform_6(%arg0: i32) -> (i32, i32) {
    %c0_i32 = arith.constant 0 : i32
    %c0_i32_0 = arith.constant 0 : i32
    %c0_i32_1 = arith.constant 0 : i32
    return %c0_i32, %c0_i32_0 : i32, i32
  }
  func.func @transform_7(%arg0: i32) -> (i32, i32) {
    %c0_i32 = arith.constant 0 : i32
    %c0_i32_0 = arith.constant 0 : i32
    %c0_i32_1 = arith.constant 0 : i32
    return %c0_i32, %c0_i32_0 : i32, i32
  }
  func.func @transform_8(%arg0: i32) -> (i32, i32) {
    %c0_i32 = arith.constant 0 : i32
    %c0_i32_0 = arith.constant 0 : i32
    %c0_i32_1 = arith.constant 0 : i32
    return %c0_i32, %c0_i32_0 : i32, i32
  }
  func.func @transform_9(%arg0: i32) -> (i32, i32) {
    %c0_i32 = arith.constant 0 : i32
    %c0_i32_0 = arith.constant 0 : i32
    %c0_i32_1 = arith.constant 0 : i32
    return %c0_i32, %c0_i32_0 : i32, i32
  }
  func.func @transform_10(%arg0: i32) -> (i32, i32) {
    %c0_i32 = arith.constant 0 : i32
    %c0_i32_0 = arith.constant 0 : i32
    %c0_i32_1 = arith.constant 0 : i32
    return %c0_i32, %c0_i32_0 : i32, i32
  }
  func.func @transform_11(%arg0: i32) -> (i32, i32) {
    %c0_i32 = arith.constant 0 : i32
    %c0_i32_0 = arith.constant 0 : i32
    return %arg0, %c0_i32 : i32, i32
  }
}

</mosaic_0001>

<llo_original>
// kernel: roi_relation_head_forward.2
$region0: #{roi_relation_head_forward.2}
  #allocation0 [shape = 'u32[]', space=smem, size = 0x4, offset = 0x4, fixed_abs, tag = 'smem constant byte address 0x4 - core index']
  #allocation1 [shape = 'u32[72,128]{1,0:T(1,128)}', space=vmem, size = 0x9000, scoped, tag = 'internal scratch']
  %s0 = inlined_call_operand.vmem [shape: bf16[8,256], index: 0, kind: input, shape index: {}]
  %s1 = inlined_call_operand.vmem [shape: bf16[256,128], index: 1, kind: input, shape index: {}]
  %s2 = inlined_call_operand.vmem [shape: f32[1,128], index: 2, kind: input, shape index: {}]
  %s3 = inlined_call_operand.vmem [shape: bf16[128,128], index: 3, kind: input, shape index: {}]
  %s4 = inlined_call_operand.vmem [shape: f32[1,128], index: 4, kind: input, shape index: {}]
  %s5 = inlined_call_operand.vmem [shape: bf16[128,384], index: 5, kind: input, shape index: {}]
  %s6 = inlined_call_operand.vmem [shape: f32[1,384], index: 6, kind: input, shape index: {}]
  %s7 = inlined_call_operand.hbm [shape: f32[8,128], index: 7, kind: output, shape index: {0}]
  %s8 = inlined_call_operand.vmem [shape: bf16[8,384], index: 8, kind: output, shape index: {1}]
  %9 = xla_tuple %s7, %s8
  %s10 = sld [smem:[#allocation0]]
  $region68: #{roi_relation_head_forward.2} parent=0
    _
  %s12 = ssub.s32 1, %s10
  %s13 = scalar_select 0, %s12, %s10
  $region1: #{roi_relation_head_forward.2} parent=0
    #allocation2 [shape = 'u8[131072]{0}', space=vmem, size = 0x20000, scoped, tag = 'output window, operand 0, single buffered']
    #allocation3 [shape = 's32[1]{0}', space=sflag, size = 0x4, scoped, tag = 'scoped memory for roi_relation_head_forward.2']
    #allocation4 [shape = 'u8[196608]{0}', space=vmem, size = 0x30000, scoped, tag = 'output window, operand 1, single buffered']
    %14 = vsyncpa [#allocation3], 0
    // Predicated region
    $region2: #{roi_relation_head_forward.2} parent=1 // pred_check
      _
    $region3: #{roi_relation_head_forward.2} parent=1 // pred_check_branch
      %16 = sbr.rel (0) target = $region5
    $region4: #{roi_relation_head_forward.2} parent=1 // pred_region
      _
    $region5: #{roi_relation_head_forward.2} parent=1 // pred_fallthru
      _
    // Predicated region
    $region6: #{roi_relation_head_forward.2} parent=1 // pred_check
      _
    $region7: #{roi_relation_head_forward.2} parent=1 // pred_check_branch
      %18 = sbr.rel (0) target = $region9
    $region8: #{roi_relation_head_forward.2} parent=1 // pred_region
      _
    $region9: #{roi_relation_head_forward.2} parent=1 // pred_fallthru
      _
    // Predicated region
    $region10: #{roi_relation_head_forward.2} parent=1 // pred_check
      _
    $region11: #{roi_relation_head_forward.2} parent=1 // pred_check_branch
      %20 = sbr.rel (0) target = $region13
    $region12: #{roi_relation_head_forward.2} parent=1 // pred_region
      _
    $region13: #{roi_relation_head_forward.2} parent=1 // pred_fallthru
      _
    // Predicated region
    $region14: #{roi_relation_head_forward.2} parent=1 // pred_check
      _
    $region15: #{roi_relation_head_forward.2} parent=1 // pred_check_branch
      %22 = sbr.rel (0) target = $region17
    $region16: #{roi_relation_head_forward.2} parent=1 // pred_region
      _
    $region17: #{roi_relation_head_forward.2} parent=1 // pred_fallthru
      _
    // Predicated region
    $region18: #{roi_relation_head_forward.2} parent=1 // pred_check
      _
    $region19: #{roi_relation_head_forward.2} parent=1 // pred_check_branch
      %24 = sbr.rel (0) target = $region21
    $region20: #{roi_relation_head_forward.2} parent=1 // pred_region
      _
    $region21: #{roi_relation_head_forward.2} parent=1 // pred_fallthru
      _
    // Predicated region
    $region22: #{roi_relation_head_forward.2} parent=1 // pred_check
      _
    $region23: #{roi_relation_head_forward.2} parent=1 // pred_check_branch
      %26 = sbr.rel (0) target = $region25
    $region24: #{roi_relation_head_forward.2} parent=1 // pred_region
      _
    $region25: #{roi_relation_head_forward.2} parent=1 // pred_fallthru
      _
    // Predicated region
    $region26: #{roi_relation_head_forward.2} parent=1 // pred_check
      _
    $region27: #{roi_relation_head_forward.2} parent=1 // pred_check_branch
      %28 = sbr.rel (0) target = $region29
    $region28: #{roi_relation_head_forward.2} parent=1 // pred_region
      _
    $region29: #{roi_relation_head_forward.2} parent=1 // pred_fallthru
      _
    %v29 = vld [vmem:[%s0] sm:$0xff]
    %v30 = vld [vmem:[%s0 + $0x8] sm:$0xff]
    %v31 = vld [vmem:[%s0 + $0x10] sm:$0xff]
    %v32 = vld [vmem:[%s0 + $0x18] sm:$0xff]
    %v33 = vld [vmem:[%s0 + $0x20] sm:$0xff]
    %v34 = vld [vmem:[%s0 + $0x28] sm:$0xff]
    %v35 = vld [vmem:[%s0 + $0x30] sm:$0xff]
    %v36 = vld [vmem:[%s0 + $0x38] sm:$0xff]
    %v37 = vld [vmem:[%s0 + $0x40] sm:$0xff]
    %v38 = vld [vmem:[%s0 + $0x48] sm:$0xff]
    %v39 = vld [vmem:[%s0 + $0x50] sm:$0xff]
    %v40 = vld [vmem:[%s0 + $0x58] sm:$0xff]
    %v41 = vld [vmem:[%s0 + $0x60] sm:$0xff]
    %v42 = vld [vmem:[%s0 + $0x68] sm:$0xff]
    %v43 = vld [vmem:[%s0 + $0x70] sm:$0xff]
    %v44 = vld [vmem:[%s0 + $0x78] sm:$0xff]
    %v45 = vld [vmem:[%s0 + $0x80] sm:$0xff]
    %v46 = vld [vmem:[%s0 + $0x88] sm:$0xff]
    %v47 = vld [vmem:[%s0 + $0x90] sm:$0xff]
    %v48 = vld [vmem:[%s0 + $0x98] sm:$0xff]
    %v49 = vld [vmem:[%s0 + $0xa0] sm:$0xff]
    %v50 = vld [vmem:[%s0 + $0xa8] sm:$0xff]
    %v51 = vld [vmem:[%s0 + $0xb0] sm:$0xff]
    %v52 = vld [vmem:[%s0 + $0xb8] sm:$0xff]
    %v53 = vld [vmem:[%s0 + $0xc0] sm:$0xff]
    %v54 = vld [vmem:[%s0 + $0xc8] sm:$0xff]
    %v55 = vld [vmem:[%s0 + $0xd0] sm:$0xff]
    %v56 = vld [vmem:[%s0 + $0xd8] sm:$0xff]
    %v57 = vld [vmem:[%s0 + $0xe0] sm:$0xff]
    %v58 = vld [vmem:[%s0 + $0xe8] sm:$0xff]
    %v59 = vld [vmem:[%s0 + $0xf0] sm:$0xff]
    %v60 = vld [vmem:[%s0 + $0xf8] sm:$0xff]
    %v61 = vld [vmem:[%s1] sm:$0xf]
    %v62 = vld [vmem:[%s1 + $0x4] sm:$0xf]
    %v63 = vld [vmem:[%s1 + $0x8] sm:$0xf]
    %v64 = vld [vmem:[%s1 + $0xc] sm:$0xf]
    %v65 = vld [vmem:[%s1 + $0x10] sm:$0xf]
    %v66 = vld [vmem:[%s1 + $0x14] sm:$0xf]
    %v67 = vld [vmem:[%s1 + $0x18] sm:$0xf]
    %v68 = vld [vmem:[%s1 + $0x1c] sm:$0xf]
    %v69 = vld [vmem:[%s1 + $0x20] sm:$0xf]
    %v70 = vld [vmem:[%s1 + $0x24] sm:$0xf]
    %v71 = vld [vmem:[%s1 + $0x28] sm:$0xf]
    %v72 = vld [vmem:[%s1 + $0x2c] sm:$0xf]
    %v73 = vld [vmem:[%s1 + $0x30] sm:$0xf]
    %v74 = vld [vmem:[%s1 + $0x34] sm:$0xf]
    %v75 = vld [vmem:[%s1 + $0x38] sm:$0xf]
    %v76 = vld [vmem:[%s1 + $0x3c] sm:$0xf]
    %v77 = vld [vmem:[%s1 + $0x40] sm:$0xf]
    %v78 = vld [vmem:[%s1 + $0x44] sm:$0xf]
    %v79 = vld [vmem:[%s1 + $0x48] sm:$0xf]
    %v80 = vld [vmem:[%s1 + $0x4c] sm:$0xf]
    %v81 = vld [vmem:[%s1 + $0x50] sm:$0xf]
    %v82 = vld [vmem:[%s1 + $0x54] sm:$0xf]
    %v83 = vld [vmem:[%s1 + $0x58] sm:$0xf]
    %v84 = vld [vmem:[%s1 + $0x5c] sm:$0xf]
    %v85 = vld [vmem:[%s1 + $0x60] sm:$0xf]
    %v86 = vld [vmem:[%s1 + $0x64] sm:$0xf]
    %v87 = vld [vmem:[%s1 + $0x68] sm:$0xf]
    %v88 = vld [vmem:[%s1 + $0x6c] sm:$0xf]
    %v89 = vld [vmem:[%s1 + $0x70] sm:$0xf]
    %v90 = vld [vmem:[%s1 + $0x74] sm:$0xf]
    %v91 = vld [vmem:[%s1 + $0x78] sm:$0xf]
    %v92 = vld [vmem:[%s1 + $0x7c] sm:$0xf]
    %v93 = vld [vmem:[%s2] sm:$0x1]
    %v95 = vperm.slane %v93, 0
    %v129 = vunpack.c.l.b16 %v29
    %v130 = vunpack.c.h.b16 %v29
    %v131 = vunpack.c.l.b16 %v30
    %v132 = vunpack.c.h.b16 %v30
    %v133 = vunpack.c.l.b16 %v31
    %v134 = vunpack.c.h.b16 %v31
    %v135 = vunpack.c.l.b16 %v32
    %v136 = vunpack.c.h.b16 %v32
    %v137 = vunpack.c.l.b16 %v33
    %v138 = vunpack.c.h.b16 %v33
    %v139 = vunpack.c.l.b16 %v34
    %v140 = vunpack.c.h.b16 %v34
    %v141 = vunpack.c.l.b16 %v35
    %v142 = vunpack.c.h.b16 %v35
    %v143 = vunpack.c.l.b16 %v36
    %v144 = vunpack.c.h.b16 %v36
    %v145 = vunpack.c.l.b16 %v37
    %v146 = vunpack.c.h.b16 %v37
    %v147 = vunpack.c.l.b16 %v38
    %v148 = vunpack.c.h.b16 %v38
    %v149 = vunpack.c.l.b16 %v39
    %v150 = vunpack.c.h.b16 %v39
    %v151 = vunpack.c.l.b16 %v40
    %v152 = vunpack.c.h.b16 %v40
    %v153 = vunpack.c.l.b16 %v41
    %v154 = vunpack.c.h.b16 %v41
    %v155 = vunpack.c.l.b16 %v42
    %v156 = vunpack.c.h.b16 %v42
    %v157 = vunpack.c.l.b16 %v43
    %v158 = vunpack.c.h.b16 %v43
    %v159 = vunpack.c.l.b16 %v44
    %v160 = vunpack.c.h.b16 %v44
    %v161 = vunpack.c.l.b16 %v45
    %v162 = vunpack.c.h.b16 %v45
    %v163 = vunpack.c.l.b16 %v46
    %v164 = vunpack.c.h.b16 %v46
    %v165 = vunpack.c.l.b16 %v47
    %v166 = vunpack.c.h.b16 %v47
    %v167 = vunpack.c.l.b16 %v48
    %v168 = vunpack.c.h.b16 %v48
    %v169 = vunpack.c.l.b16 %v49
    %v170 = vunpack.c.h.b16 %v49
    %v171 = vunpack.c.l.b16 %v50
    %v172 = vunpack.c.h.b16 %v50
    %v173 = vunpack.c.l.b16 %v51
    %v174 = vunpack.c.h.b16 %v51
    %v175 = vunpack.c.l.b16 %v52
    %v176 = vunpack.c.h.b16 %v52
    %v177 = vunpack.c.l.b16 %v53
    %v178 = vunpack.c.h.b16 %v53
    %v179 = vunpack.c.l.b16 %v54
    %v180 = vunpack.c.h.b16 %v54
    %v181 = vunpack.c.l.b16 %v55
    %v182 = vunpack.c.h.b16 %v55
    %v183 = vunpack.c.l.b16 %v56
    %v184 = vunpack.c.h.b16 %v56
    %v185 = vunpack.c.l.b16 %v57
    %v186 = vunpack.c.h.b16 %v57
    %v187 = vunpack.c.l.b16 %v58
    %v188 = vunpack.c.h.b16 %v58
    %v189 = vunpack.c.l.b16 %v59
    %v190 = vunpack.c.h.b16 %v59
    %v191 = vunpack.c.l.b16 %v60
    %v192 = vunpack.c.h.b16 %v60
    %v193 = vpack.c.b16 %v131, %v129
    %v194 = vpack.c.b16 %v132, %v130
    %v195 = vpack.c.b16 %v135, %v133
    %v196 = vpack.c.b16 %v136, %v134
    %v197 = vpack.c.b16 %v139, %v137
    %v198 = vpack.c.b16 %v140, %v138
    %v199 = vpack.c.b16 %v143, %v141
    %v200 = vpack.c.b16 %v144, %v142
    %v201 = vpack.c.b16 %v147, %v145
    %v202 = vpack.c.b16 %v148, %v146
    %v203 = vpack.c.b16 %v151, %v149
    %v204 = vpack.c.b16 %v152, %v150
    %v205 = vpack.c.b16 %v155, %v153
    %v206 = vpack.c.b16 %v156, %v154
    %v207 = vpack.c.b16 %v159, %v157
    %v208 = vpack.c.b16 %v160, %v158
    %v209 = vpack.c.b16 %v163, %v161
    %v210 = vpack.c.b16 %v164, %v162
    %v211 = vpack.c.b16 %v167, %v165
    %v212 = vpack.c.b16 %v168, %v166
    %v213 = vpack.c.b16 %v171, %v169
    %v214 = vpack.c.b16 %v172, %v170
    %v215 = vpack.c.b16 %v175, %v173
    %v216 = vpack.c.b16 %v176, %v174
    %v217 = vpack.c.b16 %v179, %v177
    %v218 = vpack.c.b16 %v180, %v178
    %v219 = vpack.c.b16 %v183, %v181
    %v220 = vpack.c.b16 %v184, %v182
    %v221 = vpack.c.b16 %v187, %v185
    %v222 = vpack.c.b16 %v188, %v186
    %v223 = vpack.c.b16 %v191, %v189
    %v224 = vpack.c.b16 %v192, %v190
    %v289 = vunpack.c.l.b16 %v61
    %v290 = vunpack.c.l.b16 %v62
    %v291 = vunpack.c.l.b16 %v63
    %v292 = vunpack.c.l.b16 %v64
    %v293 = vunpack.c.l.b16 %v65
    %v294 = vunpack.c.l.b16 %v66
    %v295 = vunpack.c.l.b16 %v67
    %v296 = vunpack.c.l.b16 %v68
    %v297 = vunpack.c.l.b16 %v69
    %v298 = vunpack.c.l.b16 %v70
    %v299 = vunpack.c.l.b16 %v71
    %v300 = vunpack.c.l.b16 %v72
    %v301 = vunpack.c.l.b16 %v73
    %v302 = vunpack.c.l.b16 %v74
    %v303 = vunpack.c.l.b16 %v75
    %v304 = vunpack.c.l.b16 %v76
    %v305 = vunpack.c.l.b16 %v77
    %v306 = vunpack.c.l.b16 %v78
    %v307 = vunpack.c.l.b16 %v79
    %v308 = vunpack.c.l.b16 %v80
    %v309 = vunpack.c.l.b16 %v81
    %v310 = vunpack.c.l.b16 %v82
    %v311 = vunpack.c.l.b16 %v83
    %v312 = vunpack.c.l.b16 %v84
    %v313 = vunpack.c.l.b16 %v85
    %v314 = vunpack.c.l.b16 %v86
    %v315 = vunpack.c.l.b16 %v87
    %v316 = vunpack.c.l.b16 %v88
    %v317 = vunpack.c.l.b16 %v89
    %v318 = vunpack.c.l.b16 %v90
    %v319 = vunpack.c.l.b16 %v91
    %v320 = vunpack.c.l.b16 %v92
    %v321 = vpack.c.b16 %v290, %v289
    %v322 = vpack.c.b16 %v292, %v291
    %v323 = vpack.c.b16 %v294, %v293
    %v324 = vpack.c.b16 %v296, %v295
    %v325 = vpack.c.b16 %v298, %v297
    %v326 = vpack.c.b16 %v300, %v299
    %v327 = vpack.c.b16 %v302, %v301
    %v328 = vpack.c.b16 %v304, %v303
    %v329 = vpack.c.b16 %v306, %v305
    %v330 = vpack.c.b16 %v308, %v307
    %v331 = vpack.c.b16 %v310, %v309
    %v332 = vpack.c.b16 %v312, %v311
    %v333 = vpack.c.b16 %v314, %v313
    %v334 = vpack.c.b16 %v316, %v315
    %v335 = vpack.c.b16 %v318, %v317
    %v336 = vpack.c.b16 %v320, %v319
    %353 = vmatpush.bf16.msra.mxu0 %v328
    %354 = vmatpush.bf16.msra.mxu0 %v327
    %355 = vmatpush.bf16.msra.mxu0 %v326
    %356 = vmatpush.bf16.msra.mxu0 %v325
    %357 = vmatpush.bf16.msra.mxu0 %v324
    %358 = vmatpush.bf16.msra.mxu0 %v323
    %359 = vmatpush.bf16.msra.mxu0 %v322
    %360 = vmatpush.bf16.msra.mxu0 %v321
    %361 = vmatmul.bf16.gmra.mxu0 %v193
    %v362 = vpop.f32.mrf.mxu0
    %v363 = vadd.f32 %v95, %v362
    %v364 = vpop.f32.mrf.mxu0
    %v365 = vadd.f32 %v95, %v364
    %366 = vmatmul.bf16.gmra.mxu0 %v195
    %v367 = vpop.f32.mrf.mxu0
    %v368 = vadd.f32 %v95, %v367
    %v369 = vpop.f32.mrf.mxu0
    %v370 = vadd.f32 %v95, %v369
    %371 = vmatmul.bf16.gmra.mxu0 %v197
    %v372 = vpop.f32.mrf.mxu0
    %v373 = vadd.f32 %v95, %v372
    %v374 = vpop.f32.mrf.mxu0
    %v375 = vadd.f32 %v95, %v374
    %376 = vmatmul.bf16.gmra.mxu0 %v199
    %v377 = vpop.f32.mrf.mxu0
    %v378 = vadd.f32 %v95, %v377
    %v379 = vpop.f32.mrf.mxu0
    %v380 = vadd.f32 %v95, %v379
    %381 = vmatmul.bf16.gmra.mxu0 %v201
    %v382 = vpop.f32.mrf.mxu0
    %v383 = vadd.f32 %v95, %v382
    %v384 = vpop.f32.mrf.mxu0
    %v385 = vadd.f32 %v95, %v384
    %386 = vmatmul.bf16.gmra.mxu0 %v203
    %v387 = vpop.f32.mrf.mxu0
    %v388 = vadd.f32 %v95, %v387
    %v389 = vpop.f32.mrf.mxu0
    %v390 = vadd.f32 %v95, %v389
    %391 = vmatmul.bf16.gmra.mxu0 %v205
    %v392 = vpop.f32.mrf.mxu0
    %v393 = vadd.f32 %v95, %v392
    %v394 = vpop.f32.mrf.mxu0
    %v395 = vadd.f32 %v95, %v394
    %396 = vmatmul.bf16.gmra.mxu0 %v207
    %v397 = vpop.f32.mrf.mxu0
    %v398 = vadd.f32 %v95, %v397
    %v399 = vpop.f32.mrf.mxu0
    %v400 = vadd.f32 %v95, %v399
    %401 = vmatmul.bf16.gmra.mxu0 %v209
    %v402 = vpop.f32.mrf.mxu0
    %v403 = vadd.f32 %v95, %v402
    %v404 = vpop.f32.mrf.mxu0
    %v405 = vadd.f32 %v95, %v404
    %406 = vmatmul.bf16.gmra.mxu0 %v211
    %v407 = vpop.f32.mrf.mxu0
    %v408 = vadd.f32 %v95, %v407
    %v409 = vpop.f32.mrf.mxu0
    %v410 = vadd.f32 %v95, %v409
    %411 = vmatmul.bf16.gmra.mxu0 %v213
    %v412 = vpop.f32.mrf.mxu0
    %v413 = vadd.f32 %v95, %v412
    %v414 = vpop.f32.mrf.mxu0
    %v415 = vadd.f32 %v95, %v414
    %416 = vmatmul.bf16.gmra.mxu0 %v215
    %v417 = vpop.f32.mrf.mxu0
    %v418 = vadd.f32 %v95, %v417
    %v419 = vpop.f32.mrf.mxu0
    %v420 = vadd.f32 %v95, %v419
    %421 = vmatmul.bf16.gmra.mxu0 %v217
    %v422 = vpop.f32.mrf.mxu0
    %v423 = vadd.f32 %v95, %v422
    %v424 = vpop.f32.mrf.mxu0
    %v425 = vadd.f32 %v95, %v424
    %426 = vmatmul.bf16.gmra.mxu0 %v219
    %v427 = vpop.f32.mrf.mxu0
    %v428 = vadd.f32 %v95, %v427
    %v429 = vpop.f32.mrf.mxu0
    %v430 = vadd.f32 %v95, %v429
    %431 = vmatmul.bf16.gmra.mxu0 %v221
    %v432 = vpop.f32.mrf.mxu0
    %v433 = vadd.f32 %v95, %v432
    %v434 = vpop.f32.mrf.mxu0
    %v435 = vadd.f32 %v95, %v434
    %436 = vmatmul.bf16.gmra.mxu0 %v223
    %v437 = vpop.f32.mrf.mxu0
    %v438 = vadd.f32 %v95, %v437
    %v439 = vpop.f32.mrf.mxu0
    %v440 = vadd.f32 %v95, %v439
    %441 = vdwg.mxu0
    %442 = vmatpush.bf16.msra.mxu0 %v336
    %443 = vmatpush.bf16.msra.mxu0 %v335
    %444 = vmatpush.bf16.msra.mxu0 %v334
    %445 = vmatpush.bf16.msra.mxu0 %v333
    %446 = vmatpush.bf16.msra.mxu0 %v332
    %447 = vmatpush.bf16.msra.mxu0 %v331
    %448 = vmatpush.bf16.msra.mxu0 %v330
    %449 = vmatpush.bf16.msra.mxu0 %v329
    %450 = vmatmul.bf16.gmra.mxu0 %v194
    %v451 = vpop.f32.mrf.mxu0
    %v452 = vadd.f32 %v363, %v451
    %v453 = vpop.f32.mrf.mxu0
    %v454 = vadd.f32 %v365, %v453
    %455 = vmatmul.bf16.gmra.mxu0 %v196
    %v456 = vpop.f32.mrf.mxu0
    %v457 = vadd.f32 %v368, %v456
    %v458 = vpop.f32.mrf.mxu0
    %v459 = vadd.f32 %v370, %v458
    %460 = vmatmul.bf16.gmra.mxu0 %v198
    %v461 = vpop.f32.mrf.mxu0
    %v462 = vadd.f32 %v373, %v461
    %v463 = vpop.f32.mrf.mxu0
    %v464 = vadd.f32 %v375, %v463
    %465 = vmatmul.bf16.gmra.mxu0 %v200
    %v466 = vpop.f32.mrf.mxu0
    %v467 = vadd.f32 %v378, %v466
    %v468 = vpop.f32.mrf.mxu0
    %v469 = vadd.f32 %v380, %v468
    %470 = vmatmul.bf16.gmra.mxu0 %v202
    %v471 = vpop.f32.mrf.mxu0
    %v472 = vadd.f32 %v383, %v471
    %v473 = vpop.f32.mrf.mxu0
    %v474 = vadd.f32 %v385, %v473
    %475 = vmatmul.bf16.gmra.mxu0 %v204
    %v476 = vpop.f32.mrf.mxu0
    %v477 = vadd.f32 %v388, %v476
    %v478 = vpop.f32.mrf.mxu0
    %v479 = vadd.f32 %v390, %v478
    %480 = vmatmul.bf16.gmra.mxu0 %v206
    %v481 = vpop.f32.mrf.mxu0
    %v482 = vadd.f32 %v393, %v481
    %v483 = vpop.f32.mrf.mxu0
    %v484 = vadd.f32 %v395, %v483
    %485 = vmatmul.bf16.gmra.mxu0 %v208
    %v486 = vpop.f32.mrf.mxu0
    %v487 = vadd.f32 %v398, %v486
    %v488 = vpop.f32.mrf.mxu0
    %v489 = vadd.f32 %v400, %v488
    %490 = vmatmul.bf16.gmra.mxu0 %v210
    %v491 = vpop.f32.mrf.mxu0
    %v492 = vadd.f32 %v403, %v491
    %v493 = vpop.f32.mrf.mxu0
    %v494 = vadd.f32 %v405, %v493
    %495 = vmatmul.bf16.gmra.mxu0 %v212
    %v496 = vpop.f32.mrf.mxu0
    %v497 = vadd.f32 %v408, %v496
    %v498 = vpop.f32.mrf.mxu0
    %v499 = vadd.f32 %v410, %v498
    %500 = vmatmul.bf16.gmra.mxu0 %v214
    %v501 = vpop.f32.mrf.mxu0
    %v502 = vadd.f32 %v413, %v501
    %v503 = vpop.f32.mrf.mxu0
    %v504 = vadd.f32 %v415, %v503
    %505 = vmatmul.bf16.gmra.mxu0 %v216
    %v506 = vpop.f32.mrf.mxu0
    %v507 = vadd.f32 %v418, %v506
    %v508 = vpop.f32.mrf.mxu0
    %v509 = vadd.f32 %v420, %v508
    %510 = vmatmul.bf16.gmra.mxu0 %v218
    %v511 = vpop.f32.mrf.mxu0
    %v512 = vadd.f32 %v423, %v511
    %v513 = vpop.f32.mrf.mxu0
    %v514 = vadd.f32 %v425, %v513
    %515 = vmatmul.bf16.gmra.mxu0 %v220
    %v516 = vpop.f32.mrf.mxu0
    %v517 = vadd.f32 %v428, %v516
    %v518 = vpop.f32.mrf.mxu0
    %v519 = vadd.f32 %v430, %v518
    %520 = vmatmul.bf16.gmra.mxu0 %v222
    %v521 = vpop.f32.mrf.mxu0
    %v522 = vadd.f32 %v433, %v521
    %v523 = vpop.f32.mrf.mxu0
    %v524 = vadd.f32 %v435, %v523
    %525 = vmatmul.bf16.gmra.mxu0 %v224
    %v526 = vpop.f32.mrf.mxu0
    %v527 = vadd.f32 %v438, %v526
    %v528 = vpop.f32.mrf.mxu0
    %v529 = vadd.f32 %v440, %v528
    %530 = vdwg.mxu0
    %v531 = vmax.f32 %v452, 0.0
    %v532 = vmax.f32 %v454, 0.0
    %v533 = vmax.f32 %v457, 0.0
    %v534 = vmax.f32 %v459, 0.0
    %v535 = vmax.f32 %v462, 0.0
    %v536 = vmax.f32 %v464, 0.0
    %v537 = vmax.f32 %v467, 0.0
    %v538 = vmax.f32 %v469, 0.0
    %v539 = vmax.f32 %v472, 0.0
    %v540 = vmax.f32 %v474, 0.0
    %v541 = vmax.f32 %v477, 0.0
    %v542 = vmax.f32 %v479, 0.0
    %v543 = vmax.f32 %v482, 0.0
    %v544 = vmax.f32 %v484, 0.0
    %v545 = vmax.f32 %v487, 0.0
    %v546 = vmax.f32 %v489, 0.0
    %v547 = vmax.f32 %v492, 0.0
    %v548 = vmax.f32 %v494, 0.0
    %v549 = vmax.f32 %v497, 0.0
    %v550 = vmax.f32 %v499, 0.0
    %v551 = vmax.f32 %v502, 0.0
    %v552 = vmax.f32 %v504, 0.0
    %v553 = vmax.f32 %v507, 0.0
    %v554 = vmax.f32 %v509, 0.0
    %v555 = vmax.f32 %v512, 0.0
    %v556 = vmax.f32 %v514, 0.0
    %v557 = vmax.f32 %v517, 0.0
    %v558 = vmax.f32 %v519, 0.0
    %v559 = vmax.f32 %v522, 0.0
    %v560 = vmax.f32 %v524, 0.0
    %v561 = vmax.f32 %v527, 0.0
    %v562 = vmax.f32 %v529, 0.0
    %v563 = vpack.c.bf16 %v532, %v531
    %v564 = vpack.c.bf16 %v534, %v533
    %v565 = vpack.c.bf16 %v536, %v535
    %v566 = vpack.c.bf16 %v538, %v537
    %v567 = vpack.c.bf16 %v540, %v539
    %v568 = vpack.c.bf16 %v542, %v541
    %v569 = vpack.c.bf16 %v544, %v543
    %v570 = vpack.c.bf16 %v546, %v545
    %v571 = vpack.c.bf16 %v548, %v547
    %v572 = vpack.c.bf16 %v550, %v549
    %v573 = vpack.c.bf16 %v552, %v551
    %v574 = vpack.c.bf16 %v554, %v553
    %v575 = vpack.c.bf16 %v556, %v555
    %v576 = vpack.c.bf16 %v558, %v557
    %v577 = vpack.c.bf16 %v560, %v559
    %v578 = vpack.c.bf16 %v562, %v561
    %v579 = vld [vmem:[%s3] sm:$0xf]
    %v580 = vld [vmem:[%s3 + $0x4] sm:$0xf]
    %v581 = vld [vmem:[%s3 + $0x8] sm:$0xf]
    %v582 = vld [vmem:[%s3 + $0xc] sm:$0xf]
    %v583 = vld [vmem:[%s3 + $0x10] sm:$0xf]
    %v584 = vld [vmem:[%s3 + $0x14] sm:$0xf]
    %v585 = vld [vmem:[%s3 + $0x18] sm:$0xf]
    %v586 = vld [vmem:[%s3 + $0x1c] sm:$0xf]
    %v587 = vld [vmem:[%s3 + $0x20] sm:$0xf]
    %v588 = vld [vmem:[%s3 + $0x24] sm:$0xf]
    %v589 = vld [vmem:[%s3 + $0x28] sm:$0xf]
    %v590 = vld [vmem:[%s3 + $0x2c] sm:$0xf]
    %v591 = vld [vmem:[%s3 + $0x30] sm:$0xf]
    %v592 = vld [vmem:[%s3 + $0x34] sm:$0xf]
    %v593 = vld [vmem:[%s3 + $0x38] sm:$0xf]
    %v594 = vld [vmem:[%s3 + $0x3c] sm:$0xf]
    %v595 = vld [vmem:[%s4] sm:$0x1]
    %v597 = vperm.slane %v595, 0
    %v615 = vunpack.c.l.b16 %v579
    %v616 = vunpack.c.l.b16 %v580
    %v617 = vunpack.c.l.b16 %v581
    %v618 = vunpack.c.l.b16 %v582
    %v619 = vunpack.c.l.b16 %v583
    %v620 = vunpack.c.l.b16 %v584
    %v621 = vunpack.c.l.b16 %v585
    %v622 = vunpack.c.l.b16 %v586
    %v623 = vunpack.c.l.b16 %v587
    %v624 = vunpack.c.l.b16 %v588
    %v625 = vunpack.c.l.b16 %v589
    %v626 = vunpack.c.l.b16 %v590
    %v627 = vunpack.c.l.b16 %v591
    %v628 = vunpack.c.l.b16 %v592
    %v629 = vunpack.c.l.b16 %v593
    %v630 = vunpack.c.l.b16 %v594
    %v631 = vpack.c.b16 %v616, %v615
    %v632 = vpack.c.b16 %v618, %v617
    %v633 = vpack.c.b16 %v620, %v619
    %v634 = vpack.c.b16 %v622, %v621
    %v635 = vpack.c.b16 %v624, %v623
    %v636 = vpack.c.b16 %v626, %v625
    %v637 = vpack.c.b16 %v628, %v627
    %v638 = vpack.c.b16 %v630, %v629
    %647 = vmatpush.bf16.msra.mxu0 %v638
    %648 = vmatpush.bf16.msra.mxu0 %v637
    %649 = vmatpush.bf16.msra.mxu0 %v636
    %650 = vmatpush.bf16.msra.mxu0 %v635
    %651 = vmatpush.bf16.msra.mxu0 %v634
    %652 = vmatpush.bf16.msra.mxu0 %v633
    %653 = vmatpush.bf16.msra.mxu0 %v632
    %654 = vmatpush.bf16.msra.mxu0 %v631
    %655 = vmatmul.bf16.gmra.mxu0 %v563
    %v656 = vpop.f32.mrf.mxu0
    %v657 = vadd.f32 %v597, %v656
    %v658 = vpop.f32.mrf.mxu0
    %v659 = vadd.f32 %v597, %v658
    %660 = vmatmul.bf16.gmra.mxu0 %v564
    %v661 = vpop.f32.mrf.mxu0
    %v662 = vadd.f32 %v597, %v661
    %v663 = vpop.f32.mrf.mxu0
    %v664 = vadd.f32 %v597, %v663
    %665 = vmatmul.bf16.gmra.mxu0 %v565
    %v666 = vpop.f32.mrf.mxu0
    %v667 = vadd.f32 %v597, %v666
    %v668 = vpop.f32.mrf.mxu0
    %v669 = vadd.f32 %v597, %v668
    %670 = vmatmul.bf16.gmra.mxu0 %v566
    %v671 = vpop.f32.mrf.mxu0
    %v672 = vadd.f32 %v597, %v671
    %v673 = vpop.f32.mrf.mxu0
    %v674 = vadd.f32 %v597, %v673
    %675 = vmatmul.bf16.gmra.mxu0 %v567
    %v676 = vpop.f32.mrf.mxu0
    %v677 = vadd.f32 %v597, %v676
    %v678 = vpop.f32.mrf.mxu0
    %v679 = vadd.f32 %v597, %v678
    %680 = vmatmul.bf16.gmra.mxu0 %v568
    %v681 = vpop.f32.mrf.mxu0
    %v682 = vadd.f32 %v597, %v681
    %v683 = vpop.f32.mrf.mxu0
    %v684 = vadd.f32 %v597, %v683
    %685 = vmatmul.bf16.gmra.mxu0 %v569
    %v686 = vpop.f32.mrf.mxu0
    %v687 = vadd.f32 %v597, %v686
    %v688 = vpop.f32.mrf.mxu0
    %v689 = vadd.f32 %v597, %v688
    %690 = vmatmul.bf16.gmra.mxu0 %v570
    %v691 = vpop.f32.mrf.mxu0
    %v692 = vadd.f32 %v597, %v691
    %v693 = vpop.f32.mrf.mxu0
    %v694 = vadd.f32 %v597, %v693
    %695 = vmatmul.bf16.gmra.mxu0 %v571
    %v696 = vpop.f32.mrf.mxu0
    %v697 = vadd.f32 %v597, %v696
    %v698 = vpop.f32.mrf.mxu0
    %v699 = vadd.f32 %v597, %v698
    %700 = vmatmul.bf16.gmra.mxu0 %v572
    %v701 = vpop.f32.mrf.mxu0
    %v702 = vadd.f32 %v597, %v701
    %v703 = vpop.f32.mrf.mxu0
    %v704 = vadd.f32 %v597, %v703
    %705 = vmatmul.bf16.gmra.mxu0 %v573
    %v706 = vpop.f32.mrf.mxu0
    %v707 = vadd.f32 %v597, %v706
    %v708 = vpop.f32.mrf.mxu0
    %v709 = vadd.f32 %v597, %v708
    %710 = vmatmul.bf16.gmra.mxu0 %v574
    %v711 = vpop.f32.mrf.mxu0
    %v712 = vadd.f32 %v597, %v711
    %v713 = vpop.f32.mrf.mxu0
    %v714 = vadd.f32 %v597, %v713
    %715 = vmatmul.bf16.gmra.mxu0 %v575
    %v716 = vpop.f32.mrf.mxu0
    %v717 = vadd.f32 %v597, %v716
    %v718 = vpop.f32.mrf.mxu0
    %v719 = vadd.f32 %v597, %v718
    %720 = vmatmul.bf16.gmra.mxu0 %v576
    %v721 = vpop.f32.mrf.mxu0
    %v722 = vadd.f32 %v597, %v721
    %v723 = vpop.f32.mrf.mxu0
    %v724 = vadd.f32 %v597, %v723
    %725 = vmatmul.bf16.gmra.mxu0 %v577
    %v726 = vpop.f32.mrf.mxu0
    %v727 = vadd.f32 %v597, %v726
    %v728 = vpop.f32.mrf.mxu0
    %v729 = vadd.f32 %v597, %v728
    %730 = vmatmul.bf16.gmra.mxu0 %v578
    %v731 = vpop.f32.mrf.mxu0
    %v732 = vadd.f32 %v597, %v731
    %v733 = vpop.f32.mrf.mxu0
    %v734 = vadd.f32 %v597, %v733
    %735 = vdwg.mxu0
    %v736 = vmax.f32 %v657, 0.0
    %v737 = vmax.f32 %v659, 0.0
    %v738 = vmax.f32 %v662, 0.0
    %v739 = vmax.f32 %v664, 0.0
    %v740 = vmax.f32 %v667, 0.0
    %v741 = vmax.f32 %v669, 0.0
    %v742 = vmax.f32 %v672, 0.0
    %v743 = vmax.f32 %v674, 0.0
    %v744 = vmax.f32 %v677, 0.0
    %v745 = vmax.f32 %v679, 0.0
    %v746 = vmax.f32 %v682, 0.0
    %v747 = vmax.f32 %v684, 0.0
    %v748 = vmax.f32 %v687, 0.0
    %v749 = vmax.f32 %v689, 0.0
    %v750 = vmax.f32 %v692, 0.0
    %v751 = vmax.f32 %v694, 0.0
    %v752 = vmax.f32 %v697, 0.0
    %v753 = vmax.f32 %v699, 0.0
    %v754 = vmax.f32 %v702, 0.0
    %v755 = vmax.f32 %v704, 0.0
    %v756 = vmax.f32 %v707, 0.0
    %v757 = vmax.f32 %v709, 0.0
    %v758 = vmax.f32 %v712, 0.0
    %v759 = vmax.f32 %v714, 0.0
    %v760 = vmax.f32 %v717, 0.0
    %v761 = vmax.f32 %v719, 0.0
    %v762 = vmax.f32 %v722, 0.0
    %v763 = vmax.f32 %v724, 0.0
    %v764 = vmax.f32 %v727, 0.0
    %v765 = vmax.f32 %v729, 0.0
    %v766 = vmax.f32 %v732, 0.0
    %v767 = vmax.f32 %v734, 0.0
    %768 = vst [vmem:[#allocation2] sm:$0xff] %v736
    %769 = vst [vmem:[#allocation2 + $0x8] sm:$0xff] %v737
    %770 = vst [vmem:[#allocation2 + $0x10] sm:$0xff] %v738
    %771 = vst [vmem:[#allocation2 + $0x18] sm:$0xff] %v739
    %772 = vst [vmem:[#allocation2 + $0x20] sm:$0xff] %v740
    %773 = vst [vmem:[#allocation2 + $0x28] sm:$0xff] %v741
    %774 = vst [vmem:[#allocation2 + $0x30] sm:$0xff] %v742
    %775 = vst [vmem:[#allocation2 + $0x38] sm:$0xff] %v743
    %776 = vst [vmem:[#allocation2 + $0x40] sm:$0xff] %v744
    %777 = vst [vmem:[#allocation2 + $0x48] sm:$0xff] %v745
    %778 = vst [vmem:[#allocation2 + $0x50] sm:$0xff] %v746
    %779 = vst [vmem:[#allocation2 + $0x58] sm:$0xff] %v747
    %780 = vst [vmem:[#allocation2 + $0x60] sm:$0xff] %v748
    %781 = vst [vmem:[#allocation2 + $0x68] sm:$0xff] %v749
    %782 = vst [vmem:[#allocation2 + $0x70] sm:$0xff] %v750
    %783 = vst [vmem:[#allocation2 + $0x78] sm:$0xff] %v751
    %784 = vst [vmem:[#allocation2 + $0x80] sm:$0xff] %v752
    %785 = vst [vmem:[#allocation2 + $0x88] sm:$0xff] %v753
    %786 = vst [vmem:[#allocation2 + $0x90] sm:$0xff] %v754
    %787 = vst [vmem:[#allocation2 + $0x98] sm:$0xff] %v755
    %788 = vst [vmem:[#allocation2 + $0xa0] sm:$0xff] %v756
    %789 = vst [vmem:[#allocation2 + $0xa8] sm:$0xff] %v757
    %790 = vst [vmem:[#allocation2 + $0xb0] sm:$0xff] %v758
    %791 = vst [vmem:[#allocation2 + $0xb8] sm:$0xff] %v759
    %792 = vst [vmem:[#allocation2 + $0xc0] sm:$0xff] %v760
    %793 = vst [vmem:[#allocation2 + $0xc8] sm:$0xff] %v761
    %794 = vst [vmem:[#allocation2 + $0xd0] sm:$0xff] %v762
    %795 = vst [vmem:[#allocation2 + $0xd8] sm:$0xff] %v763
    %796 = vst [vmem:[#allocation2 + $0xe0] sm:$0xff] %v764
    %797 = vst [vmem:[#allocation2 + $0xe8] sm:$0xff] %v765
    %798 = vst [vmem:[#allocation2 + $0xf0] sm:$0xff] %v766
    %799 = vst [vmem:[#allocation2 + $0xf8] sm:$0xff] %v767
    %v800 = vpack.c.bf16 %v737, %v736
    %v801 = vpack.c.bf16 %v739, %v738
    %v802 = vpack.c.bf16 %v741, %v740
    %v803 = vpack.c.bf16 %v743, %v742
    %v804 = vpack.c.bf16 %v745, %v744
    %v805 = vpack.c.bf16 %v747, %v746
    %v806 = vpack.c.bf16 %v749, %v748
    %v807 = vpack.c.bf16 %v751, %v750
    %v808 = vpack.c.bf16 %v753, %v752
    %v809 = vpack.c.bf16 %v755, %v754
    %v810 = vpack.c.bf16 %v757, %v756
    %v811 = vpack.c.bf16 %v759, %v758
    %v812 = vpack.c.bf16 %v761, %v760
    %v813 = vpack.c.bf16 %v763, %v762
    %v814 = vpack.c.bf16 %v765, %v764
    %v815 = vpack.c.bf16 %v767, %v766
    %v816 = vld [vmem:[%s5] sm:$0xff]
    %v817 = vld [vmem:[%s5 + $0x8] sm:$0xf]
    %v818 = vld [vmem:[%s5 + $0xc] sm:$0xff]
    %v819 = vld [vmem:[%s5 + $0x14] sm:$0xf]
    %v820 = vld [vmem:[%s5 + $0x18] sm:$0xff]
    %v821 = vld [vmem:[%s5 + $0x20] sm:$0xf]
    %v822 = vld [vmem:[%s5 + $0x24] sm:$0xff]
    %v823 = vld [vmem:[%s5 + $0x2c] sm:$0xf]
    %v824 = vld [vmem:[%s5 + $0x30] sm:$0xff]
    %v825 = vld [vmem:[%s5 + $0x38] sm:$0xf]
    %v826 = vld [vmem:[%s5 + $0x3c] sm:$0xff]
    %v827 = vld [vmem:[%s5 + $0x44] sm:$0xf]
    %v828 = vld [vmem:[%s5 + $0x48] sm:$0xff]
    %v829 = vld [vmem:[%s5 + $0x50] sm:$0xf]
    %v830 = vld [vmem:[%s5 + $0x54] sm:$0xff]
    %v831 = vld [vmem:[%s5 + $0x5c] sm:$0xf]
    %v832 = vld [vmem:[%s5 + $0x60] sm:$0xff]
    %v833 = vld [vmem:[%s5 + $0x68] sm:$0xf]
    %v834 = vld [vmem:[%s5 + $0x6c] sm:$0xff]
    %v835 = vld [vmem:[%s5 + $0x74] sm:$0xf]
    %v836 = vld [vmem:[%s5 + $0x78] sm:$0xff]
    %v837 = vld [vmem:[%s5 + $0x80] sm:$0xf]
    %v838 = vld [vmem:[%s5 + $0x84] sm:$0xff]
    %v839 = vld [vmem:[%s5 + $0x8c] sm:$0xf]
    %v840 = vld [vmem:[%s5 + $0x90] sm:$0xff]
    %v841 = vld [vmem:[%s5 + $0x98] sm:$0xf]
    %v842 = vld [vmem:[%s5 + $0x9c] sm:$0xff]
    %v843 = vld [vmem:[%s5 + $0xa4] sm:$0xf]
    %v844 = vld [vmem:[%s5 + $0xa8] sm:$0xff]
    %v845 = vld [vmem:[%s5 + $0xb0] sm:$0xf]
    %v846 = vld [vmem:[%s5 + $0xb4] sm:$0xff]
    %v847 = vld [vmem:[%s5 + $0xbc] sm:$0xf]
    %v848 = vld [vmem:[%s6] sm:$0x7]
    %v850 = vperm.slane %v848, 0
    %v851 = vperm.slane %v848, 1
    %v852 = vperm.slane %v848, 2
    %v888 = vunpack.c.l.b16 %v816
    %v889 = vunpack.c.h.b16 %v816
    %v890 = vunpack.c.l.b16 %v817
    %v891 = vunpack.c.l.b16 %v818
    %v892 = vunpack.c.h.b16 %v818
    %v893 = vunpack.c.l.b16 %v819
    %v894 = vunpack.c.l.b16 %v820
    %v895 = vunpack.c.h.b16 %v820
    %v896 = vunpack.c.l.b16 %v821
    %v897 = vunpack.c.l.b16 %v822
    %v898 = vunpack.c.h.b16 %v822
    %v899 = vunpack.c.l.b16 %v823
    %v900 = vunpack.c.l.b16 %v824
    %v901 = vunpack.c.h.b16 %v824
    %v902 = vunpack.c.l.b16 %v825
    %v903 = vunpack.c.l.b16 %v826
    %v904 = vunpack.c.h.b16 %v826
    %v905 = vunpack.c.l.b16 %v827
    %v906 = vunpack.c.l.b16 %v828
    %v907 = vunpack.c.h.b16 %v828
    %v908 = vunpack.c.l.b16 %v829
    %v909 = vunpack.c.l.b16 %v830
    %v910 = vunpack.c.h.b16 %v830
    %v911 = vunpack.c.l.b16 %v831
    %v912 = vunpack.c.l.b16 %v832
    %v913 = vunpack.c.h.b16 %v832
    %v914 = vunpack.c.l.b16 %v833
    %v915 = vunpack.c.l.b16 %v834
    %v916 = vunpack.c.h.b16 %v834
    %v917 = vunpack.c.l.b16 %v835
    %v918 = vunpack.c.l.b16 %v836
    %v919 = vunpack.c.h.b16 %v836
    %v920 = vunpack.c.l.b16 %v837
    %v921 = vunpack.c.l.b16 %v838
    %v922 = vunpack.c.h.b16 %v838
    %v923 = vunpack.c.l.b16 %v839
    %v924 = vunpack.c.l.b16 %v840
    %v925 = vunpack.c.h.b16 %v840
    %v926 = vunpack.c.l.b16 %v841
    %v927 = vunpack.c.l.b16 %v842
    %v928 = vunpack.c.h.b16 %v842
    %v929 = vunpack.c.l.b16 %v843
    %v930 = vunpack.c.l.b16 %v844
    %v931 = vunpack.c.h.b16 %v844
    %v932 = vunpack.c.l.b16 %v845
    %v933 = vunpack.c.l.b16 %v846
    %v934 = vunpack.c.h.b16 %v846
    %v935 = vunpack.c.l.b16 %v847
    %v936 = vpack.c.b16 %v891, %v888
    %v937 = vpack.c.b16 %v892, %v889
    %v938 = vpack.c.b16 %v893, %v890
    %v939 = vpack.c.b16 %v897, %v894
    %v940 = vpack.c.b16 %v898, %v895
    %v941 = vpack.c.b16 %v899, %v896
    %v942 = vpack.c.b16 %v903, %v900
    %v943 = vpack.c.b16 %v904, %v901
    %v944 = vpack.c.b16 %v905, %v902
    %v945 = vpack.c.b16 %v909, %v906
    %v946 = vpack.c.b16 %v910, %v907
    %v947 = vpack.c.b16 %v911, %v908
    %v948 = vpack.c.b16 %v915, %v912
    %v949 = vpack.c.b16 %v916, %v913
    %v950 = vpack.c.b16 %v917, %v914
    %v951 = vpack.c.b16 %v921, %v918
    %v952 = vpack.c.b16 %v922, %v919
    %v953 = vpack.c.b16 %v923, %v920
    %v954 = vpack.c.b16 %v927, %v924
    %v955 = vpack.c.b16 %v928, %v925
    %v956 = vpack.c.b16 %v929, %v926
    %v957 = vpack.c.b16 %v933, %v930
    %v958 = vpack.c.b16 %v934, %v931
    %v959 = vpack.c.b16 %v935, %v932
    %984 = vmatpush.bf16.msra.mxu0 %v957
    %985 = vmatpush.bf16.msra.mxu0 %v954
    %986 = vmatpush.bf16.msra.mxu0 %v951
    %987 = vmatpush.bf16.msra.mxu0 %v948
    %988 = vmatpush.bf16.msra.mxu0 %v945
    %989 = vmatpush.bf16.msra.mxu0 %v942
    %990 = vmatpush.bf16.msra.mxu0 %v939
    %991 = vmatpush.bf16.msra.mxu0 %v936
    %992 = vmatmul.bf16.gmra.mxu0 %v800
    %v993 = vpop.f32.mrf.mxu0
    %v994 = vadd.f32 %v850, %v993
    %v995 = vpop.f32.mrf.mxu0
    %v996 = vadd.f32 %v850, %v995
    %997 = vmatmul.bf16.gmra.mxu0 %v801
    %v998 = vpop.f32.mrf.mxu0
    %v999 = vadd.f32 %v850, %v998
    %v1000 = vpop.f32.mrf.mxu0
    %v1001 = vadd.f32 %v850, %v1000
    %1002 = vmatmul.bf16.gmra.mxu0 %v802
    %v1003 = vpop.f32.mrf.mxu0
    %v1004 = vadd.f32 %v850, %v1003
    %v1005 = vpop.f32.mrf.mxu0
    %v1006 = vadd.f32 %v850, %v1005
    %1007 = vmatmul.bf16.gmra.mxu0 %v803
    %v1008 = vpop.f32.mrf.mxu0
    %v1009 = vadd.f32 %v850, %v1008
    %v1010 = vpop.f32.mrf.mxu0
    %v1011 = vadd.f32 %v850, %v1010
    %1012 = vmatmul.bf16.gmra.mxu0 %v804
    %v1013 = vpop.f32.mrf.mxu0
    %v1014 = vadd.f32 %v850, %v1013
    %v1015 = vpop.f32.mrf.mxu0
    %v1016 = vadd.f32 %v850, %v1015
    %1017 = vmatmul.bf16.gmra.mxu0 %v805
    %v1018 = vpop.f32.mrf.mxu0
    %v1019 = vadd.f32 %v850, %v1018
    %v1020 = vpop.f32.mrf.mxu0
    %v1021 = vadd.f32 %v850, %v1020
    %1022 = vmatmul.bf16.gmra.mxu0 %v806
    %v1023 = vpop.f32.mrf.mxu0
    %v1024 = vadd.f32 %v850, %v1023
    %v1025 = vpop.f32.mrf.mxu0
    %v1026 = vadd.f32 %v850, %v1025
    %1027 = vmatmul.bf16.gmra.mxu0 %v807
    %v1028 = vpop.f32.mrf.mxu0
    %v1029 = vadd.f32 %v850, %v1028
    %v1030 = vpop.f32.mrf.mxu0
    %v1031 = vadd.f32 %v850, %v1030
    %1032 = vmatmul.bf16.gmra.mxu0 %v808
    %v1033 = vpop.f32.mrf.mxu0
    %v1034 = vadd.f32 %v850, %v1033
    %v1035 = vpop.f32.mrf.mxu0
    %v1036 = vadd.f32 %v850, %v1035
    %1037 = vmatmul.bf16.gmra.mxu0 %v809
    %v1038 = vpop.f32.mrf.mxu0
    %v1039 = vadd.f32 %v850, %v1038
    %v1040 = vpop.f32.mrf.mxu0
    %v1041 = vadd.f32 %v850, %v1040
    %1042 = vmatmul.bf16.gmra.mxu0 %v810
    %v1043 = vpop.f32.mrf.mxu0
    %v1044 = vadd.f32 %v850, %v1043
    %v1045 = vpop.f32.mrf.mxu0
    %v1046 = vadd.f32 %v850, %v1045
    %1047 = vmatmul.bf16.gmra.mxu0 %v811
    %v1048 = vpop.f32.mrf.mxu0
    %v1049 = vadd.f32 %v850, %v1048
    %v1050 = vpop.f32.mrf.mxu0
    %v1051 = vadd.f32 %v850, %v1050
    %1052 = vmatmul.bf16.gmra.mxu0 %v812
    %v1053 = vpop.f32.mrf.mxu0
    %v1054 = vadd.f32 %v850, %v1053
    %v1055 = vpop.f32.mrf.mxu0
    %v1056 = vadd.f32 %v850, %v1055
    %1057 = vmatmul.bf16.gmra.mxu0 %v813
    %v1058 = vpop.f32.mrf.mxu0
    %v1059 = vadd.f32 %v850, %v1058
    %v1060 = vpop.f32.mrf.mxu0
    %v1061 = vadd.f32 %v850, %v1060
    %1062 = vmatmul.bf16.gmra.mxu0 %v814
    %v1063 = vpop.f32.mrf.mxu0
    %v1064 = vadd.f32 %v850, %v1063
    %v1065 = vpop.f32.mrf.mxu0
    %v1066 = vadd.f32 %v850, %v1065
    %1067 = vmatmul.bf16.gmra.mxu0 %v815
    %v1068 = vpop.f32.mrf.mxu0
    %v1069 = vadd.f32 %v850, %v1068
    %v1070 = vpop.f32.mrf.mxu0
    %v1071 = vadd.f32 %v850, %v1070
    %1072 = vdwg.mxu0
    %1073 = vmatpush.bf16.msra.mxu0 %v958
    %1074 = vmatpush.bf16.msra.mxu0 %v955
    %1075 = vmatpush.bf16.msra.mxu0 %v952
    %1076 = vmatpush.bf16.msra.mxu0 %v949
    %1077 = vmatpush.bf16.msra.mxu0 %v946
    %1078 = vmatpush.bf16.msra.mxu0 %v943
    %1079 = vmatpush.bf16.msra.mxu0 %v940
    %1080 = vmatpush.bf16.msra.mxu0 %v937
    %1081 = vmatmul.bf16.gmra.mxu0 %v800
    %v1082 = vpop.f32.mrf.mxu0
    %v1083 = vadd.f32 %v851, %v1082
    %v1084 = vpop.f32.mrf.mxu0
    %v1085 = vadd.f32 %v851, %v1084
    %1086 = vmatmul.bf16.gmra.mxu0 %v801
    %v1087 = vpop.f32.mrf.mxu0
    %v1088 = vadd.f32 %v851, %v1087
    %v1089 = vpop.f32.mrf.mxu0
    %v1090 = vadd.f32 %v851, %v1089
    %1091 = vmatmul.bf16.gmra.mxu0 %v802
    %v1092 = vpop.f32.mrf.mxu0
    %v1093 = vadd.f32 %v851, %v1092
    %v1094 = vpop.f32.mrf.mxu0
    %v1095 = vadd.f32 %v851, %v1094
    %1096 = vmatmul.bf16.gmra.mxu0 %v803
    %v1097 = vpop.f32.mrf.mxu0
    %v1098 = vadd.f32 %v851, %v1097
    %v1099 = vpop.f32.mrf.mxu0
    %v1100 = vadd.f32 %v851, %v1099
    %1101 = vmatmul.bf16.gmra.mxu0 %v804
    %v1102 = vpop.f32.mrf.mxu0
    %v1103 = vadd.f32 %v851, %v1102
    %v1104 = vpop.f32.mrf.mxu0
    %v1105 = vadd.f32 %v851, %v1104
    %1106 = vmatmul.bf16.gmra.mxu0 %v805
    %v1107 = vpop.f32.mrf.mxu0
    %v1108 = vadd.f32 %v851, %v1107
    %v1109 = vpop.f32.mrf.mxu0
    %v1110 = vadd.f32 %v851, %v1109
    %1111 = vmatmul.bf16.gmra.mxu0 %v806
    %v1112 = vpop.f32.mrf.mxu0
    %v1113 = vadd.f32 %v851, %v1112
    %v1114 = vpop.f32.mrf.mxu0
    %v1115 = vadd.f32 %v851, %v1114
    %1116 = vmatmul.bf16.gmra.mxu0 %v807
    %v1117 = vpop.f32.mrf.mxu0
    %v1118 = vadd.f32 %v851, %v1117
    %v1119 = vpop.f32.mrf.mxu0
    %v1120 = vadd.f32 %v851, %v1119
    %1121 = vmatmul.bf16.gmra.mxu0 %v808
    %v1122 = vpop.f32.mrf.mxu0
    %v1123 = vadd.f32 %v851, %v1122
    %v1124 = vpop.f32.mrf.mxu0
    %v1125 = vadd.f32 %v851, %v1124
    %1126 = vmatmul.bf16.gmra.mxu0 %v809
    %v1127 = vpop.f32.mrf.mxu0
    %v1128 = vadd.f32 %v851, %v1127
    %v1129 = vpop.f32.mrf.mxu0
    %v1130 = vadd.f32 %v851, %v1129
    %1131 = vmatmul.bf16.gmra.mxu0 %v810
    %v1132 = vpop.f32.mrf.mxu0
    %v1133 = vadd.f32 %v851, %v1132
    %v1134 = vpop.f32.mrf.mxu0
    %v1135 = vadd.f32 %v851, %v1134
    %1136 = vmatmul.bf16.gmra.mxu0 %v811
    %v1137 = vpop.f32.mrf.mxu0
    %v1138 = vadd.f32 %v851, %v1137
    %v1139 = vpop.f32.mrf.mxu0
    %v1140 = vadd.f32 %v851, %v1139
    %1141 = vmatmul.bf16.gmra.mxu0 %v812
    %v1142 = vpop.f32.mrf.mxu0
    %v1143 = vadd.f32 %v851, %v1142
    %v1144 = vpop.f32.mrf.mxu0
    %v1145 = vadd.f32 %v851, %v1144
    %1146 = vmatmul.bf16.gmra.mxu0 %v813
    %v1147 = vpop.f32.mrf.mxu0
    %v1148 = vadd.f32 %v851, %v1147
    %v1149 = vpop.f32.mrf.mxu0
    %v1150 = vadd.f32 %v851, %v1149
    %1151 = vmatmul.bf16.gmra.mxu0 %v814
    %v1152 = vpop.f32.mrf.mxu0
    %v1153 = vadd.f32 %v851, %v1152
    %v1154 = vpop.f32.mrf.mxu0
    %v1155 = vadd.f32 %v851, %v1154
    %1156 = vmatmul.bf16.gmra.mxu0 %v815
    %v1157 = vpop.f32.mrf.mxu0
    %v1158 = vadd.f32 %v851, %v1157
    %v1159 = vpop.f32.mrf.mxu0
    %v1160 = vadd.f32 %v851, %v1159
    %1161 = vdwg.mxu0
    %1162 = vmatpush.bf16.msra.mxu0 %v959
    %1163 = vmatpush.bf16.msra.mxu0 %v956
    %1164 = vmatpush.bf16.msra.mxu0 %v953
    %1165 = vmatpush.bf16.msra.mxu0 %v950
    %1166 = vmatpush.bf16.msra.mxu0 %v947
    %1167 = vmatpush.bf16.msra.mxu0 %v944
    %1168 = vmatpush.bf16.msra.mxu0 %v941
    %1169 = vmatpush.bf16.msra.mxu0 %v938
    %1170 = vmatmul.bf16.gmra.mxu0 %v800
    %v1171 = vpop.f32.mrf.mxu0
    %v1172 = vadd.f32 %v852, %v1171
    %v1173 = vpop.f32.mrf.mxu0
    %v1174 = vadd.f32 %v852, %v1173
    %1175 = vmatmul.bf16.gmra.mxu0 %v801
    %v1176 = vpop.f32.mrf.mxu0
    %v1177 = vadd.f32 %v852, %v1176
    %v1178 = vpop.f32.mrf.mxu0
    %v1179 = vadd.f32 %v852, %v1178
    %1180 = vmatmul.bf16.gmra.mxu0 %v802
    %v1181 = vpop.f32.mrf.mxu0
    %v1182 = vadd.f32 %v852, %v1181
    %v1183 = vpop.f32.mrf.mxu0
    %v1184 = vadd.f32 %v852, %v1183
    %1185 = vmatmul.bf16.gmra.mxu0 %v803
    %v1186 = vpop.f32.mrf.mxu0
    %v1187 = vadd.f32 %v852, %v1186
    %v1188 = vpop.f32.mrf.mxu0
    %v1189 = vadd.f32 %v852, %v1188
    %1190 = vmatmul.bf16.gmra.mxu0 %v804
    %v1191 = vpop.f32.mrf.mxu0
    %v1192 = vadd.f32 %v852, %v1191
    %v1193 = vpop.f32.mrf.mxu0
    %v1194 = vadd.f32 %v852, %v1193
    %1195 = vmatmul.bf16.gmra.mxu0 %v805
    %v1196 = vpop.f32.mrf.mxu0
    %v1197 = vadd.f32 %v852, %v1196
    %v1198 = vpop.f32.mrf.mxu0
    %v1199 = vadd.f32 %v852, %v1198
    %1200 = vmatmul.bf16.gmra.mxu0 %v806
    %v1201 = vpop.f32.mrf.mxu0
    %v1202 = vadd.f32 %v852, %v1201
    %v1203 = vpop.f32.mrf.mxu0
    %v1204 = vadd.f32 %v852, %v1203
    %1205 = vmatmul.bf16.gmra.mxu0 %v807
    %v1206 = vpop.f32.mrf.mxu0
    %v1207 = vadd.f32 %v852, %v1206
    %v1208 = vpop.f32.mrf.mxu0
    %v1209 = vadd.f32 %v852, %v1208
    %1210 = vmatmul.bf16.gmra.mxu0 %v808
    %v1211 = vpop.f32.mrf.mxu0
    %v1212 = vadd.f32 %v852, %v1211
    %v1213 = vpop.f32.mrf.mxu0
    %v1214 = vadd.f32 %v852, %v1213
    %1215 = vmatmul.bf16.gmra.mxu0 %v809
    %v1216 = vpop.f32.mrf.mxu0
    %v1217 = vadd.f32 %v852, %v1216
    %v1218 = vpop.f32.mrf.mxu0
    %v1219 = vadd.f32 %v852, %v1218
    %1220 = vmatmul.bf16.gmra.mxu0 %v810
    %v1221 = vpop.f32.mrf.mxu0
    %v1222 = vadd.f32 %v852, %v1221
    %v1223 = vpop.f32.mrf.mxu0
    %v1224 = vadd.f32 %v852, %v1223
    %1225 = vmatmul.bf16.gmra.mxu0 %v811
    %v1226 = vpop.f32.mrf.mxu0
    %v1227 = vadd.f32 %v852, %v1226
    %v1228 = vpop.f32.mrf.mxu0
    %v1229 = vadd.f32 %v852, %v1228
    %1230 = vmatmul.bf16.gmra.mxu0 %v812
    %v1231 = vpop.f32.mrf.mxu0
    %v1232 = vadd.f32 %v852, %v1231
    %v1233 = vpop.f32.mrf.mxu0
    %v1234 = vadd.f32 %v852, %v1233
    %1235 = vmatmul.bf16.gmra.mxu0 %v813
    %v1236 = vpop.f32.mrf.mxu0
    %v1237 = vadd.f32 %v852, %v1236
    %v1238 = vpop.f32.mrf.mxu0
    %v1239 = vadd.f32 %v852, %v1238
    %1240 = vmatmul.bf16.gmra.mxu0 %v814
    %v1241 = vpop.f32.mrf.mxu0
    %v1242 = vadd.f32 %v852, %v1241
    %v1243 = vpop.f32.mrf.mxu0
    %v1244 = vadd.f32 %v852, %v1243
    %1245 = vmatmul.bf16.gmra.mxu0 %v815
    %v1246 = vpop.f32.mrf.mxu0
    %v1247 = vadd.f32 %v852, %v1246
    %v1248 = vpop.f32.mrf.mxu0
    %v1249 = vadd.f32 %v852, %v1248
    %1250 = vdwg.mxu0
    %v1251 = vpack.c.bf16 %v1083, %v994
    %v1252 = vpack.c.bf16 %v1172, %v1172
    %v1253 = vpack.c.bf16 %v1085, %v996
    %v1254 = vpack.c.bf16 %v1174, %v1174
    %v1255 = vpack.c.bf16 %v1088, %v999
    %v1256 = vpack.c.bf16 %v1177, %v1177
    %v1257 = vpack.c.bf16 %v1090, %v1001
    %v1258 = vpack.c.bf16 %v1179, %v1179
    %v1259 = vpack.c.bf16 %v1093, %v1004
    %v1260 = vpack.c.bf16 %v1182, %v1182
    %v1261 = vpack.c.bf16 %v1095, %v1006
    %v1262 = vpack.c.bf16 %v1184, %v1184
    %v1263 = vpack.c.bf16 %v1098, %v1009
    %v1264 = vpack.c.bf16 %v1187, %v1187
    %v1265 = vpack.c.bf16 %v1100, %v1011
    %v1266 = vpack.c.bf16 %v1189, %v1189
    %v1267 = vpack.c.bf16 %v1103, %v1014
    %v1268 = vpack.c.bf16 %v1192, %v1192
    %v1269 = vpack.c.bf16 %v1105, %v1016
    %v1270 = vpack.c.bf16 %v1194, %v1194
    %v1271 = vpack.c.bf16 %v1108, %v1019
    %v1272 = vpack.c.bf16 %v1197, %v1197
    %v1273 = vpack.c.bf16 %v1110, %v1021
    %v1274 = vpack.c.bf16 %v1199, %v1199
    %v1275 = vpack.c.bf16 %v1113, %v1024
    %v1276 = vpack.c.bf16 %v1202, %v1202
    %v1277 = vpack.c.bf16 %v1115, %v1026
    %v1278 = vpack.c.bf16 %v1204, %v1204
    %v1279 = vpack.c.bf16 %v1118, %v1029
    %v1280 = vpack.c.bf16 %v1207, %v1207
    %v1281 = vpack.c.bf16 %v1120, %v1031
    %v1282 = vpack.c.bf16 %v1209, %v1209
    %v1283 = vpack.c.bf16 %v1123, %v1034
    %v1284 = vpack.c.bf16 %v1212, %v1212
    %v1285 = vpack.c.bf16 %v1125, %v1036
    %v1286 = vpack.c.bf16 %v1214, %v1214
    %v1287 = vpack.c.bf16 %v1128, %v1039
    %v1288 = vpack.c.bf16 %v1217, %v1217
    %v1289 = vpack.c.bf16 %v1130, %v1041
    %v1290 = vpack.c.bf16 %v1219, %v1219
    %v1291 = vpack.c.bf16 %v1133, %v1044
    %v1292 = vpack.c.bf16 %v1222, %v1222
    %v1293 = vpack.c.bf16 %v1135, %v1046
    %v1294 = vpack.c.bf16 %v1224, %v1224
    %v1295 = vpack.c.bf16 %v1138, %v1049
    %v1296 = vpack.c.bf16 %v1227, %v1227
    %v1297 = vpack.c.bf16 %v1140, %v1051
    %v1298 = vpack.c.bf16 %v1229, %v1229
    %v1299 = vpack.c.bf16 %v1143, %v1054
    %v1300 = vpack.c.bf16 %v1232, %v1232
    %v1301 = vpack.c.bf16 %v1145, %v1056
    %v1302 = vpack.c.bf16 %v1234, %v1234
    %v1303 = vpack.c.bf16 %v1148, %v1059
    %v1304 = vpack.c.bf16 %v1237, %v1237
    %v1305 = vpack.c.bf16 %v1150, %v1061
    %v1306 = vpack.c.bf16 %v1239, %v1239
    %v1307 = vpack.c.bf16 %v1153, %v1064
    %v1308 = vpack.c.bf16 %v1242, %v1242
    %v1309 = vpack.c.bf16 %v1155, %v1066
    %v1310 = vpack.c.bf16 %v1244, %v1244
    %v1311 = vpack.c.bf16 %v1158, %v1069
    %v1312 = vpack.c.bf16 %v1247, %v1247
    %v1313 = vpack.c.bf16 %v1160, %v1071
    %v1314 = vpack.c.bf16 %v1249, %v1249
    %1315 = vst [vmem:[#allocation4] sm:$0xff] %v1251
    %1316 = vst [vmem:[#allocation4 + $0x8] sm:$0xf] %v1252
    %1317 = vst [vmem:[#allocation4 + $0xc] sm:$0xff] %v1253
    %1318 = vst [vmem:[#allocation4 + $0x14] sm:$0xf] %v1254
    %1319 = vst [vmem:[#allocation4 + $0x18] sm:$0xff] %v1255
    %1320 = vst [vmem:[#allocation4 + $0x20] sm:$0xf] %v1256
    %1321 = vst [vmem:[#allocation4 + $0x24] sm:$0xff] %v1257
    %1322 = vst [vmem:[#allocation4 + $0x2c] sm:$0xf] %v1258
    %1323 = vst [vmem:[#allocation4 + $0x30] sm:$0xff] %v1259
    %1324 = vst [vmem:[#allocation4 + $0x38] sm:$0xf] %v1260
    %1325 = vst [vmem:[#allocation4 + $0x3c] sm:$0xff] %v1261
    %1326 = vst [vmem:[#allocation4 + $0x44] sm:$0xf] %v1262
    %1327 = vst [vmem:[#allocation4 + $0x48] sm:$0xff] %v1263
    %1328 = vst [vmem:[#allocation4 + $0x50] sm:$0xf] %v1264
    %1329 = vst [vmem:[#allocation4 + $0x54] sm:$0xff] %v1265
    %1330 = vst [vmem:[#allocation4 + $0x5c] sm:$0xf] %v1266
    %1331 = vst [vmem:[#allocation4 + $0x60] sm:$0xff] %v1267
    %1332 = vst [vmem:[#allocation4 + $0x68] sm:$0xf] %v1268
    %1333 = vst [vmem:[#allocation4 + $0x6c] sm:$0xff] %v1269
    %1334 = vst [vmem:[#allocation4 + $0x74] sm:$0xf] %v1270
    %1335 = vst [vmem:[#allocation4 + $0x78] sm:$0xff] %v1271
    %1336 = vst [vmem:[#allocation4 + $0x80] sm:$0xf] %v1272
    %1337 = vst [vmem:[#allocation4 + $0x84] sm:$0xff] %v1273
    %1338 = vst [vmem:[#allocation4 + $0x8c] sm:$0xf] %v1274
    %1339 = vst [vmem:[#allocation4 + $0x90] sm:$0xff] %v1275
    %1340 = vst [vmem:[#allocation4 + $0x98] sm:$0xf] %v1276
    %1341 = vst [vmem:[#allocation4 + $0x9c] sm:$0xff] %v1277
    %1342 = vst [vmem:[#allocation4 + $0xa4] sm:$0xf] %v1278
    %1343 = vst [vmem:[#allocation4 + $0xa8] sm:$0xff] %v1279
    %1344 = vst [vmem:[#allocation4 + $0xb0] sm:$0xf] %v1280
    %1345 = vst [vmem:[#allocation4 + $0xb4] sm:$0xff] %v1281
    %1346 = vst [vmem:[#allocation4 + $0xbc] sm:$0xf] %v1282
    %1347 = vst [vmem:[#allocation4 + $0xc0] sm:$0xff] %v1283
    %1348 = vst [vmem:[#allocation4 + $0xc8] sm:$0xf] %v1284
    %1349 = vst [vmem:[#allocation4 + $0xcc] sm:$0xff] %v1285
    %1350 = vst [vmem:[#allocation4 + $0xd4] sm:$0xf] %v1286
    %1351 = vst [vmem:[#allocation4 + $0xd8] sm:$0xff] %v1287
    %1352 = vst [vmem:[#allocation4 + $0xe0] sm:$0xf] %v1288
    %1353 = vst [vmem:[#allocation4 + $0xe4] sm:$0xff] %v1289
    %1354 = vst [vmem:[#allocation4 + $0xec] sm:$0xf] %v1290
    %1355 = vst [vmem:[#allocation4 + $0xf0] sm:$0xff] %v1291
    %1356 = vst [vmem:[#allocation4 + $0xf8] sm:$0xf] %v1292
    %1357 = vst [vmem:[#allocation4 + $0xfc] sm:$0xff] %v1293
    %1358 = vst [vmem:[#allocation4 + $0x104] sm:$0xf] %v1294
    %1359 = vst [vmem:[#allocation4 + $0x108] sm:$0xff] %v1295
    %1360 = vst [vmem:[#allocation4 + $0x110] sm:$0xf] %v1296
    %1361 = vst [vmem:[#allocation4 + $0x114] sm:$0xff] %v1297
    %1362 = vst [vmem:[#allocation4 + $0x11c] sm:$0xf] %v1298
    %1363 = vst [vmem:[#allocation4 + $0x120] sm:$0xff] %v1299
    %1364 = vst [vmem:[#allocation4 + $0x128] sm:$0xf] %v1300
    %1365 = vst [vmem:[#allocation4 + $0x12c] sm:$0xff] %v1301
    %1366 = vst [vmem:[#allocation4 + $0x134] sm:$0xf] %v1302
    %1367 = vst [vmem:[#allocation4 + $0x138] sm:$0xff] %v1303
    %1368 = vst [vmem:[#allocation4 + $0x140] sm:$0xf] %v1304
    %1369 = vst [vmem:[#allocation4 + $0x144] sm:$0xff] %v1305
    %1370 = vst [vmem:[#allocation4 + $0x14c] sm:$0xf] %v1306
    %1371 = vst [vmem:[#allocation4 + $0x150] sm:$0xff] %v1307
    %1372 = vst [vmem:[#allocation4 + $0x158] sm:$0xf] %v1308
    %1373 = vst [vmem:[#allocation4 + $0x15c] sm:$0xff] %v1309
    %1374 = vst [vmem:[#allocation4 + $0x164] sm:$0xf] %v1310
    %1375 = vst [vmem:[#allocation4 + $0x168] sm:$0xff] %v1311
    %1376 = vst [vmem:[#allocation4 + $0x170] sm:$0xf] %v1312
    %1377 = vst [vmem:[#allocation4 + $0x174] sm:$0xff] %v1313
    %1378 = vst [vmem:[#allocation4 + $0x17c] sm:$0xf] %v1314
    // Predicated region
    $region30: #{roi_relation_head_forward.2} parent=1 // pred_check
      _
    $region31: #{roi_relation_head_forward.2} parent=1 // pred_check_branch
      %1380 = sbr.rel (0) target = $region33
    $region32: #{roi_relation_head_forward.2} parent=1 // pred_region
      %1382 = vsyncadd [#allocation3], 3968
      %s1383 = sshll.u32 [#allocation2], 4
      %s1384 = int_to_ptr.vmem [resolvable:$true] %s1383
      %s1385 = sshll.u32 %s7, 4
      %s1386 = int_to_ptr.hbm [resolvable:$true] %s1385
      %1391 = dma.vmem_to_hbm [thread:$0]  %s1384, 128, %s1386, [#allocation3], 128, 128, 8
    $region33: #{roi_relation_head_forward.2} parent=1 // pred_fallthru
      _
    // Predicated region
    $region34: #{roi_relation_head_forward.2} parent=1 // pred_check
      _
    $region35: #{roi_relation_head_forward.2} parent=1 // pred_check_branch
      %1393 = sbr.rel (0) target = $region37
    $region36: #{roi_relation_head_forward.2} parent=1 // pred_region
      // Predicated region
      $region38: #{roi_relation_head_forward.2} parent=36 // pred_check
        _
      $region39: #{roi_relation_head_forward.2} parent=36 // pred_check_branch
        %1395 = sbr.rel (0) target = $region41
      $region40: #{roi_relation_head_forward.2} parent=36 // pred_region
        // Predicated region
        $region42: #{roi_relation_head_forward.2} parent=40 // pred_check
          _
        $region43: #{roi_relation_head_forward.2} parent=40 // pred_check_branch
          %1397 = sbr.rel (0) target = $region45
        $region44: #{roi_relation_head_forward.2} parent=40 // pred_region
          %s1398 = scalar_lea.vmem [#allocation4], 8
          %s1399 = scalar_lea.vmem %s8, 8
          loop: start=0, step=1, limit=1
          $region46: #{roi_relation_head_forward.2} parent=44 // loop_pre_header
            _
          $region47: #{roi_relation_head_forward.2} parent=44 // loop_header
            %s1401 = sphi 0, %s1405
            %p1402 = scmp.ge.s32.totalorder %s1401, 1
            %s1406 = sphi [#allocation4], [#allocation4]
            %s1407 = sphi %s8, %s8
          $region48: #{roi_relation_head_forward.2} parent=44 // loop_header_branch
            %1404 = sbr.rel (%p1402) target = $region52
          $region49: #{roi_relation_head_forward.2} parent=44 // loop_body
            %v1408 = vld [vmem:[%s1406] sm:$0xff]
            %1409 = vst [vmem:[%s1407] sm:$0xff] %v1408
          $region50: #{roi_relation_head_forward.2} parent=44 // loop_footer
            %s1405 = sadd.s32 1, %s1401
          $region51: #{roi_relation_head_forward.2} parent=44 // loop_footer_branch
            %1400 = sbr.rel target = $region47
          $region52: #{roi_relation_head_forward.2} parent=44 // loop_exit
            _
          %s1411 = ssub.s32 16, 1
          loop: start=0, step=1, limit=1
          $region53: #{roi_relation_head_forward.2} parent=44 // loop_pre_header
            _
          $region54: #{roi_relation_head_forward.2} parent=44 // loop_header
            %s1413 = sphi 0, %s1417
            %p1414 = scmp.ge.s32.totalorder %s1413, 1
            %s1418 = sphi %s1398, %s1398
            %s1419 = sphi %s1399, %s1399
          $region55: #{roi_relation_head_forward.2} parent=44 // loop_header_branch
            %1416 = sbr.rel (%p1414) target = $region59
          $region56: #{roi_relation_head_forward.2} parent=44 // loop_body
            %v1420 = vld [vmem:[%s1418] sm:%s1411]
            %1421 = vst [vmem:[%s1419] sm:%s1411] %v1420
          $region57: #{roi_relation_head_forward.2} parent=44 // loop_footer
            %s1417 = sadd.s32 1, %s1413
          $region58: #{roi_relation_head_forward.2} parent=44 // loop_footer_branch
            %1412 = sbr.rel target = $region54
          $region59: #{roi_relation_head_forward.2} parent=44 // loop_exit
            _
        $region45: #{roi_relation_head_forward.2} parent=40 // pred_fallthru
          _
      $region41: #{roi_relation_head_forward.2} parent=36 // pred_fallthru
        _
      %1422 = vnop
    $region37: #{roi_relation_head_forward.2} parent=1 // pred_fallthru
      _
    // Predicated region
    $region60: #{roi_relation_head_forward.2} parent=1 // pred_check
      _
    $region61: #{roi_relation_head_forward.2} parent=1 // pred_check_branch
      %1424 = sbr.rel (0) target = $region63
    $region62: #{roi_relation_head_forward.2} parent=1 // pred_region
      %1426 = dma.done [#allocation3], 4096
    $region63: #{roi_relation_head_forward.2} parent=1 // pred_fallthru
      _
    // Predicated region
    $region64: #{roi_relation_head_forward.2} parent=1 // pred_check
      _
    $region65: #{roi_relation_head_forward.2} parent=1 // pred_check_branch
      %1428 = sbr.rel (0) target = $region67
    $region66: #{roi_relation_head_forward.2} parent=1 // pred_region
      _
    $region67: #{roi_relation_head_forward.2} parent=1 // pred_fallthru
      _
    %1429 = vsyncpa [#allocation3], 1

// kernel: roi_relation_head_forward.3
$region0: #{roi_relation_head_forward.3}
  #allocation0 [shape = 'u32[]', space=smem, size = 0x4, offset = 0x4, fixed_abs, tag = 'smem constant byte address 0x4 - core index']
  #allocation1 [shape = 'u32[72,128]{1,0:T(1,128)}', space=vmem, size = 0x9000, scoped, tag = 'internal scratch']
  %s0 = inlined_call_operand.vmem [shape: s32[56,2], index: 0, kind: input, shape index: {}]
  %s1 = inlined_call_operand.vmem [shape: bf16[56,256], index: 1, kind: input, shape index: {}]
  %s2 = inlined_call_operand.vmem [shape: bf16[256,128], index: 2, kind: input, shape index: {}]
  %s3 = inlined_call_operand.vmem [shape: f32[1,128], index: 3, kind: input, shape index: {}]
  %s4 = inlined_call_operand.vmem [shape: bf16[128,128], index: 4, kind: input, shape index: {}]
  %s5 = inlined_call_operand.vmem [shape: f32[1,128], index: 5, kind: input, shape index: {}]
  %s6 = inlined_call_operand.vmem [shape: bf16[8,128], index: 6, kind: input, shape index: {}]
  %s7 = inlined_call_operand.vmem [shape: bf16[8,128], index: 7, kind: input, shape index: {}]
  %s8 = inlined_call_operand.vmem [shape: f32[1,128], index: 8, kind: input, shape index: {}]
  %s9 = inlined_call_operand.vmem [shape: bf16[128,128], index: 9, kind: input, shape index: {}]
  %s10 = inlined_call_operand.vmem [shape: f32[1,128], index: 10, kind: input, shape index: {}]
  %s11 = inlined_call_operand.vmem [shape: f32[56,128], index: 11, kind: output, shape index: {}]
  %s12 = sld [smem:[#allocation0]]
  $region88: #{roi_relation_head_forward.3} parent=0
    _
  %s14 = ssub.s32 1, %s12
  %s15 = scalar_select 0, %s14, %s12
  $region1: #{roi_relation_head_forward.3} parent=0
    #allocation2 [shape = 'u8[131072]{0}', space=vmem, size = 0x20000, scoped, tag = 'output window, operand 0, single buffered']
    // Predicated region
    $region2: #{roi_relation_head_forward.3} parent=1 // pred_check
      _
    $region3: #{roi_relation_head_forward.3} parent=1 // pred_check_branch
      %17 = sbr.rel (0) target = $region5
    $region4: #{roi_relation_head_forward.3} parent=1 // pred_region
      _
    $region5: #{roi_relation_head_forward.3} parent=1 // pred_fallthru
      _
    // Predicated region
    $region6: #{roi_relation_head_forward.3} parent=1 // pred_check
      _
    $region7: #{roi_relation_head_forward.3} parent=1 // pred_check_branch
      %19 = sbr.rel (0) target = $region9
    $region8: #{roi_relation_head_forward.3} parent=1 // pred_region
      _
    $region9: #{roi_relation_head_forward.3} parent=1 // pred_fallthru
      _
    // Predicated region
    $region10: #{roi_relation_head_forward.3} parent=1 // pred_check
      _
    $region11: #{roi_relation_head_forward.3} parent=1 // pred_check_branch
      %21 = sbr.rel (0) target = $region13
    $region12: #{roi_relation_head_forward.3} parent=1 // pred_region
      _
    $region13: #{roi_relation_head_forward.3} parent=1 // pred_fallthru
      _
    // Predicated region
    $region14: #{roi_relation_head_forward.3} parent=1 // pred_check
      _
    $region15: #{roi_relation_head_forward.3} parent=1 // pred_check_branch
      %23 = sbr.rel (0) target = $region17
    $region16: #{roi_relation_head_forward.3} parent=1 // pred_region
      _
    $region17: #{roi_relation_head_forward.3} parent=1 // pred_fallthru
      _
    // Predicated region
    $region18: #{roi_relation_head_forward.3} parent=1 // pred_check
      _
    $region19: #{roi_relation_head_forward.3} parent=1 // pred_check_branch
      %25 = sbr.rel (0) target = $region21
    $region20: #{roi_relation_head_forward.3} parent=1 // pred_region
      _
    $region21: #{roi_relation_head_forward.3} parent=1 // pred_fallthru
      _
    // Predicated region
    $region22: #{roi_relation_head_forward.3} parent=1 // pred_check
      _
    $region23: #{roi_relation_head_forward.3} parent=1 // pred_check_branch
      %27 = sbr.rel (0) target = $region25
    $region24: #{roi_relation_head_forward.3} parent=1 // pred_region
      _
    $region25: #{roi_relation_head_forward.3} parent=1 // pred_fallthru
      _
    // Predicated region
    $region26: #{roi_relation_head_forward.3} parent=1 // pred_check
      _
    $region27: #{roi_relation_head_forward.3} parent=1 // pred_check_branch
      %29 = sbr.rel (0) target = $region29
    $region28: #{roi_relation_head_forward.3} parent=1 // pred_region
      _
    $region29: #{roi_relation_head_forward.3} parent=1 // pred_fallthru
      _
    // Predicated region
    $region30: #{roi_relation_head_forward.3} parent=1 // pred_check
      _
    $region31: #{roi_relation_head_forward.3} parent=1 // pred_check_branch
      %31 = sbr.rel (0) target = $region33
    $region32: #{roi_relation_head_forward.3} parent=1 // pred_region
      _
    $region33: #{roi_relation_head_forward.3} parent=1 // pred_fallthru
      _
    // Predicated region
    $region34: #{roi_relation_head_forward.3} parent=1 // pred_check
      _
    $region35: #{roi_relation_head_forward.3} parent=1 // pred_check_branch
      %33 = sbr.rel (0) target = $region37
    $region36: #{roi_relation_head_forward.3} parent=1 // pred_region
      _
    $region37: #{roi_relation_head_forward.3} parent=1 // pred_fallthru
      _
    // Predicated region
    $region38: #{roi_relation_head_forward.3} parent=1 // pred_check
      _
    $region39: #{roi_relation_head_forward.3} parent=1 // pred_check_branch
      %35 = sbr.rel (0) target = $region41
    $region40: #{roi_relation_head_forward.3} parent=1 // pred_region
      _
    $region41: #{roi_relation_head_forward.3} parent=1 // pred_fallthru
      _
    // Predicated region
    $region42: #{roi_relation_head_forward.3} parent=1 // pred_check
      _
    $region43: #{roi_relation_head_forward.3} parent=1 // pred_check_branch
      %37 = sbr.rel (0) target = $region45
    $region44: #{roi_relation_head_forward.3} parent=1 // pred_region
      _
    $region45: #{roi_relation_head_forward.3} parent=1 // pred_fallthru
      _
    %v39 = vld [vmem:[%s1] sm:$0xff]
    %v40 = vld [vmem:[%s1 + $0x8] sm:$0xff]
    %v41 = vld [vmem:[%s1 + $0x10] sm:$0xff]
    %v42 = vld [vmem:[%s1 + $0x18] sm:$0xff]
    %v43 = vld [vmem:[%s1 + $0x20] sm:$0xff]
    %v44 = vld [vmem:[%s1 + $0x28] sm:$0xff]
    %v45 = vld [vmem:[%s1 + $0x30] sm:$0xff]
    %v46 = vld [vmem:[%s1 + $0x38] sm:$0xff]
    %v47 = vld [vmem:[%s1 + $0x40] sm:$0xff]
    %v48 = vld [vmem:[%s1 + $0x48] sm:$0xff]
    %v49 = vld [vmem:[%s1 + $0x50] sm:$0xff]
    %v50 = vld [vmem:[%s1 + $0x58] sm:$0xff]
    %v51 = vld [vmem:[%s1 + $0x60] sm:$0xff]
    %v52 = vld [vmem:[%s1 + $0x68] sm:$0xff]
    %v53 = vld [vmem:[%s1 + $0x70] sm:$0xff]
    %v54 = vld [vmem:[%s1 + $0x78] sm:$0xff]
    %v55 = vld [vmem:[%s1 + $0x80] sm:$0xff]
    %v56 = vld [vmem:[%s1 + $0x88] sm:$0xff]
    %v57 = vld [vmem:[%s1 + $0x90] sm:$0xff]
    %v58 = vld [vmem:[%s1 + $0x98] sm:$0xff]
    %v59 = vld [vmem:[%s1 + $0xa0] sm:$0xff]
    %v60 = vld [vmem:[%s1 + $0xa8] sm:$0xff]
    %v61 = vld [vmem:[%s1 + $0xb0] sm:$0xff]
    %v62 = vld [vmem:[%s1 + $0xb8] sm:$0xff]
    %v63 = vld [vmem:[%s1 + $0xc0] sm:$0xff]
    %v64 = vld [vmem:[%s1 + $0xc8] sm:$0xff]
    %v65 = vld [vmem:[%s1 + $0xd0] sm:$0xff]
    %v66 = vld [vmem:[%s1 + $0xd8] sm:$0xff]
    %v67 = vld [vmem:[%s1 + $0xe0] sm:$0xff]
    %v68 = vld [vmem:[%s1 + $0xe8] sm:$0xff]
    %v69 = vld [vmem:[%s1 + $0xf0] sm:$0xff]
    %v70 = vld [vmem:[%s1 + $0xf8] sm:$0xff]
    %v71 = vld [vmem:[%s2] sm:$0xf]
    %v72 = vld [vmem:[%s2 + $0x4] sm:$0xf]
    %v73 = vld [vmem:[%s2 + $0x8] sm:$0xf]
    %v74 = vld [vmem:[%s2 + $0xc] sm:$0xf]
    %v75 = vld [vmem:[%s2 + $0x10] sm:$0xf]
    %v76 = vld [vmem:[%s2 + $0x14] sm:$0xf]
    %v77 = vld [vmem:[%s2 + $0x18] sm:$0xf]
    %v78 = vld [vmem:[%s2 + $0x1c] sm:$0xf]
    %v79 = vld [vmem:[%s2 + $0x20] sm:$0xf]
    %v80 = vld [vmem:[%s2 + $0x24] sm:$0xf]
    %v81 = vld [vmem:[%s2 + $0x28] sm:$0xf]
    %v82 = vld [vmem:[%s2 + $0x2c] sm:$0xf]
    %v83 = vld [vmem:[%s2 + $0x30] sm:$0xf]
    %v84 = vld [vmem:[%s2 + $0x34] sm:$0xf]
    %v85 = vld [vmem:[%s2 + $0x38] sm:$0xf]
    %v86 = vld [vmem:[%s2 + $0x3c] sm:$0xf]
    %v87 = vld [vmem:[%s2 + $0x40] sm:$0xf]
    %v88 = vld [vmem:[%s2 + $0x44] sm:$0xf]
    %v89 = vld [vmem:[%s2 + $0x48] sm:$0xf]
    %v90 = vld [vmem:[%s2 + $0x4c] sm:$0xf]
    %v91 = vld [vmem:[%s2 + $0x50] sm:$0xf]
    %v92 = vld [vmem:[%s2 + $0x54] sm:$0xf]
    %v93 = vld [vmem:[%s2 + $0x58] sm:$0xf]
    %v94 = vld [vmem:[%s2 + $0x5c] sm:$0xf]
    %v95 = vld [vmem:[%s2 + $0x60] sm:$0xf]
    %v96 = vld [vmem:[%s2 + $0x64] sm:$0xf]
    %v97 = vld [vmem:[%s2 + $0x68] sm:$0xf]
    %v98 = vld [vmem:[%s2 + $0x6c] sm:$0xf]
    %v99 = vld [vmem:[%s2 + $0x70] sm:$0xf]
    %v100 = vld [vmem:[%s2 + $0x74] sm:$0xf]
    %v101 = vld [vmem:[%s2 + $0x78] sm:$0xf]
    %v102 = vld [vmem:[%s2 + $0x7c] sm:$0xf]
    %v103 = vld [vmem:[%s3] sm:$0x1]
    %v105 = vperm.slane %v103, 0
    %v139 = vunpack.c.l.b16 %v39
    %v140 = vunpack.c.h.b16 %v39
    %v141 = vunpack.c.l.b16 %v40
    %v142 = vunpack.c.h.b16 %v40
    %v143 = vunpack.c.l.b16 %v41
    %v144 = vunpack.c.h.b16 %v41
    %v145 = vunpack.c.l.b16 %v42
    %v146 = vunpack.c.h.b16 %v42
    %v147 = vunpack.c.l.b16 %v43
    %v148 = vunpack.c.h.b16 %v43
    %v149 = vunpack.c.l.b16 %v44
    %v150 = vunpack.c.h.b16 %v44
    %v151 = vunpack.c.l.b16 %v45
    %v152 = vunpack.c.h.b16 %v45
    %v153 = vunpack.c.l.b16 %v46
    %v154 = vunpack.c.h.b16 %v46
    %v155 = vunpack.c.l.b16 %v47
    %v156 = vunpack.c.h.b16 %v47
    %v157 = vunpack.c.l.b16 %v48
    %v158 = vunpack.c.h.b16 %v48
    %v159 = vunpack.c.l.b16 %v49
    %v160 = vunpack.c.h.b16 %v49
    %v161 = vunpack.c.l.b16 %v50
    %v162 = vunpack.c.h.b16 %v50
    %v163 = vunpack.c.l.b16 %v51
    %v164 = vunpack.c.h.b16 %v51
    %v165 = vunpack.c.l.b16 %v52
    %v166 = vunpack.c.h.b16 %v52
    %v167 = vunpack.c.l.b16 %v53
    %v168 = vunpack.c.h.b16 %v53
    %v169 = vunpack.c.l.b16 %v54
    %v170 = vunpack.c.h.b16 %v54
    %v171 = vunpack.c.l.b16 %v55
    %v172 = vunpack.c.h.b16 %v55
    %v173 = vunpack.c.l.b16 %v56
    %v174 = vunpack.c.h.b16 %v56
    %v175 = vunpack.c.l.b16 %v57
    %v176 = vunpack.c.h.b16 %v57
    %v177 = vunpack.c.l.b16 %v58
    %v178 = vunpack.c.h.b16 %v58
    %v179 = vunpack.c.l.b16 %v59
    %v180 = vunpack.c.h.b16 %v59
    %v181 = vunpack.c.l.b16 %v60
    %v182 = vunpack.c.h.b16 %v60
    %v183 = vunpack.c.l.b16 %v61
    %v184 = vunpack.c.h.b16 %v61
    %v185 = vunpack.c.l.b16 %v62
    %v186 = vunpack.c.h.b16 %v62
    %v187 = vunpack.c.l.b16 %v63
    %v188 = vunpack.c.h.b16 %v63
    %v189 = vunpack.c.l.b16 %v64
    %v190 = vunpack.c.h.b16 %v64
    %v191 = vunpack.c.l.b16 %v65
    %v192 = vunpack.c.h.b16 %v65
    %v193 = vunpack.c.l.b16 %v66
    %v194 = vunpack.c.h.b16 %v66
    %v195 = vunpack.c.l.b16 %v67
    %v196 = vunpack.c.h.b16 %v67
    %v197 = vunpack.c.l.b16 %v68
    %v198 = vunpack.c.h.b16 %v68
    %v199 = vunpack.c.l.b16 %v69
    %v200 = vunpack.c.h.b16 %v69
    %v201 = vunpack.c.l.b16 %v70
    %v202 = vunpack.c.h.b16 %v70
    %v203 = vpack.c.b16 %v141, %v139
    %v204 = vpack.c.b16 %v142, %v140
    %v205 = vpack.c.b16 %v145, %v143
    %v206 = vpack.c.b16 %v146, %v144
    %v207 = vpack.c.b16 %v149, %v147
    %v208 = vpack.c.b16 %v150, %v148
    %v209 = vpack.c.b16 %v153, %v151
    %v210 = vpack.c.b16 %v154, %v152
    %v211 = vpack.c.b16 %v157, %v155
    %v212 = vpack.c.b16 %v158, %v156
    %v213 = vpack.c.b16 %v161, %v159
    %v214 = vpack.c.b16 %v162, %v160
    %v215 = vpack.c.b16 %v165, %v163
    %v216 = vpack.c.b16 %v166, %v164
    %v217 = vpack.c.b16 %v169, %v167
    %v218 = vpack.c.b16 %v170, %v168
    %v219 = vpack.c.b16 %v173, %v171
    %v220 = vpack.c.b16 %v174, %v172
    %v221 = vpack.c.b16 %v177, %v175
    %v222 = vpack.c.b16 %v178, %v176
    %v223 = vpack.c.b16 %v181, %v179
    %v224 = vpack.c.b16 %v182, %v180
    %v225 = vpack.c.b16 %v185, %v183
    %v226 = vpack.c.b16 %v186, %v184
    %v227 = vpack.c.b16 %v189, %v187
    %v228 = vpack.c.b16 %v190, %v188
    %v229 = vpack.c.b16 %v193, %v191
    %v230 = vpack.c.b16 %v194, %v192
    %v231 = vpack.c.b16 %v197, %v195
    %v232 = vpack.c.b16 %v198, %v196
    %v233 = vpack.c.b16 %v201, %v199
    %v234 = vpack.c.b16 %v202, %v200
    %v299 = vunpack.c.l.b16 %v71
    %v300 = vunpack.c.l.b16 %v72
    %v301 = vunpack.c.l.b16 %v73
    %v302 = vunpack.c.l.b16 %v74
    %v303 = vunpack.c.l.b16 %v75
    %v304 = vunpack.c.l.b16 %v76
    %v305 = vunpack.c.l.b16 %v77
    %v306 = vunpack.c.l.b16 %v78
    %v307 = vunpack.c.l.b16 %v79
    %v308 = vunpack.c.l.b16 %v80
    %v309 = vunpack.c.l.b16 %v81
    %v310 = vunpack.c.l.b16 %v82
    %v311 = vunpack.c.l.b16 %v83
    %v312 = vunpack.c.l.b16 %v84
    %v313 = vunpack.c.l.b16 %v85
    %v314 = vunpack.c.l.b16 %v86
    %v315 = vunpack.c.l.b16 %v87
    %v316 = vunpack.c.l.b16 %v88
    %v317 = vunpack.c.l.b16 %v89
    %v318 = vunpack.c.l.b16 %v90
    %v319 = vunpack.c.l.b16 %v91
    %v320 = vunpack.c.l.b16 %v92
    %v321 = vunpack.c.l.b16 %v93
    %v322 = vunpack.c.l.b16 %v94
    %v323 = vunpack.c.l.b16 %v95
    %v324 = vunpack.c.l.b16 %v96
    %v325 = vunpack.c.l.b16 %v97
    %v326 = vunpack.c.l.b16 %v98
    %v327 = vunpack.c.l.b16 %v99
    %v328 = vunpack.c.l.b16 %v100
    %v329 = vunpack.c.l.b16 %v101
    %v330 = vunpack.c.l.b16 %v102
    %v331 = vpack.c.b16 %v300, %v299
    %v332 = vpack.c.b16 %v302, %v301
    %v333 = vpack.c.b16 %v304, %v303
    %v334 = vpack.c.b16 %v306, %v305
    %v335 = vpack.c.b16 %v308, %v307
    %v336 = vpack.c.b16 %v310, %v309
    %v337 = vpack.c.b16 %v312, %v311
    %v338 = vpack.c.b16 %v314, %v313
    %v339 = vpack.c.b16 %v316, %v315
    %v340 = vpack.c.b16 %v318, %v317
    %v341 = vpack.c.b16 %v320, %v319
    %v342 = vpack.c.b16 %v322, %v321
    %v343 = vpack.c.b16 %v324, %v323
    %v344 = vpack.c.b16 %v326, %v325
    %v345 = vpack.c.b16 %v328, %v327
    %v346 = vpack.c.b16 %v330, %v329
    %363 = vmatpush.bf16.msra.mxu0 %v338
    %364 = vmatpush.bf16.msra.mxu0 %v337
    %365 = vmatpush.bf16.msra.mxu0 %v336
    %366 = vmatpush.bf16.msra.mxu0 %v335
    %367 = vmatpush.bf16.msra.mxu0 %v334
    %368 = vmatpush.bf16.msra.mxu0 %v333
    %369 = vmatpush.bf16.msra.mxu0 %v332
    %370 = vmatpush.bf16.msra.mxu0 %v331
    %371 = vmatmul.bf16.gmra.mxu0 %v203
    %v372 = vpop.f32.mrf.mxu0
    %v373 = vadd.f32 %v105, %v372
    %v374 = vpop.f32.mrf.mxu0
    %v375 = vadd.f32 %v105, %v374
    %376 = vmatmul.bf16.gmra.mxu0 %v205
    %v377 = vpop.f32.mrf.mxu0
    %v378 = vadd.f32 %v105, %v377
    %v379 = vpop.f32.mrf.mxu0
    %v380 = vadd.f32 %v105, %v379
    %381 = vmatmul.bf16.gmra.mxu0 %v207
    %v382 = vpop.f32.mrf.mxu0
    %v383 = vadd.f32 %v105, %v382
    %v384 = vpop.f32.mrf.mxu0
    %v385 = vadd.f32 %v105, %v384
    %386 = vmatmul.bf16.gmra.mxu0 %v209
    %v387 = vpop.f32.mrf.mxu0
    %v388 = vadd.f32 %v105, %v387
    %v389 = vpop.f32.mrf.mxu0
    %v390 = vadd.f32 %v105, %v389
    %391 = vmatmul.bf16.gmra.mxu0 %v211
    %v392 = vpop.f32.mrf.mxu0
    %v393 = vadd.f32 %v105, %v392
    %v394 = vpop.f32.mrf.mxu0
    %v395 = vadd.f32 %v105, %v394
    %396 = vmatmul.bf16.gmra.mxu0 %v213
    %v397 = vpop.f32.mrf.mxu0
    %v398 = vadd.f32 %v105, %v397
    %v399 = vpop.f32.mrf.mxu0
    %v400 = vadd.f32 %v105, %v399
    %401 = vmatmul.bf16.gmra.mxu0 %v215
    %v402 = vpop.f32.mrf.mxu0
    %v403 = vadd.f32 %v105, %v402
    %v404 = vpop.f32.mrf.mxu0
    %v405 = vadd.f32 %v105, %v404
    %406 = vmatmul.bf16.gmra.mxu0 %v217
    %v407 = vpop.f32.mrf.mxu0
    %v408 = vadd.f32 %v105, %v407
    %v409 = vpop.f32.mrf.mxu0
    %v410 = vadd.f32 %v105, %v409
    %411 = vmatmul.bf16.gmra.mxu0 %v219
    %v412 = vpop.f32.mrf.mxu0
    %v413 = vadd.f32 %v105, %v412
    %v414 = vpop.f32.mrf.mxu0
    %v415 = vadd.f32 %v105, %v414
    %416 = vmatmul.bf16.gmra.mxu0 %v221
    %v417 = vpop.f32.mrf.mxu0
    %v418 = vadd.f32 %v105, %v417
    %v419 = vpop.f32.mrf.mxu0
    %v420 = vadd.f32 %v105, %v419
    %421 = vmatmul.bf16.gmra.mxu0 %v223
    %v422 = vpop.f32.mrf.mxu0
    %v423 = vadd.f32 %v105, %v422
    %v424 = vpop.f32.mrf.mxu0
    %v425 = vadd.f32 %v105, %v424
    %426 = vmatmul.bf16.gmra.mxu0 %v225
    %v427 = vpop.f32.mrf.mxu0
    %v428 = vadd.f32 %v105, %v427
    %v429 = vpop.f32.mrf.mxu0
    %v430 = vadd.f32 %v105, %v429
    %431 = vmatmul.bf16.gmra.mxu0 %v227
    %v432 = vpop.f32.mrf.mxu0
    %v433 = vadd.f32 %v105, %v432
    %v434 = vpop.f32.mrf.mxu0
    %v435 = vadd.f32 %v105, %v434
    %436 = vmatmul.bf16.gmra.mxu0 %v229
    %v437 = vpop.f32.mrf.mxu0
    %v438 = vadd.f32 %v105, %v437
    %v439 = vpop.f32.mrf.mxu0
    %v440 = vadd.f32 %v105, %v439
    %441 = vmatmul.bf16.gmra.mxu0 %v231
    %v442 = vpop.f32.mrf.mxu0
    %v443 = vadd.f32 %v105, %v442
    %v444 = vpop.f32.mrf.mxu0
    %v445 = vadd.f32 %v105, %v444
    %446 = vmatmul.bf16.gmra.mxu0 %v233
    %v447 = vpop.f32.mrf.mxu0
    %v448 = vadd.f32 %v105, %v447
    %v449 = vpop.f32.mrf.mxu0
    %v450 = vadd.f32 %v105, %v449
    %451 = vdwg.mxu0
    %452 = vmatpush.bf16.msra.mxu0 %v346
    %453 = vmatpush.bf16.msra.mxu0 %v345
    %454 = vmatpush.bf16.msra.mxu0 %v344
    %455 = vmatpush.bf16.msra.mxu0 %v343
    %456 = vmatpush.bf16.msra.mxu0 %v342
    %457 = vmatpush.bf16.msra.mxu0 %v341
    %458 = vmatpush.bf16.msra.mxu0 %v340
    %459 = vmatpush.bf16.msra.mxu0 %v339
    %460 = vmatmul.bf16.gmra.mxu0 %v204
    %v461 = vpop.f32.mrf.mxu0
    %v462 = vadd.f32 %v373, %v461
    %v463 = vpop.f32.mrf.mxu0
    %v464 = vadd.f32 %v375, %v463
    %465 = vmatmul.bf16.gmra.mxu0 %v206
    %v466 = vpop.f32.mrf.mxu0
    %v467 = vadd.f32 %v378, %v466
    %v468 = vpop.f32.mrf.mxu0
    %v469 = vadd.f32 %v380, %v468
    %470 = vmatmul.bf16.gmra.mxu0 %v208
    %v471 = vpop.f32.mrf.mxu0
    %v472 = vadd.f32 %v383, %v471
    %v473 = vpop.f32.mrf.mxu0
    %v474 = vadd.f32 %v385, %v473
    %475 = vmatmul.bf16.gmra.mxu0 %v210
    %v476 = vpop.f32.mrf.mxu0
    %v477 = vadd.f32 %v388, %v476
    %v478 = vpop.f32.mrf.mxu0
    %v479 = vadd.f32 %v390, %v478
    %480 = vmatmul.bf16.gmra.mxu0 %v212
    %v481 = vpop.f32.mrf.mxu0
    %v482 = vadd.f32 %v393, %v481
    %v483 = vpop.f32.mrf.mxu0
    %v484 = vadd.f32 %v395, %v483
    %485 = vmatmul.bf16.gmra.mxu0 %v214
    %v486 = vpop.f32.mrf.mxu0
    %v487 = vadd.f32 %v398, %v486
    %v488 = vpop.f32.mrf.mxu0
    %v489 = vadd.f32 %v400, %v488
    %490 = vmatmul.bf16.gmra.mxu0 %v216
    %v491 = vpop.f32.mrf.mxu0
    %v492 = vadd.f32 %v403, %v491
    %v493 = vpop.f32.mrf.mxu0
    %v494 = vadd.f32 %v405, %v493
    %495 = vmatmul.bf16.gmra.mxu0 %v218
    %v496 = vpop.f32.mrf.mxu0
    %v497 = vadd.f32 %v408, %v496
    %v498 = vpop.f32.mrf.mxu0
    %v499 = vadd.f32 %v410, %v498
    %500 = vmatmul.bf16.gmra.mxu0 %v220
    %v501 = vpop.f32.mrf.mxu0
    %v502 = vadd.f32 %v413, %v501
    %v503 = vpop.f32.mrf.mxu0
    %v504 = vadd.f32 %v415, %v503
    %505 = vmatmul.bf16.gmra.mxu0 %v222
    %v506 = vpop.f32.mrf.mxu0
    %v507 = vadd.f32 %v418, %v506
    %v508 = vpop.f32.mrf.mxu0
    %v509 = vadd.f32 %v420, %v508
    %510 = vmatmul.bf16.gmra.mxu0 %v224
    %v511 = vpop.f32.mrf.mxu0
    %v512 = vadd.f32 %v423, %v511
    %v513 = vpop.f32.mrf.mxu0
    %v514 = vadd.f32 %v425, %v513
    %515 = vmatmul.bf16.gmra.mxu0 %v226
    %v516 = vpop.f32.mrf.mxu0
    %v517 = vadd.f32 %v428, %v516
    %v518 = vpop.f32.mrf.mxu0
    %v519 = vadd.f32 %v430, %v518
    %520 = vmatmul.bf16.gmra.mxu0 %v228
    %v521 = vpop.f32.mrf.mxu0
    %v522 = vadd.f32 %v433, %v521
    %v523 = vpop.f32.mrf.mxu0
    %v524 = vadd.f32 %v435, %v523
    %525 = vmatmul.bf16.gmra.mxu0 %v230
    %v526 = vpop.f32.mrf.mxu0
    %v527 = vadd.f32 %v438, %v526
    %v528 = vpop.f32.mrf.mxu0
    %v529 = vadd.f32 %v440, %v528
    %530 = vmatmul.bf16.gmra.mxu0 %v232
    %v531 = vpop.f32.mrf.mxu0
    %v532 = vadd.f32 %v443, %v531
    %v533 = vpop.f32.mrf.mxu0
    %v534 = vadd.f32 %v445, %v533
    %535 = vmatmul.bf16.gmra.mxu0 %v234
    %v536 = vpop.f32.mrf.mxu0
    %v537 = vadd.f32 %v448, %v536
    %v538 = vpop.f32.mrf.mxu0
    %v539 = vadd.f32 %v450, %v538
    %540 = vdwg.mxu0
    %v541 = vmax.f32 %v462, 0.0
    %v542 = vmax.f32 %v464, 0.0
    %v543 = vmax.f32 %v467, 0.0
    %v544 = vmax.f32 %v469, 0.0
    %v545 = vmax.f32 %v472, 0.0
    %v546 = vmax.f32 %v474, 0.0
    %v547 = vmax.f32 %v477, 0.0
    %v548 = vmax.f32 %v479, 0.0
    %v549 = vmax.f32 %v482, 0.0
    %v550 = vmax.f32 %v484, 0.0
    %v551 = vmax.f32 %v487, 0.0
    %v552 = vmax.f32 %v489, 0.0
    %v553 = vmax.f32 %v492, 0.0
    %v554 = vmax.f32 %v494, 0.0
    %v555 = vmax.f32 %v497, 0.0
    %v556 = vmax.f32 %v499, 0.0
    %v557 = vmax.f32 %v502, 0.0
    %v558 = vmax.f32 %v504, 0.0
    %v559 = vmax.f32 %v507, 0.0
    %v560 = vmax.f32 %v509, 0.0
    %v561 = vmax.f32 %v512, 0.0
    %v562 = vmax.f32 %v514, 0.0
    %v563 = vmax.f32 %v517, 0.0
    %v564 = vmax.f32 %v519, 0.0
    %v565 = vmax.f32 %v522, 0.0
    %v566 = vmax.f32 %v524, 0.0
    %v567 = vmax.f32 %v527, 0.0
    %v568 = vmax.f32 %v529, 0.0
    %v569 = vmax.f32 %v532, 0.0
    %v570 = vmax.f32 %v534, 0.0
    %v571 = vmax.f32 %v537, 0.0
    %v572 = vmax.f32 %v539, 0.0
    %v573 = vpack.c.bf16 %v542, %v541
    %v574 = vpack.c.bf16 %v544, %v543
    %v575 = vpack.c.bf16 %v546, %v545
    %v576 = vpack.c.bf16 %v548, %v547
    %v577 = vpack.c.bf16 %v550, %v549
    %v578 = vpack.c.bf16 %v552, %v551
    %v579 = vpack.c.bf16 %v554, %v553
    %v580 = vpack.c.bf16 %v556, %v555
    %v581 = vpack.c.bf16 %v558, %v557
    %v582 = vpack.c.bf16 %v560, %v559
    %v583 = vpack.c.bf16 %v562, %v561
    %v584 = vpack.c.bf16 %v564, %v563
    %v585 = vpack.c.bf16 %v566, %v565
    %v586 = vpack.c.bf16 %v568, %v567
    %v587 = vpack.c.bf16 %v570, %v569
    %v588 = vpack.c.bf16 %v572, %v571
    %v589 = vld [vmem:[%s4] sm:$0xf]
    %v590 = vld [vmem:[%s4 + $0x4] sm:$0xf]
    %v591 = vld [vmem:[%s4 + $0x8] sm:$0xf]
    %v592 = vld [vmem:[%s4 + $0xc] sm:$0xf]
    %v593 = vld [vmem:[%s4 + $0x10] sm:$0xf]
    %v594 = vld [vmem:[%s4 + $0x14] sm:$0xf]
    %v595 = vld [vmem:[%s4 + $0x18] sm:$0xf]
    %v596 = vld [vmem:[%s4 + $0x1c] sm:$0xf]
    %v597 = vld [vmem:[%s4 + $0x20] sm:$0xf]
    %v598 = vld [vmem:[%s4 + $0x24] sm:$0xf]
    %v599 = vld [vmem:[%s4 + $0x28] sm:$0xf]
    %v600 = vld [vmem:[%s4 + $0x2c] sm:$0xf]
    %v601 = vld [vmem:[%s4 + $0x30] sm:$0xf]
    %v602 = vld [vmem:[%s4 + $0x34] sm:$0xf]
    %v603 = vld [vmem:[%s4 + $0x38] sm:$0xf]
    %v604 = vld [vmem:[%s4 + $0x3c] sm:$0xf]
    %v605 = vld [vmem:[%s5] sm:$0x1]
    %v607 = vperm.slane %v605, 0
    %v625 = vunpack.c.l.b16 %v589
    %v626 = vunpack.c.l.b16 %v590
    %v627 = vunpack.c.l.b16 %v591
    %v628 = vunpack.c.l.b16 %v592
    %v629 = vunpack.c.l.b16 %v593
    %v630 = vunpack.c.l.b16 %v594
    %v631 = vunpack.c.l.b16 %v595
    %v632 = vunpack.c.l.b16 %v596
    %v633 = vunpack.c.l.b16 %v597
    %v634 = vunpack.c.l.b16 %v598
    %v635 = vunpack.c.l.b16 %v599
    %v636 = vunpack.c.l.b16 %v600
    %v637 = vunpack.c.l.b16 %v601
    %v638 = vunpack.c.l.b16 %v602
    %v639 = vunpack.c.l.b16 %v603
    %v640 = vunpack.c.l.b16 %v604
    %v641 = vpack.c.b16 %v626, %v625
    %v642 = vpack.c.b16 %v628, %v627
    %v643 = vpack.c.b16 %v630, %v629
    %v644 = vpack.c.b16 %v632, %v631
    %v645 = vpack.c.b16 %v634, %v633
    %v646 = vpack.c.b16 %v636, %v635
    %v647 = vpack.c.b16 %v638, %v637
    %v648 = vpack.c.b16 %v640, %v639
    %657 = vmatpush.bf16.msra.mxu0 %v648
    %658 = vmatpush.bf16.msra.mxu0 %v647
    %659 = vmatpush.bf16.msra.mxu0 %v646
    %660 = vmatpush.bf16.msra.mxu0 %v645
    %661 = vmatpush.bf16.msra.mxu0 %v644
    %662 = vmatpush.bf16.msra.mxu0 %v643
    %663 = vmatpush.bf16.msra.mxu0 %v642
    %664 = vmatpush.bf16.msra.mxu0 %v641
    %665 = vmatmul.bf16.gmra.mxu0 %v573
    %v666 = vpop.f32.mrf.mxu0
    %v667 = vadd.f32 %v607, %v666
    %v668 = vpop.f32.mrf.mxu0
    %v669 = vadd.f32 %v607, %v668
    %670 = vmatmul.bf16.gmra.mxu0 %v574
    %v671 = vpop.f32.mrf.mxu0
    %v672 = vadd.f32 %v607, %v671
    %v673 = vpop.f32.mrf.mxu0
    %v674 = vadd.f32 %v607, %v673
    %675 = vmatmul.bf16.gmra.mxu0 %v575
    %v676 = vpop.f32.mrf.mxu0
    %v677 = vadd.f32 %v607, %v676
    %v678 = vpop.f32.mrf.mxu0
    %v679 = vadd.f32 %v607, %v678
    %680 = vmatmul.bf16.gmra.mxu0 %v576
    %v681 = vpop.f32.mrf.mxu0
    %v682 = vadd.f32 %v607, %v681
    %v683 = vpop.f32.mrf.mxu0
    %v684 = vadd.f32 %v607, %v683
    %685 = vmatmul.bf16.gmra.mxu0 %v577
    %v686 = vpop.f32.mrf.mxu0
    %v687 = vadd.f32 %v607, %v686
    %v688 = vpop.f32.mrf.mxu0
    %v689 = vadd.f32 %v607, %v688
    %690 = vmatmul.bf16.gmra.mxu0 %v578
    %v691 = vpop.f32.mrf.mxu0
    %v692 = vadd.f32 %v607, %v691
    %v693 = vpop.f32.mrf.mxu0
    %v694 = vadd.f32 %v607, %v693
    %695 = vmatmul.bf16.gmra.mxu0 %v579
    %v696 = vpop.f32.mrf.mxu0
    %v697 = vadd.f32 %v607, %v696
    %v698 = vpop.f32.mrf.mxu0
    %v699 = vadd.f32 %v607, %v698
    %700 = vmatmul.bf16.gmra.mxu0 %v580
    %v701 = vpop.f32.mrf.mxu0
    %v702 = vadd.f32 %v607, %v701
    %v703 = vpop.f32.mrf.mxu0
    %v704 = vadd.f32 %v607, %v703
    %705 = vmatmul.bf16.gmra.mxu0 %v581
    %v706 = vpop.f32.mrf.mxu0
    %v707 = vadd.f32 %v607, %v706
    %v708 = vpop.f32.mrf.mxu0
    %v709 = vadd.f32 %v607, %v708
    %710 = vmatmul.bf16.gmra.mxu0 %v582
    %v711 = vpop.f32.mrf.mxu0
    %v712 = vadd.f32 %v607, %v711
    %v713 = vpop.f32.mrf.mxu0
    %v714 = vadd.f32 %v607, %v713
    %715 = vmatmul.bf16.gmra.mxu0 %v583
    %v716 = vpop.f32.mrf.mxu0
    %v717 = vadd.f32 %v607, %v716
    %v718 = vpop.f32.mrf.mxu0
    %v719 = vadd.f32 %v607, %v718
    %720 = vmatmul.bf16.gmra.mxu0 %v584
    %v721 = vpop.f32.mrf.mxu0
    %v722 = vadd.f32 %v607, %v721
    %v723 = vpop.f32.mrf.mxu0
    %v724 = vadd.f32 %v607, %v723
    %725 = vmatmul.bf16.gmra.mxu0 %v585
    %v726 = vpop.f32.mrf.mxu0
    %v727 = vadd.f32 %v607, %v726
    %v728 = vpop.f32.mrf.mxu0
    %v729 = vadd.f32 %v607, %v728
    %730 = vmatmul.bf16.gmra.mxu0 %v586
    %v731 = vpop.f32.mrf.mxu0
    %v732 = vadd.f32 %v607, %v731
    %v733 = vpop.f32.mrf.mxu0
    %v734 = vadd.f32 %v607, %v733
    %735 = vmatmul.bf16.gmra.mxu0 %v587
    %v736 = vpop.f32.mrf.mxu0
    %v737 = vadd.f32 %v607, %v736
    %v738 = vpop.f32.mrf.mxu0
    %v739 = vadd.f32 %v607, %v738
    %740 = vmatmul.bf16.gmra.mxu0 %v588
    %v741 = vpop.f32.mrf.mxu0
    %v742 = vadd.f32 %v607, %v741
    %v743 = vpop.f32.mrf.mxu0
    %v744 = vadd.f32 %v607, %v743
    %745 = vdwg.mxu0
    %v746 = vmax.f32 %v667, 0.0
    %v747 = vmax.f32 %v669, 0.0
    %v748 = vmax.f32 %v672, 0.0
    %v749 = vmax.f32 %v674, 0.0
    %v750 = vmax.f32 %v677, 0.0
    %v751 = vmax.f32 %v679, 0.0
    %v752 = vmax.f32 %v682, 0.0
    %v753 = vmax.f32 %v684, 0.0
    %v754 = vmax.f32 %v687, 0.0
    %v755 = vmax.f32 %v689, 0.0
    %v756 = vmax.f32 %v692, 0.0
    %v757 = vmax.f32 %v694, 0.0
    %v758 = vmax.f32 %v697, 0.0
    %v759 = vmax.f32 %v699, 0.0
    %v760 = vmax.f32 %v702, 0.0
    %v761 = vmax.f32 %v704, 0.0
    %v762 = vmax.f32 %v707, 0.0
    %v763 = vmax.f32 %v709, 0.0
    %v764 = vmax.f32 %v712, 0.0
    %v765 = vmax.f32 %v714, 0.0
    %v766 = vmax.f32 %v717, 0.0
    %v767 = vmax.f32 %v719, 0.0
    %v768 = vmax.f32 %v722, 0.0
    %v769 = vmax.f32 %v724, 0.0
    %v770 = vmax.f32 %v727, 0.0
    %v771 = vmax.f32 %v729, 0.0
    %v772 = vmax.f32 %v732, 0.0
    %v773 = vmax.f32 %v734, 0.0
    %v774 = vmax.f32 %v737, 0.0
    %v775 = vmax.f32 %v739, 0.0
    %v776 = vmax.f32 %v742, 0.0
    %v777 = vmax.f32 %v744, 0.0
    %v778 = vpack.c.bf16 %v746, %v746
    %v779 = vpack.c.bf16 %v747, %v747
    %v780 = vpack.c.bf16 %v748, %v748
    %v781 = vpack.c.bf16 %v749, %v749
    %v782 = vpack.c.bf16 %v750, %v750
    %v783 = vpack.c.bf16 %v751, %v751
    %v784 = vpack.c.bf16 %v752, %v752
    %v785 = vpack.c.bf16 %v753, %v753
    %v786 = vpack.c.bf16 %v754, %v754
    %v787 = vpack.c.bf16 %v755, %v755
    %v788 = vpack.c.bf16 %v756, %v756
    %v789 = vpack.c.bf16 %v757, %v757
    %v790 = vpack.c.bf16 %v758, %v758
    %v791 = vpack.c.bf16 %v759, %v759
    %v792 = vpack.c.bf16 %v760, %v760
    %v793 = vpack.c.bf16 %v761, %v761
    %v794 = vpack.c.bf16 %v762, %v762
    %v795 = vpack.c.bf16 %v763, %v763
    %v796 = vpack.c.bf16 %v764, %v764
    %v797 = vpack.c.bf16 %v765, %v765
    %v798 = vpack.c.bf16 %v766, %v766
    %v799 = vpack.c.bf16 %v767, %v767
    %v800 = vpack.c.bf16 %v768, %v768
    %v801 = vpack.c.bf16 %v769, %v769
    %v802 = vpack.c.bf16 %v770, %v770
    %v803 = vpack.c.bf16 %v771, %v771
    %v804 = vpack.c.bf16 %v772, %v772
    %v805 = vpack.c.bf16 %v773, %v773
    %v806 = vpack.c.bf16 %v774, %v774
    %v807 = vpack.c.bf16 %v775, %v775
    %v808 = vpack.c.bf16 %v776, %v776
    %v809 = vpack.c.bf16 %v777, %v777
    %v810 = vld [vmem:[%s0] sm:$0xff]
    %v811 = vld [vmem:[%s0 + $0x8] sm:$0xff]
    %v812 = vld [vmem:[%s0 + $0x10] sm:$0xff]
    %v813 = vld [vmem:[%s0 + $0x18] sm:$0xff]
    %v814 = vld [vmem:[%s0 + $0x20] sm:$0xff]
    %v815 = vld [vmem:[%s0 + $0x28] sm:$0xff]
    %v816 = vld [vmem:[%s0 + $0x30] sm:$0xff]
    %v817 = vld [vmem:[%s0 + $0x38] sm:$0xff]
    %v818 = vld [vmem:[%s0 + $0x40] sm:$0xff]
    %v819 = vld [vmem:[%s0 + $0x48] sm:$0xff]
    %v820 = vld [vmem:[%s0 + $0x50] sm:$0xff]
    %v821 = vld [vmem:[%s0 + $0x58] sm:$0xff]
    %v822 = vld [vmem:[%s0 + $0x60] sm:$0xff]
    %v823 = vld [vmem:[%s0 + $0x68] sm:$0xff]
    %v824 = vld [vmem:[%s0 + $0x70] sm:$0xff]
    %v825 = vld [vmem:[%s0 + $0x78] sm:$0xff]
    %v826 = vld [vmem:[%s0 + $0x80] sm:$0xff]
    %v827 = vld [vmem:[%s0 + $0x88] sm:$0xff]
    %v828 = vld [vmem:[%s0 + $0x90] sm:$0xff]
    %v829 = vld [vmem:[%s0 + $0x98] sm:$0xff]
    %v830 = vld [vmem:[%s0 + $0xa0] sm:$0xff]
    %v831 = vld [vmem:[%s0 + $0xa8] sm:$0xff]
    %v832 = vld [vmem:[%s0 + $0xb0] sm:$0xff]
    %v833 = vld [vmem:[%s0 + $0xb8] sm:$0xff]
    %v834 = vld [vmem:[%s0 + $0xc0] sm:$0xff]
    %v835 = vld [vmem:[%s0 + $0xc8] sm:$0xff]
    %v836 = vld [vmem:[%s0 + $0xd0] sm:$0xff]
    %v837 = vld [vmem:[%s0 + $0xd8] sm:$0xff]
    %v838 = vld [vmem:[%s0 + $0xe0] sm:$0xff]
    %v839 = vld [vmem:[%s0 + $0xe8] sm:$0xff]
    %v840 = vld [vmem:[%s0 + $0xf0] sm:$0xff]
    %v841 = vld [vmem:[%s0 + $0xf8] sm:$0xff]
    %v842 = vlaneseq
    %v843 = vand.u32 %v842, 127
    %844 = vset.pattern.permute.xlu0 0
    %845 = vperm.xlu0 %844, %v810
    %v846 = vpop.permute.xlu0 %845
    %847 = vset.pattern.permute.xlu0 0
    %848 = vperm.xlu0 %847, %v811
    %v849 = vpop.permute.xlu0 %848
    %850 = vset.pattern.permute.xlu0 0
    %851 = vperm.xlu0 %850, %v812
    %v852 = vpop.permute.xlu0 %851
    %853 = vset.pattern.permute.xlu0 0
    %854 = vperm.xlu0 %853, %v813
    %v855 = vpop.permute.xlu0 %854
    %856 = vset.pattern.permute.xlu0 0
    %857 = vperm.xlu0 %856, %v814
    %v858 = vpop.permute.xlu0 %857
    %859 = vset.pattern.permute.xlu0 0
    %860 = vperm.xlu0 %859, %v815
    %v861 = vpop.permute.xlu0 %860
    %862 = vset.pattern.permute.xlu0 0
    %863 = vperm.xlu0 %862, %v816
    %v864 = vpop.permute.xlu0 %863
    %865 = vset.pattern.permute.xlu0 0
    %866 = vperm.xlu0 %865, %v817
    %v867 = vpop.permute.xlu0 %866
    %868 = vset.pattern.permute.xlu0 0
    %869 = vperm.xlu0 %868, %v818
    %v870 = vpop.permute.xlu0 %869
    %871 = vset.pattern.permute.xlu0 0
    %872 = vperm.xlu0 %871, %v819
    %v873 = vpop.permute.xlu0 %872
    %874 = vset.pattern.permute.xlu0 0
    %875 = vperm.xlu0 %874, %v820
    %v876 = vpop.permute.xlu0 %875
    %877 = vset.pattern.permute.xlu0 0
    %878 = vperm.xlu0 %877, %v821
    %v879 = vpop.permute.xlu0 %878
    %880 = vset.pattern.permute.xlu0 0
    %881 = vperm.xlu0 %880, %v822
    %v882 = vpop.permute.xlu0 %881
    %883 = vset.pattern.permute.xlu0 0
    %884 = vperm.xlu0 %883, %v823
    %v885 = vpop.permute.xlu0 %884
    %886 = vset.pattern.permute.xlu0 0
    %887 = vperm.xlu0 %886, %v824
    %v888 = vpop.permute.xlu0 %887
    %889 = vset.pattern.permute.xlu0 0
    %890 = vperm.xlu0 %889, %v825
    %v891 = vpop.permute.xlu0 %890
    %892 = vset.pattern.permute.xlu0 0
    %893 = vperm.xlu0 %892, %v826
    %v894 = vpop.permute.xlu0 %893
    %895 = vset.pattern.permute.xlu0 0
    %896 = vperm.xlu0 %895, %v827
    %v897 = vpop.permute.xlu0 %896
    %898 = vset.pattern.permute.xlu0 0
    %899 = vperm.xlu0 %898, %v828
    %v900 = vpop.permute.xlu0 %899
    %901 = vset.pattern.permute.xlu0 0
    %902 = vperm.xlu0 %901, %v829
    %v903 = vpop.permute.xlu0 %902
    %904 = vset.pattern.permute.xlu0 0
    %905 = vperm.xlu0 %904, %v830
    %v906 = vpop.permute.xlu0 %905
    %907 = vset.pattern.permute.xlu0 0
    %908 = vperm.xlu0 %907, %v831
    %v909 = vpop.permute.xlu0 %908
    %910 = vset.pattern.permute.xlu0 0
    %911 = vperm.xlu0 %910, %v832
    %v912 = vpop.permute.xlu0 %911
    %913 = vset.pattern.permute.xlu0 0
    %914 = vperm.xlu0 %913, %v833
    %v915 = vpop.permute.xlu0 %914
    %916 = vset.pattern.permute.xlu0 0
    %917 = vperm.xlu0 %916, %v834
    %v918 = vpop.permute.xlu0 %917
    %919 = vset.pattern.permute.xlu0 0
    %920 = vperm.xlu0 %919, %v835
    %v921 = vpop.permute.xlu0 %920
    %922 = vset.pattern.permute.xlu0 0
    %923 = vperm.xlu0 %922, %v836
    %v924 = vpop.permute.xlu0 %923
    %925 = vset.pattern.permute.xlu0 0
    %926 = vperm.xlu0 %925, %v837
    %v927 = vpop.permute.xlu0 %926
    %928 = vset.pattern.permute.xlu0 0
    %929 = vperm.xlu0 %928, %v838
    %v930 = vpop.permute.xlu0 %929
    %931 = vset.pattern.permute.xlu0 0
    %932 = vperm.xlu0 %931, %v839
    %v933 = vpop.permute.xlu0 %932
    %934 = vset.pattern.permute.xlu0 0
    %935 = vperm.xlu0 %934, %v840
    %v936 = vpop.permute.xlu0 %935
    %937 = vset.pattern.permute.xlu0 0
    %938 = vperm.xlu0 %937, %v841
    %v939 = vpop.permute.xlu0 %938
    %vm940 = vcmp.eq.s32.totalorder %v843, %v846
    %vm941 = vcmp.eq.s32.totalorder %v843, %v849
    %vm942 = vcmp.eq.s32.totalorder %v843, %v852
    %vm943 = vcmp.eq.s32.totalorder %v843, %v855
    %vm944 = vcmp.eq.s32.totalorder %v843, %v858
    %vm945 = vcmp.eq.s32.totalorder %v843, %v861
    %vm946 = vcmp.eq.s32.totalorder %v843, %v864
    %vm947 = vcmp.eq.s32.totalorder %v843, %v867
    %vm948 = vcmp.eq.s32.totalorder %v843, %v870
    %vm949 = vcmp.eq.s32.totalorder %v843, %v873
    %vm950 = vcmp.eq.s32.totalorder %v843, %v876
    %vm951 = vcmp.eq.s32.totalorder %v843, %v879
    %vm952 = vcmp.eq.s32.totalorder %v843, %v882
    %vm953 = vcmp.eq.s32.totalorder %v843, %v885
    %vm954 = vcmp.eq.s32.totalorder %v843, %v888
    %vm955 = vcmp.eq.s32.totalorder %v843, %v891
    %vm956 = vcmp.eq.s32.totalorder %v843, %v894
    %vm957 = vcmp.eq.s32.totalorder %v843, %v897
    %vm958 = vcmp.eq.s32.totalorder %v843, %v900
    %vm959 = vcmp.eq.s32.totalorder %v843, %v903
    %vm960 = vcmp.eq.s32.totalorder %v843, %v906
    %vm961 = vcmp.eq.s32.totalorder %v843, %v909
    %vm962 = vcmp.eq.s32.totalorder %v843, %v912
    %vm963 = vcmp.eq.s32.totalorder %v843, %v915
    %vm964 = vcmp.eq.s32.totalorder %v843, %v918
    %vm965 = vcmp.eq.s32.totalorder %v843, %v921
    %vm966 = vcmp.eq.s32.totalorder %v843, %v924
    %vm967 = vcmp.eq.s32.totalorder %v843, %v927
    %vm968 = vcmp.eq.s32.totalorder %v843, %v930
    %vm969 = vcmp.eq.s32.totalorder %v843, %v933
    %vm970 = vcmp.eq.s32.totalorder %v843, %v936
    %vm971 = vcmp.eq.s32.totalorder %v843, %v939
    %v972 = vsel %vm940, 1, 0
    %v973 = vsel %vm941, 1, 0
    %v974 = vsel %vm942, 1, 0
    %v975 = vsel %vm943, 1, 0
    %v976 = vsel %vm944, 1, 0
    %v977 = vsel %vm945, 1, 0
    %v978 = vsel %vm946, 1, 0
    %v979 = vsel %vm947, 1, 0
    %v980 = vsel %vm948, 1, 0
    %v981 = vsel %vm949, 1, 0
    %v982 = vsel %vm950, 1, 0
    %v983 = vsel %vm951, 1, 0
    %v984 = vsel %vm952, 1, 0
    %v985 = vsel %vm953, 1, 0
    %v986 = vsel %vm954, 1, 0
    %v987 = vsel %vm955, 1, 0
    %v988 = vsel %vm956, 1, 0
    %v989 = vsel %vm957, 1, 0
    %v990 = vsel %vm958, 1, 0
    %v991 = vsel %vm959, 1, 0
    %v992 = vsel %vm960, 1, 0
    %v993 = vsel %vm961, 1, 0
    %v994 = vsel %vm962, 1, 0
    %v995 = vsel %vm963, 1, 0
    %v996 = vsel %vm964, 1, 0
    %v997 = vsel %vm965, 1, 0
    %v998 = vsel %vm966, 1, 0
    %v999 = vsel %vm967, 1, 0
    %v1000 = vsel %vm968, 1, 0
    %v1001 = vsel %vm969, 1, 0
    %v1002 = vsel %vm970, 1, 0
    %v1003 = vsel %vm971, 1, 0
    %v1004 = vcvt.s32.f32 %v972
    %v1005 = vcvt.s32.f32 %v973
    %v1006 = vcvt.s32.f32 %v974
    %v1007 = vcvt.s32.f32 %v975
    %v1008 = vcvt.s32.f32 %v976
    %v1009 = vcvt.s32.f32 %v977
    %v1010 = vcvt.s32.f32 %v978
    %v1011 = vcvt.s32.f32 %v979
    %v1012 = vcvt.s32.f32 %v980
    %v1013 = vcvt.s32.f32 %v981
    %v1014 = vcvt.s32.f32 %v982
    %v1015 = vcvt.s32.f32 %v983
    %v1016 = vcvt.s32.f32 %v984
    %v1017 = vcvt.s32.f32 %v985
    %v1018 = vcvt.s32.f32 %v986
    %v1019 = vcvt.s32.f32 %v987
    %v1020 = vcvt.s32.f32 %v988
    %v1021 = vcvt.s32.f32 %v989
    %v1022 = vcvt.s32.f32 %v990
    %v1023 = vcvt.s32.f32 %v991
    %v1024 = vcvt.s32.f32 %v992
    %v1025 = vcvt.s32.f32 %v993
    %v1026 = vcvt.s32.f32 %v994
    %v1027 = vcvt.s32.f32 %v995
    %v1028 = vcvt.s32.f32 %v996
    %v1029 = vcvt.s32.f32 %v997
    %v1030 = vcvt.s32.f32 %v998
    %v1031 = vcvt.s32.f32 %v999
    %v1032 = vcvt.s32.f32 %v1000
    %v1033 = vcvt.s32.f32 %v1001
    %v1034 = vcvt.s32.f32 %v1002
    %v1035 = vcvt.s32.f32 %v1003
    %v1036 = vpack.c.bf16 %v1005, %v1004
    %v1037 = vpack.c.bf16 %v1007, %v1006
    %v1038 = vpack.c.bf16 %v1009, %v1008
    %v1039 = vpack.c.bf16 %v1011, %v1010
    %v1040 = vpack.c.bf16 %v1013, %v1012
    %v1041 = vpack.c.bf16 %v1015, %v1014
    %v1042 = vpack.c.bf16 %v1017, %v1016
    %v1043 = vpack.c.bf16 %v1019, %v1018
    %v1044 = vpack.c.bf16 %v1021, %v1020
    %v1045 = vpack.c.bf16 %v1023, %v1022
    %v1046 = vpack.c.bf16 %v1025, %v1024
    %v1047 = vpack.c.bf16 %v1027, %v1026
    %v1048 = vpack.c.bf16 %v1029, %v1028
    %v1049 = vpack.c.bf16 %v1031, %v1030
    %v1050 = vpack.c.bf16 %v1033, %v1032
    %v1051 = vpack.c.bf16 %v1035, %v1034
    %1052 = vset.pattern.permute.xlu0 1
    %1053 = vperm.xlu0 %1052, %v810
    %v1054 = vpop.permute.xlu0 %1053
    %1055 = vset.pattern.permute.xlu0 1
    %1056 = vperm.xlu0 %1055, %v811
    %v1057 = vpop.permute.xlu0 %1056
    %1058 = vset.pattern.permute.xlu0 1
    %1059 = vperm.xlu0 %1058, %v812
    %v1060 = vpop.permute.xlu0 %1059
    %1061 = vset.pattern.permute.xlu0 1
    %1062 = vperm.xlu0 %1061, %v813
    %v1063 = vpop.permute.xlu0 %1062
    %1064 = vset.pattern.permute.xlu0 1
    %1065 = vperm.xlu0 %1064, %v814
    %v1066 = vpop.permute.xlu0 %1065
    %1067 = vset.pattern.permute.xlu0 1
    %1068 = vperm.xlu0 %1067, %v815
    %v1069 = vpop.permute.xlu0 %1068
    %1070 = vset.pattern.permute.xlu0 1
    %1071 = vperm.xlu0 %1070, %v816
    %v1072 = vpop.permute.xlu0 %1071
    %1073 = vset.pattern.permute.xlu0 1
    %1074 = vperm.xlu0 %1073, %v817
    %v1075 = vpop.permute.xlu0 %1074
    %1076 = vset.pattern.permute.xlu0 1
    %1077 = vperm.xlu0 %1076, %v818
    %v1078 = vpop.permute.xlu0 %1077
    %1079 = vset.pattern.permute.xlu0 1
    %1080 = vperm.xlu0 %1079, %v819
    %v1081 = vpop.permute.xlu0 %1080
    %1082 = vset.pattern.permute.xlu0 1
    %1083 = vperm.xlu0 %1082, %v820
    %v1084 = vpop.permute.xlu0 %1083
    %1085 = vset.pattern.permute.xlu0 1
    %1086 = vperm.xlu0 %1085, %v821
    %v1087 = vpop.permute.xlu0 %1086
    %1088 = vset.pattern.permute.xlu0 1
    %1089 = vperm.xlu0 %1088, %v822
    %v1090 = vpop.permute.xlu0 %1089
    %1091 = vset.pattern.permute.xlu0 1
    %1092 = vperm.xlu0 %1091, %v823
    %v1093 = vpop.permute.xlu0 %1092
    %1094 = vset.pattern.permute.xlu0 1
    %1095 = vperm.xlu0 %1094, %v824
    %v1096 = vpop.permute.xlu0 %1095
    %1097 = vset.pattern.permute.xlu0 1
    %1098 = vperm.xlu0 %1097, %v825
    %v1099 = vpop.permute.xlu0 %1098
    %1100 = vset.pattern.permute.xlu0 1
    %1101 = vperm.xlu0 %1100, %v826
    %v1102 = vpop.permute.xlu0 %1101
    %1103 = vset.pattern.permute.xlu0 1
    %1104 = vperm.xlu0 %1103, %v827
    %v1105 = vpop.permute.xlu0 %1104
    %1106 = vset.pattern.permute.xlu0 1
    %1107 = vperm.xlu0 %1106, %v828
    %v1108 = vpop.permute.xlu0 %1107
    %1109 = vset.pattern.permute.xlu0 1
    %1110 = vperm.xlu0 %1109, %v829
    %v1111 = vpop.permute.xlu0 %1110
    %1112 = vset.pattern.permute.xlu0 1
    %1113 = vperm.xlu0 %1112, %v830
    %v1114 = vpop.permute.xlu0 %1113
    %1115 = vset.pattern.permute.xlu0 1
    %1116 = vperm.xlu0 %1115, %v831
    %v1117 = vpop.permute.xlu0 %1116
    %1118 = vset.pattern.permute.xlu0 1
    %1119 = vperm.xlu0 %1118, %v832
    %v1120 = vpop.permute.xlu0 %1119
    %1121 = vset.pattern.permute.xlu0 1
    %1122 = vperm.xlu0 %1121, %v833
    %v1123 = vpop.permute.xlu0 %1122
    %1124 = vset.pattern.permute.xlu0 1
    %1125 = vperm.xlu0 %1124, %v834
    %v1126 = vpop.permute.xlu0 %1125
    %1127 = vset.pattern.permute.xlu0 1
    %1128 = vperm.xlu0 %1127, %v835
    %v1129 = vpop.permute.xlu0 %1128
    %1130 = vset.pattern.permute.xlu0 1
    %1131 = vperm.xlu0 %1130, %v836
    %v1132 = vpop.permute.xlu0 %1131
    %1133 = vset.pattern.permute.xlu0 1
    %1134 = vperm.xlu0 %1133, %v837
    %v1135 = vpop.permute.xlu0 %1134
    %1136 = vset.pattern.permute.xlu0 1
    %1137 = vperm.xlu0 %1136, %v838
    %v1138 = vpop.permute.xlu0 %1137
    %1139 = vset.pattern.permute.xlu0 1
    %1140 = vperm.xlu0 %1139, %v839
    %v1141 = vpop.permute.xlu0 %1140
    %1142 = vset.pattern.permute.xlu0 1
    %1143 = vperm.xlu0 %1142, %v840
    %v1144 = vpop.permute.xlu0 %1143
    %1145 = vset.pattern.permute.xlu0 1
    %1146 = vperm.xlu0 %1145, %v841
    %v1147 = vpop.permute.xlu0 %1146
    %vm1148 = vcmp.eq.s32.totalorder %v843, %v1054
    %vm1149 = vcmp.eq.s32.totalorder %v843, %v1057
    %vm1150 = vcmp.eq.s32.totalorder %v843, %v1060
    %vm1151 = vcmp.eq.s32.totalorder %v843, %v1063
    %vm1152 = vcmp.eq.s32.totalorder %v843, %v1066
    %vm1153 = vcmp.eq.s32.totalorder %v843, %v1069
    %vm1154 = vcmp.eq.s32.totalorder %v843, %v1072
    %vm1155 = vcmp.eq.s32.totalorder %v843, %v1075
    %vm1156 = vcmp.eq.s32.totalorder %v843, %v1078
    %vm1157 = vcmp.eq.s32.totalorder %v843, %v1081
    %vm1158 = vcmp.eq.s32.totalorder %v843, %v1084
    %vm1159 = vcmp.eq.s32.totalorder %v843, %v1087
    %vm1160 = vcmp.eq.s32.totalorder %v843, %v1090
    %vm1161 = vcmp.eq.s32.totalorder %v843, %v1093
    %vm1162 = vcmp.eq.s32.totalorder %v843, %v1096
    %vm1163 = vcmp.eq.s32.totalorder %v843, %v1099
    %vm1164 = vcmp.eq.s32.totalorder %v843, %v1102
    %vm1165 = vcmp.eq.s32.totalorder %v843, %v1105
    %vm1166 = vcmp.eq.s32.totalorder %v843, %v1108
    %vm1167 = vcmp.eq.s32.totalorder %v843, %v1111
    %vm1168 = vcmp.eq.s32.totalorder %v843, %v1114
    %vm1169 = vcmp.eq.s32.totalorder %v843, %v1117
    %vm1170 = vcmp.eq.s32.totalorder %v843, %v1120
    %vm1171 = vcmp.eq.s32.totalorder %v843, %v1123
    %vm1172 = vcmp.eq.s32.totalorder %v843, %v1126
    %vm1173 = vcmp.eq.s32.totalorder %v843, %v1129
    %vm1174 = vcmp.eq.s32.totalorder %v843, %v1132
    %vm1175 = vcmp.eq.s32.totalorder %v843, %v1135
    %vm1176 = vcmp.eq.s32.totalorder %v843, %v1138
    %vm1177 = vcmp.eq.s32.totalorder %v843, %v1141
    %vm1178 = vcmp.eq.s32.totalorder %v843, %v1144
    %vm1179 = vcmp.eq.s32.totalorder %v843, %v1147
    %v1180 = vsel %vm1148, 1, 0
    %v1181 = vsel %vm1149, 1, 0
    %v1182 = vsel %vm1150, 1, 0
    %v1183 = vsel %vm1151, 1, 0
    %v1184 = vsel %vm1152, 1, 0
    %v1185 = vsel %vm1153, 1, 0
    %v1186 = vsel %vm1154, 1, 0
    %v1187 = vsel %vm1155, 1, 0
    %v1188 = vsel %vm1156, 1, 0
    %v1189 = vsel %vm1157, 1, 0
    %v1190 = vsel %vm1158, 1, 0
    %v1191 = vsel %vm1159, 1, 0
    %v1192 = vsel %vm1160, 1, 0
    %v1193 = vsel %vm1161, 1, 0
    %v1194 = vsel %vm1162, 1, 0
    %v1195 = vsel %vm1163, 1, 0
    %v1196 = vsel %vm1164, 1, 0
    %v1197 = vsel %vm1165, 1, 0
    %v1198 = vsel %vm1166, 1, 0
    %v1199 = vsel %vm1167, 1, 0
    %v1200 = vsel %vm1168, 1, 0
    %v1201 = vsel %vm1169, 1, 0
    %v1202 = vsel %vm1170, 1, 0
    %v1203 = vsel %vm1171, 1, 0
    %v1204 = vsel %vm1172, 1, 0
    %v1205 = vsel %vm1173, 1, 0
    %v1206 = vsel %vm1174, 1, 0
    %v1207 = vsel %vm1175, 1, 0
    %v1208 = vsel %vm1176, 1, 0
    %v1209 = vsel %vm1177, 1, 0
    %v1210 = vsel %vm1178, 1, 0
    %v1211 = vsel %vm1179, 1, 0
    %v1212 = vcvt.s32.f32 %v1180
    %v1213 = vcvt.s32.f32 %v1181
    %v1214 = vcvt.s32.f32 %v1182
    %v1215 = vcvt.s32.f32 %v1183
    %v1216 = vcvt.s32.f32 %v1184
    %v1217 = vcvt.s32.f32 %v1185
    %v1218 = vcvt.s32.f32 %v1186
    %v1219 = vcvt.s32.f32 %v1187
    %v1220 = vcvt.s32.f32 %v1188
    %v1221 = vcvt.s32.f32 %v1189
    %v1222 = vcvt.s32.f32 %v1190
    %v1223 = vcvt.s32.f32 %v1191
    %v1224 = vcvt.s32.f32 %v1192
    %v1225 = vcvt.s32.f32 %v1193
    %v1226 = vcvt.s32.f32 %v1194
    %v1227 = vcvt.s32.f32 %v1195
    %v1228 = vcvt.s32.f32 %v1196
    %v1229 = vcvt.s32.f32 %v1197
    %v1230 = vcvt.s32.f32 %v1198
    %v1231 = vcvt.s32.f32 %v1199
    %v1232 = vcvt.s32.f32 %v1200
    %v1233 = vcvt.s32.f32 %v1201
    %v1234 = vcvt.s32.f32 %v1202
    %v1235 = vcvt.s32.f32 %v1203
    %v1236 = vcvt.s32.f32 %v1204
    %v1237 = vcvt.s32.f32 %v1205
    %v1238 = vcvt.s32.f32 %v1206
    %v1239 = vcvt.s32.f32 %v1207
    %v1240 = vcvt.s32.f32 %v1208
    %v1241 = vcvt.s32.f32 %v1209
    %v1242 = vcvt.s32.f32 %v1210
    %v1243 = vcvt.s32.f32 %v1211
    %v1244 = vpack.c.bf16 %v1213, %v1212
    %v1245 = vpack.c.bf16 %v1215, %v1214
    %v1246 = vpack.c.bf16 %v1217, %v1216
    %v1247 = vpack.c.bf16 %v1219, %v1218
    %v1248 = vpack.c.bf16 %v1221, %v1220
    %v1249 = vpack.c.bf16 %v1223, %v1222
    %v1250 = vpack.c.bf16 %v1225, %v1224
    %v1251 = vpack.c.bf16 %v1227, %v1226
    %v1252 = vpack.c.bf16 %v1229, %v1228
    %v1253 = vpack.c.bf16 %v1231, %v1230
    %v1254 = vpack.c.bf16 %v1233, %v1232
    %v1255 = vpack.c.bf16 %v1235, %v1234
    %v1256 = vpack.c.bf16 %v1237, %v1236
    %v1257 = vpack.c.bf16 %v1239, %v1238
    %v1258 = vpack.c.bf16 %v1241, %v1240
    %v1259 = vpack.c.bf16 %v1243, %v1242
    %v1260 = vld [vmem:[%s6] sm:$0xf]
    %v1261 = vld [vmem:[%s7] sm:$0xf]
    %vm1262 = vcmask 64512
    %v1264 = vsel %vm1262, %v1244, 0
    %v1267 = vsel %vm1262, %v1245, 0
    %v1270 = vsel %vm1262, %v1246, 0
    %v1273 = vsel %vm1262, %v1247, 0
    %v1276 = vsel %vm1262, %v1248, 0
    %v1279 = vsel %vm1262, %v1249, 0
    %v1282 = vsel %vm1262, %v1250, 0
    %v1285 = vsel %vm1262, %v1251, 0
    %v1288 = vsel %vm1262, %v1252, 0
    %v1291 = vsel %vm1262, %v1253, 0
    %v1294 = vsel %vm1262, %v1254, 0
    %v1297 = vsel %vm1262, %v1255, 0
    %v1300 = vsel %vm1262, %v1256, 0
    %v1303 = vsel %vm1262, %v1257, 0
    %v1306 = vsel %vm1262, %v1258, 0
    %v1309 = vsel %vm1262, %v1259, 0
    %vm1311 = vcmask 1043456
    %v1313 = vsel %vm1311, %v1261, 0
    %1315 = vmatpush.bf16.msra.mxu0 0
    %1316 = vmatpush.bf16.msra.mxu0 0
    %1317 = vmatpush.bf16.msra.mxu0 0
    %1318 = vmatpush.bf16.msra.mxu0 0
    %1319 = vmatpush.bf16.msra.mxu0 0
    %1320 = vmatpush.bf16.msra.mxu0 0
    %1321 = vmatpush.bf16.msra.mxu0 0
    %1322 = vmatpush.bf16.msra.mxu0 %v1313
    %1323 = vmatmul.bf16.gmra.mxu0 %v1264
    %v1324 = vpop.f32.mrf.mxu0
    %v1325 = vadd.f32 0.0, %v1324
    %v1326 = vpop.f32.mrf.mxu0
    %v1327 = vadd.f32 0.0, %v1326
    %1328 = vmatmul.bf16.gmra.mxu0 %v1267
    %v1329 = vpop.f32.mrf.mxu0
    %v1330 = vadd.f32 0.0, %v1329
    %v1331 = vpop.f32.mrf.mxu0
    %v1332 = vadd.f32 0.0, %v1331
    %1333 = vmatmul.bf16.gmra.mxu0 %v1270
    %v1334 = vpop.f32.mrf.mxu0
    %v1335 = vadd.f32 0.0, %v1334
    %v1336 = vpop.f32.mrf.mxu0
    %v1337 = vadd.f32 0.0, %v1336
    %1338 = vmatmul.bf16.gmra.mxu0 %v1273
    %v1339 = vpop.f32.mrf.mxu0
    %v1340 = vadd.f32 0.0, %v1339
    %v1341 = vpop.f32.mrf.mxu0
    %v1342 = vadd.f32 0.0, %v1341
    %1343 = vmatmul.bf16.gmra.mxu0 %v1276
    %v1344 = vpop.f32.mrf.mxu0
    %v1345 = vadd.f32 0.0, %v1344
    %v1346 = vpop.f32.mrf.mxu0
    %v1347 = vadd.f32 0.0, %v1346
    %1348 = vmatmul.bf16.gmra.mxu0 %v1279
    %v1349 = vpop.f32.mrf.mxu0
    %v1350 = vadd.f32 0.0, %v1349
    %v1351 = vpop.f32.mrf.mxu0
    %v1352 = vadd.f32 0.0, %v1351
    %1353 = vmatmul.bf16.gmra.mxu0 %v1282
    %v1354 = vpop.f32.mrf.mxu0
    %v1355 = vadd.f32 0.0, %v1354
    %v1356 = vpop.f32.mrf.mxu0
    %v1357 = vadd.f32 0.0, %v1356
    %1358 = vmatmul.bf16.gmra.mxu0 %v1285
    %v1359 = vpop.f32.mrf.mxu0
    %v1360 = vadd.f32 0.0, %v1359
    %v1361 = vpop.f32.mrf.mxu0
    %v1362 = vadd.f32 0.0, %v1361
    %1363 = vmatmul.bf16.gmra.mxu0 %v1288
    %v1364 = vpop.f32.mrf.mxu0
    %v1365 = vadd.f32 0.0, %v1364
    %v1366 = vpop.f32.mrf.mxu0
    %v1367 = vadd.f32 0.0, %v1366
    %1368 = vmatmul.bf16.gmra.mxu0 %v1291
    %v1369 = vpop.f32.mrf.mxu0
    %v1370 = vadd.f32 0.0, %v1369
    %v1371 = vpop.f32.mrf.mxu0
    %v1372 = vadd.f32 0.0, %v1371
    %1373 = vmatmul.bf16.gmra.mxu0 %v1294
    %v1374 = vpop.f32.mrf.mxu0
    %v1375 = vadd.f32 0.0, %v1374
    %v1376 = vpop.f32.mrf.mxu0
    %v1377 = vadd.f32 0.0, %v1376
    %1378 = vmatmul.bf16.gmra.mxu0 %v1297
    %v1379 = vpop.f32.mrf.mxu0
    %v1380 = vadd.f32 0.0, %v1379
    %v1381 = vpop.f32.mrf.mxu0
    %v1382 = vadd.f32 0.0, %v1381
    %1383 = vmatmul.bf16.gmra.mxu0 %v1300
    %v1384 = vpop.f32.mrf.mxu0
    %v1385 = vadd.f32 0.0, %v1384
    %v1386 = vpop.f32.mrf.mxu0
    %v1387 = vadd.f32 0.0, %v1386
    %1388 = vmatmul.bf16.gmra.mxu0 %v1303
    %v1389 = vpop.f32.mrf.mxu0
    %v1390 = vadd.f32 0.0, %v1389
    %v1391 = vpop.f32.mrf.mxu0
    %v1392 = vadd.f32 0.0, %v1391
    %1393 = vmatmul.bf16.gmra.mxu0 %v1306
    %v1394 = vpop.f32.mrf.mxu0
    %v1395 = vadd.f32 0.0, %v1394
    %v1396 = vpop.f32.mrf.mxu0
    %v1397 = vadd.f32 0.0, %v1396
    %1398 = vmatmul.bf16.gmra.mxu0 %v1309
    %v1399 = vpop.f32.mrf.mxu0
    %v1400 = vadd.f32 0.0, %v1399
    %v1401 = vpop.f32.mrf.mxu0
    %v1402 = vadd.f32 0.0, %v1401
    %1403 = vdwg.mxu0
    %v1405 = vsel %vm1262, %v1036, 0
    %v1408 = vsel %vm1262, %v1037, 0
    %v1411 = vsel %vm1262, %v1038, 0
    %v1414 = vsel %vm1262, %v1039, 0
    %v1417 = vsel %vm1262, %v1040, 0
    %v1420 = vsel %vm1262, %v1041, 0
    %v1423 = vsel %vm1262, %v1042, 0
    %v1426 = vsel %vm1262, %v1043, 0
    %v1429 = vsel %vm1262, %v1044, 0
    %v1432 = vsel %vm1262, %v1045, 0
    %v1435 = vsel %vm1262, %v1046, 0
    %v1438 = vsel %vm1262, %v1047, 0
    %v1441 = vsel %vm1262, %v1048, 0
    %v1444 = vsel %vm1262, %v1049, 0
    %v1447 = vsel %vm1262, %v1050, 0
    %v1450 = vsel %vm1262, %v1051, 0
    %v1453 = vsel %vm1311, %v1260, 0
    %1455 = vmatpush.bf16.msra.mxu0 0
    %1456 = vmatpush.bf16.msra.mxu0 0
    %1457 = vmatpush.bf16.msra.mxu0 0
    %1458 = vmatpush.bf16.msra.mxu0 0
    %1459 = vmatpush.bf16.msra.mxu0 0
    %1460 = vmatpush.bf16.msra.mxu0 0
    %1461 = vmatpush.bf16.msra.mxu0 0
    %1462 = vmatpush.bf16.msra.mxu0 %v1453
    %1463 = vmatmul.bf16.gmra.mxu0 %v1405
    %v1464 = vpop.f32.mrf.mxu0
    %v1465 = vadd.f32 %v1325, %v1464
    %v1466 = vpop.f32.mrf.mxu0
    %v1467 = vadd.f32 %v1327, %v1466
    %1468 = vmatmul.bf16.gmra.mxu0 %v1408
    %v1469 = vpop.f32.mrf.mxu0
    %v1470 = vadd.f32 %v1330, %v1469
    %v1471 = vpop.f32.mrf.mxu0
    %v1472 = vadd.f32 %v1332, %v1471
    %1473 = vmatmul.bf16.gmra.mxu0 %v1411
    %v1474 = vpop.f32.mrf.mxu0
    %v1475 = vadd.f32 %v1335, %v1474
    %v1476 = vpop.f32.mrf.mxu0
    %v1477 = vadd.f32 %v1337, %v1476
    %1478 = vmatmul.bf16.gmra.mxu0 %v1414
    %v1479 = vpop.f32.mrf.mxu0
    %v1480 = vadd.f32 %v1340, %v1479
    %v1481 = vpop.f32.mrf.mxu0
    %v1482 = vadd.f32 %v1342, %v1481
    %1483 = vmatmul.bf16.gmra.mxu0 %v1417
    %v1484 = vpop.f32.mrf.mxu0
    %v1485 = vadd.f32 %v1345, %v1484
    %v1486 = vpop.f32.mrf.mxu0
    %v1487 = vadd.f32 %v1347, %v1486
    %1488 = vmatmul.bf16.gmra.mxu0 %v1420
    %v1489 = vpop.f32.mrf.mxu0
    %v1490 = vadd.f32 %v1350, %v1489
    %v1491 = vpop.f32.mrf.mxu0
    %v1492 = vadd.f32 %v1352, %v1491
    %1493 = vmatmul.bf16.gmra.mxu0 %v1423
    %v1494 = vpop.f32.mrf.mxu0
    %v1495 = vadd.f32 %v1355, %v1494
    %v1496 = vpop.f32.mrf.mxu0
    %v1497 = vadd.f32 %v1357, %v1496
    %1498 = vmatmul.bf16.gmra.mxu0 %v1426
    %v1499 = vpop.f32.mrf.mxu0
    %v1500 = vadd.f32 %v1360, %v1499
    %v1501 = vpop.f32.mrf.mxu0
    %v1502 = vadd.f32 %v1362, %v1501
    %1503 = vmatmul.bf16.gmra.mxu0 %v1429
    %v1504 = vpop.f32.mrf.mxu0
    %v1505 = vadd.f32 %v1365, %v1504
    %v1506 = vpop.f32.mrf.mxu0
    %v1507 = vadd.f32 %v1367, %v1506
    %1508 = vmatmul.bf16.gmra.mxu0 %v1432
    %v1509 = vpop.f32.mrf.mxu0
    %v1510 = vadd.f32 %v1370, %v1509
    %v1511 = vpop.f32.mrf.mxu0
    %v1512 = vadd.f32 %v1372, %v1511
    %1513 = vmatmul.bf16.gmra.mxu0 %v1435
    %v1514 = vpop.f32.mrf.mxu0
    %v1515 = vadd.f32 %v1375, %v1514
    %v1516 = vpop.f32.mrf.mxu0
    %v1517 = vadd.f32 %v1377, %v1516
    %1518 = vmatmul.bf16.gmra.mxu0 %v1438
    %v1519 = vpop.f32.mrf.mxu0
    %v1520 = vadd.f32 %v1380, %v1519
    %v1521 = vpop.f32.mrf.mxu0
    %v1522 = vadd.f32 %v1382, %v1521
    %1523 = vmatmul.bf16.gmra.mxu0 %v1441
    %v1524 = vpop.f32.mrf.mxu0
    %v1525 = vadd.f32 %v1385, %v1524
    %v1526 = vpop.f32.mrf.mxu0
    %v1527 = vadd.f32 %v1387, %v1526
    %1528 = vmatmul.bf16.gmra.mxu0 %v1444
    %v1529 = vpop.f32.mrf.mxu0
    %v1530 = vadd.f32 %v1390, %v1529
    %v1531 = vpop.f32.mrf.mxu0
    %v1532 = vadd.f32 %v1392, %v1531
    %1533 = vmatmul.bf16.gmra.mxu0 %v1447
    %v1534 = vpop.f32.mrf.mxu0
    %v1535 = vadd.f32 %v1395, %v1534
    %v1536 = vpop.f32.mrf.mxu0
    %v1537 = vadd.f32 %v1397, %v1536
    %1538 = vmatmul.bf16.gmra.mxu0 %v1450
    %v1539 = vpop.f32.mrf.mxu0
    %v1540 = vadd.f32 %v1400, %v1539
    %v1541 = vpop.f32.mrf.mxu0
    %v1542 = vadd.f32 %v1402, %v1541
    %1543 = vdwg.mxu0
    %v1544 = vld [vmem:[%s8] sm:$0x1]
    %v1546 = vperm.slane %v1544, 0
    %v1548 = vadd.f32 %v1465, %v1546
    %v1549 = vadd.f32 %v1467, %v1546
    %v1550 = vadd.f32 %v1470, %v1546
    %v1551 = vadd.f32 %v1472, %v1546
    %v1552 = vadd.f32 %v1475, %v1546
    %v1553 = vadd.f32 %v1477, %v1546
    %v1554 = vadd.f32 %v1480, %v1546
    %v1555 = vadd.f32 %v1482, %v1546
    %v1556 = vadd.f32 %v1485, %v1546
    %v1557 = vadd.f32 %v1487, %v1546
    %v1558 = vadd.f32 %v1490, %v1546
    %v1559 = vadd.f32 %v1492, %v1546
    %v1560 = vadd.f32 %v1495, %v1546
    %v1561 = vadd.f32 %v1497, %v1546
    %v1562 = vadd.f32 %v1500, %v1546
    %v1563 = vadd.f32 %v1502, %v1546
    %v1564 = vadd.f32 %v1505, %v1546
    %v1565 = vadd.f32 %v1507, %v1546
    %v1566 = vadd.f32 %v1510, %v1546
    %v1567 = vadd.f32 %v1512, %v1546
    %v1568 = vadd.f32 %v1515, %v1546
    %v1569 = vadd.f32 %v1517, %v1546
    %v1570 = vadd.f32 %v1520, %v1546
    %v1571 = vadd.f32 %v1522, %v1546
    %v1572 = vadd.f32 %v1525, %v1546
    %v1573 = vadd.f32 %v1527, %v1546
    %v1574 = vadd.f32 %v1530, %v1546
    %v1575 = vadd.f32 %v1532, %v1546
    %v1576 = vadd.f32 %v1535, %v1546
    %v1577 = vadd.f32 %v1537, %v1546
    %v1578 = vadd.f32 %v1540, %v1546
    %v1579 = vadd.f32 %v1542, %v1546
    %v1580 = vmax.f32 %v1548, 0.0
    %v1581 = vmax.f32 %v1549, 0.0
    %v1582 = vmax.f32 %v1550, 0.0
    %v1583 = vmax.f32 %v1551, 0.0
    %v1584 = vmax.f32 %v1552, 0.0
    %v1585 = vmax.f32 %v1553, 0.0
    %v1586 = vmax.f32 %v1554, 0.0
    %v1587 = vmax.f32 %v1555, 0.0
    %v1588 = vmax.f32 %v1556, 0.0
    %v1589 = vmax.f32 %v1557, 0.0
    %v1590 = vmax.f32 %v1558, 0.0
    %v1591 = vmax.f32 %v1559, 0.0
    %v1592 = vmax.f32 %v1560, 0.0
    %v1593 = vmax.f32 %v1561, 0.0
    %v1594 = vmax.f32 %v1562, 0.0
    %v1595 = vmax.f32 %v1563, 0.0
    %v1596 = vmax.f32 %v1564, 0.0
    %v1597 = vmax.f32 %v1565, 0.0
    %v1598 = vmax.f32 %v1566, 0.0
    %v1599 = vmax.f32 %v1567, 0.0
    %v1600 = vmax.f32 %v1568, 0.0
    %v1601 = vmax.f32 %v1569, 0.0
    %v1602 = vmax.f32 %v1570, 0.0
    %v1603 = vmax.f32 %v1571, 0.0
    %v1604 = vmax.f32 %v1572, 0.0
    %v1605 = vmax.f32 %v1573, 0.0
    %v1606 = vmax.f32 %v1574, 0.0
    %v1607 = vmax.f32 %v1575, 0.0
    %v1608 = vmax.f32 %v1576, 0.0
    %v1609 = vmax.f32 %v1577, 0.0
    %v1610 = vmax.f32 %v1578, 0.0
    %v1611 = vmax.f32 %v1579, 0.0
    %v1612 = vpack.c.bf16 %v1580, %v1580
    %v1613 = vpack.c.bf16 %v1581, %v1581
    %v1614 = vpack.c.bf16 %v1582, %v1582
    %v1615 = vpack.c.bf16 %v1583, %v1583
    %v1616 = vpack.c.bf16 %v1584, %v1584
    %v1617 = vpack.c.bf16 %v1585, %v1585
    %v1618 = vpack.c.bf16 %v1586, %v1586
    %v1619 = vpack.c.bf16 %v1587, %v1587
    %v1620 = vpack.c.bf16 %v1588, %v1588
    %v1621 = vpack.c.bf16 %v1589, %v1589
    %v1622 = vpack.c.bf16 %v1590, %v1590
    %v1623 = vpack.c.bf16 %v1591, %v1591
    %v1624 = vpack.c.bf16 %v1592, %v1592
    %v1625 = vpack.c.bf16 %v1593, %v1593
    %v1626 = vpack.c.bf16 %v1594, %v1594
    %v1627 = vpack.c.bf16 %v1595, %v1595
    %v1628 = vpack.c.bf16 %v1596, %v1596
    %v1629 = vpack.c.bf16 %v1597, %v1597
    %v1630 = vpack.c.bf16 %v1598, %v1598
    %v1631 = vpack.c.bf16 %v1599, %v1599
    %v1632 = vpack.c.bf16 %v1600, %v1600
    %v1633 = vpack.c.bf16 %v1601, %v1601
    %v1634 = vpack.c.bf16 %v1602, %v1602
    %v1635 = vpack.c.bf16 %v1603, %v1603
    %v1636 = vpack.c.bf16 %v1604, %v1604
    %v1637 = vpack.c.bf16 %v1605, %v1605
    %v1638 = vpack.c.bf16 %v1606, %v1606
    %v1639 = vpack.c.bf16 %v1607, %v1607
    %v1640 = vpack.c.bf16 %v1608, %v1608
    %v1641 = vpack.c.bf16 %v1609, %v1609
    %v1642 = vpack.c.bf16 %v1610, %v1610
    %v1643 = vpack.c.bf16 %v1611, %v1611
    %v1644 = vunpack.c.l.bf16 %v1612
    %v1645 = vunpack.c.l.bf16 %v1613
    %v1646 = vunpack.c.l.bf16 %v1614
    %v1647 = vunpack.c.l.bf16 %v1615
    %v1648 = vunpack.c.l.bf16 %v1616
    %v1649 = vunpack.c.l.bf16 %v1617
    %v1650 = vunpack.c.l.bf16 %v1618
    %v1651 = vunpack.c.l.bf16 %v1619
    %v1652 = vunpack.c.l.bf16 %v1620
    %v1653 = vunpack.c.l.bf16 %v1621
    %v1654 = vunpack.c.l.bf16 %v1622
    %v1655 = vunpack.c.l.bf16 %v1623
    %v1656 = vunpack.c.l.bf16 %v1624
    %v1657 = vunpack.c.l.bf16 %v1625
    %v1658 = vunpack.c.l.bf16 %v1626
    %v1659 = vunpack.c.l.bf16 %v1627
    %v1660 = vunpack.c.l.bf16 %v1628
    %v1661 = vunpack.c.l.bf16 %v1629
    %v1662 = vunpack.c.l.bf16 %v1630
    %v1663 = vunpack.c.l.bf16 %v1631
    %v1664 = vunpack.c.l.bf16 %v1632
    %v1665 = vunpack.c.l.bf16 %v1633
    %v1666 = vunpack.c.l.bf16 %v1634
    %v1667 = vunpack.c.l.bf16 %v1635
    %v1668 = vunpack.c.l.bf16 %v1636
    %v1669 = vunpack.c.l.bf16 %v1637
    %v1670 = vunpack.c.l.bf16 %v1638
    %v1671 = vunpack.c.l.bf16 %v1639
    %v1672 = vunpack.c.l.bf16 %v1640
    %v1673 = vunpack.c.l.bf16 %v1641
    %v1674 = vunpack.c.l.bf16 %v1642
    %v1675 = vunpack.c.l.bf16 %v1643
    %v1676 = vunpack.c.l.bf16 %v778
    %v1677 = vunpack.c.l.bf16 %v779
    %v1678 = vunpack.c.l.bf16 %v780
    %v1679 = vunpack.c.l.bf16 %v781
    %v1680 = vunpack.c.l.bf16 %v782
    %v1681 = vunpack.c.l.bf16 %v783
    %v1682 = vunpack.c.l.bf16 %v784
    %v1683 = vunpack.c.l.bf16 %v785
    %v1684 = vunpack.c.l.bf16 %v786
    %v1685 = vunpack.c.l.bf16 %v787
    %v1686 = vunpack.c.l.bf16 %v788
    %v1687 = vunpack.c.l.bf16 %v789
    %v1688 = vunpack.c.l.bf16 %v790
    %v1689 = vunpack.c.l.bf16 %v791
    %v1690 = vunpack.c.l.bf16 %v792
    %v1691 = vunpack.c.l.bf16 %v793
    %v1692 = vunpack.c.l.bf16 %v794
    %v1693 = vunpack.c.l.bf16 %v795
    %v1694 = vunpack.c.l.bf16 %v796
    %v1695 = vunpack.c.l.bf16 %v797
    %v1696 = vunpack.c.l.bf16 %v798
    %v1697 = vunpack.c.l.bf16 %v799
    %v1698 = vunpack.c.l.bf16 %v800
    %v1699 = vunpack.c.l.bf16 %v801
    %v1700 = vunpack.c.l.bf16 %v802
    %v1701 = vunpack.c.l.bf16 %v803
    %v1702 = vunpack.c.l.bf16 %v804
    %v1703 = vunpack.c.l.bf16 %v805
    %v1704 = vunpack.c.l.bf16 %v806
    %v1705 = vunpack.c.l.bf16 %v807
    %v1706 = vunpack.c.l.bf16 %v808
    %v1707 = vunpack.c.l.bf16 %v809
    %v1708 = vmul.f32 %v1644, %v1676
    %v1709 = vmul.f32 %v1645, %v1677
    %v1710 = vmul.f32 %v1646, %v1678
    %v1711 = vmul.f32 %v1647, %v1679
    %v1712 = vmul.f32 %v1648, %v1680
    %v1713 = vmul.f32 %v1649, %v1681
    %v1714 = vmul.f32 %v1650, %v1682
    %v1715 = vmul.f32 %v1651, %v1683
    %v1716 = vmul.f32 %v1652, %v1684
    %v1717 = vmul.f32 %v1653, %v1685
    %v1718 = vmul.f32 %v1654, %v1686
    %v1719 = vmul.f32 %v1655, %v1687
    %v1720 = vmul.f32 %v1656, %v1688
    %v1721 = vmul.f32 %v1657, %v1689
    %v1722 = vmul.f32 %v1658, %v1690
    %v1723 = vmul.f32 %v1659, %v1691
    %v1724 = vmul.f32 %v1660, %v1692
    %v1725 = vmul.f32 %v1661, %v1693
    %v1726 = vmul.f32 %v1662, %v1694
    %v1727 = vmul.f32 %v1663, %v1695
    %v1728 = vmul.f32 %v1664, %v1696
    %v1729 = vmul.f32 %v1665, %v1697
    %v1730 = vmul.f32 %v1666, %v1698
    %v1731 = vmul.f32 %v1667, %v1699
    %v1732 = vmul.f32 %v1668, %v1700
    %v1733 = vmul.f32 %v1669, %v1701
    %v1734 = vmul.f32 %v1670, %v1702
    %v1735 = vmul.f32 %v1671, %v1703
    %v1736 = vmul.f32 %v1672, %v1704
    %v1737 = vmul.f32 %v1673, %v1705
    %v1738 = vmul.f32 %v1674, %v1706
    %v1739 = vmul.f32 %v1675, %v1707
    %v1740 = vpack.c.bf16 %v1709, %v1708
    %v1741 = vpack.c.bf16 %v1711, %v1710
    %v1742 = vpack.c.bf16 %v1713, %v1712
    %v1743 = vpack.c.bf16 %v1715, %v1714
    %v1744 = vpack.c.bf16 %v1717, %v1716
    %v1745 = vpack.c.bf16 %v1719, %v1718
    %v1746 = vpack.c.bf16 %v1721, %v1720
    %v1747 = vpack.c.bf16 %v1723, %v1722
    %v1748 = vpack.c.bf16 %v1725, %v1724
    %v1749 = vpack.c.bf16 %v1727, %v1726
    %v1750 = vpack.c.bf16 %v1729, %v1728
    %v1751 = vpack.c.bf16 %v1731, %v1730
    %v1752 = vpack.c.bf16 %v1733, %v1732
    %v1753 = vpack.c.bf16 %v1735, %v1734
    %v1754 = vpack.c.bf16 %v1737, %v1736
    %v1755 = vpack.c.bf16 %v1739, %v1738
    %v1756 = vld [vmem:[%s9] sm:$0xf]
    %v1757 = vld [vmem:[%s9 + $0x4] sm:$0xf]
    %v1758 = vld [vmem:[%s9 + $0x8] sm:$0xf]
    %v1759 = vld [vmem:[%s9 + $0xc] sm:$0xf]
    %v1760 = vld [vmem:[%s9 + $0x10] sm:$0xf]
    %v1761 = vld [vmem:[%s9 + $0x14] sm:$0xf]
    %v1762 = vld [vmem:[%s9 + $0x18] sm:$0xf]
    %v1763 = vld [vmem:[%s9 + $0x1c] sm:$0xf]
    %v1764 = vld [vmem:[%s9 + $0x20] sm:$0xf]
    %v1765 = vld [vmem:[%s9 + $0x24] sm:$0xf]
    %v1766 = vld [vmem:[%s9 + $0x28] sm:$0xf]
    %v1767 = vld [vmem:[%s9 + $0x2c] sm:$0xf]
    %v1768 = vld [vmem:[%s9 + $0x30] sm:$0xf]
    %v1769 = vld [vmem:[%s9 + $0x34] sm:$0xf]
    %v1770 = vld [vmem:[%s9 + $0x38] sm:$0xf]
    %v1771 = vld [vmem:[%s9 + $0x3c] sm:$0xf]
    %v1772 = vld [vmem:[%s10] sm:$0x1]
    %v1774 = vperm.slane %v1772, 0
    %v1792 = vunpack.c.l.b16 %v1756
    %v1793 = vunpack.c.l.b16 %v1757
    %v1794 = vunpack.c.l.b16 %v1758
    %v1795 = vunpack.c.l.b16 %v1759
    %v1796 = vunpack.c.l.b16 %v1760
    %v1797 = vunpack.c.l.b16 %v1761
    %v1798 = vunpack.c.l.b16 %v1762
    %v1799 = vunpack.c.l.b16 %v1763
    %v1800 = vunpack.c.l.b16 %v1764
    %v1801 = vunpack.c.l.b16 %v1765
    %v1802 = vunpack.c.l.b16 %v1766
    %v1803 = vunpack.c.l.b16 %v1767
    %v1804 = vunpack.c.l.b16 %v1768
    %v1805 = vunpack.c.l.b16 %v1769
    %v1806 = vunpack.c.l.b16 %v1770
    %v1807 = vunpack.c.l.b16 %v1771
    %v1808 = vpack.c.b16 %v1793, %v1792
    %v1809 = vpack.c.b16 %v1795, %v1794
    %v1810 = vpack.c.b16 %v1797, %v1796
    %v1811 = vpack.c.b16 %v1799, %v1798
    %v1812 = vpack.c.b16 %v1801, %v1800
    %v1813 = vpack.c.b16 %v1803, %v1802
    %v1814 = vpack.c.b16 %v1805, %v1804
    %v1815 = vpack.c.b16 %v1807, %v1806
    %1824 = vmatpush.bf16.msra.mxu0 %v1815
    %1825 = vmatpush.bf16.msra.mxu0 %v1814
    %1826 = vmatpush.bf16.msra.mxu0 %v1813
    %1827 = vmatpush.bf16.msra.mxu0 %v1812
    %1828 = vmatpush.bf16.msra.mxu0 %v1811
    %1829 = vmatpush.bf16.msra.mxu0 %v1810
    %1830 = vmatpush.bf16.msra.mxu0 %v1809
    %1831 = vmatpush.bf16.msra.mxu0 %v1808
    %1832 = vmatmul.bf16.gmra.mxu0 %v1740
    %v1833 = vpop.f32.mrf.mxu0
    %v1834 = vadd.f32 %v1774, %v1833
    %v1835 = vpop.f32.mrf.mxu0
    %v1836 = vadd.f32 %v1774, %v1835
    %1837 = vmatmul.bf16.gmra.mxu0 %v1741
    %v1838 = vpop.f32.mrf.mxu0
    %v1839 = vadd.f32 %v1774, %v1838
    %v1840 = vpop.f32.mrf.mxu0
    %v1841 = vadd.f32 %v1774, %v1840
    %1842 = vmatmul.bf16.gmra.mxu0 %v1742
    %v1843 = vpop.f32.mrf.mxu0
    %v1844 = vadd.f32 %v1774, %v1843
    %v1845 = vpop.f32.mrf.mxu0
    %v1846 = vadd.f32 %v1774, %v1845
    %1847 = vmatmul.bf16.gmra.mxu0 %v1743
    %v1848 = vpop.f32.mrf.mxu0
    %v1849 = vadd.f32 %v1774, %v1848
    %v1850 = vpop.f32.mrf.mxu0
    %v1851 = vadd.f32 %v1774, %v1850
    %1852 = vmatmul.bf16.gmra.mxu0 %v1744
    %v1853 = vpop.f32.mrf.mxu0
    %v1854 = vadd.f32 %v1774, %v1853
    %v1855 = vpop.f32.mrf.mxu0
    %v1856 = vadd.f32 %v1774, %v1855
    %1857 = vmatmul.bf16.gmra.mxu0 %v1745
    %v1858 = vpop.f32.mrf.mxu0
    %v1859 = vadd.f32 %v1774, %v1858
    %v1860 = vpop.f32.mrf.mxu0
    %v1861 = vadd.f32 %v1774, %v1860
    %1862 = vmatmul.bf16.gmra.mxu0 %v1746
    %v1863 = vpop.f32.mrf.mxu0
    %v1864 = vadd.f32 %v1774, %v1863
    %v1865 = vpop.f32.mrf.mxu0
    %v1866 = vadd.f32 %v1774, %v1865
    %1867 = vmatmul.bf16.gmra.mxu0 %v1747
    %v1868 = vpop.f32.mrf.mxu0
    %v1869 = vadd.f32 %v1774, %v1868
    %v1870 = vpop.f32.mrf.mxu0
    %v1871 = vadd.f32 %v1774, %v1870
    %1872 = vmatmul.bf16.gmra.mxu0 %v1748
    %v1873 = vpop.f32.mrf.mxu0
    %v1874 = vadd.f32 %v1774, %v1873
    %v1875 = vpop.f32.mrf.mxu0
    %v1876 = vadd.f32 %v1774, %v1875
    %1877 = vmatmul.bf16.gmra.mxu0 %v1749
    %v1878 = vpop.f32.mrf.mxu0
    %v1879 = vadd.f32 %v1774, %v1878
    %v1880 = vpop.f32.mrf.mxu0
    %v1881 = vadd.f32 %v1774, %v1880
    %1882 = vmatmul.bf16.gmra.mxu0 %v1750
    %v1883 = vpop.f32.mrf.mxu0
    %v1884 = vadd.f32 %v1774, %v1883
    %v1885 = vpop.f32.mrf.mxu0
    %v1886 = vadd.f32 %v1774, %v1885
    %1887 = vmatmul.bf16.gmra.mxu0 %v1751
    %v1888 = vpop.f32.mrf.mxu0
    %v1889 = vadd.f32 %v1774, %v1888
    %v1890 = vpop.f32.mrf.mxu0
    %v1891 = vadd.f32 %v1774, %v1890
    %1892 = vmatmul.bf16.gmra.mxu0 %v1752
    %v1893 = vpop.f32.mrf.mxu0
    %v1894 = vadd.f32 %v1774, %v1893
    %v1895 = vpop.f32.mrf.mxu0
    %v1896 = vadd.f32 %v1774, %v1895
    %1897 = vmatmul.bf16.gmra.mxu0 %v1753
    %v1898 = vpop.f32.mrf.mxu0
    %v1899 = vadd.f32 %v1774, %v1898
    %v1900 = vpop.f32.mrf.mxu0
    %v1901 = vadd.f32 %v1774, %v1900
    %1902 = vmatmul.bf16.gmra.mxu0 %v1754
    %v1903 = vpop.f32.mrf.mxu0
    %v1904 = vadd.f32 %v1774, %v1903
    %v1905 = vpop.f32.mrf.mxu0
    %v1906 = vadd.f32 %v1774, %v1905
    %1907 = vmatmul.bf16.gmra.mxu0 %v1755
    %v1908 = vpop.f32.mrf.mxu0
    %v1909 = vadd.f32 %v1774, %v1908
    %v1910 = vpop.f32.mrf.mxu0
    %v1911 = vadd.f32 %v1774, %v1910
    %1912 = vdwg.mxu0
    %1913 = vst [vmem:[#allocation2] sm:$0xff] %v1834
    %1914 = vst [vmem:[#allocation2 + $0x8] sm:$0xff] %v1836
    %1915 = vst [vmem:[#allocation2 + $0x10] sm:$0xff] %v1839
    %1916 = vst [vmem:[#allocation2 + $0x18] sm:$0xff] %v1841
    %1917 = vst [vmem:[#allocation2 + $0x20] sm:$0xff] %v1844
    %1918 = vst [vmem:[#allocation2 + $0x28] sm:$0xff] %v1846
    %1919 = vst [vmem:[#allocation2 + $0x30] sm:$0xff] %v1849
    %1920 = vst [vmem:[#allocation2 + $0x38] sm:$0xff] %v1851
    %1921 = vst [vmem:[#allocation2 + $0x40] sm:$0xff] %v1854
    %1922 = vst [vmem:[#allocation2 + $0x48] sm:$0xff] %v1856
    %1923 = vst [vmem:[#allocation2 + $0x50] sm:$0xff] %v1859
    %1924 = vst [vmem:[#allocation2 + $0x58] sm:$0xff] %v1861
    %1925 = vst [vmem:[#allocation2 + $0x60] sm:$0xff] %v1864
    %1926 = vst [vmem:[#allocation2 + $0x68] sm:$0xff] %v1866
    %1927 = vst [vmem:[#allocation2 + $0x70] sm:$0xff] %v1869
    %1928 = vst [vmem:[#allocation2 + $0x78] sm:$0xff] %v1871
    %1929 = vst [vmem:[#allocation2 + $0x80] sm:$0xff] %v1874
    %1930 = vst [vmem:[#allocation2 + $0x88] sm:$0xff] %v1876
    %1931 = vst [vmem:[#allocation2 + $0x90] sm:$0xff] %v1879
    %1932 = vst [vmem:[#allocation2 + $0x98] sm:$0xff] %v1881
    %1933 = vst [vmem:[#allocation2 + $0xa0] sm:$0xff] %v1884
    %1934 = vst [vmem:[#allocation2 + $0xa8] sm:$0xff] %v1886
    %1935 = vst [vmem:[#allocation2 + $0xb0] sm:$0xff] %v1889
    %1936 = vst [vmem:[#allocation2 + $0xb8] sm:$0xff] %v1891
    %1937 = vst [vmem:[#allocation2 + $0xc0] sm:$0xff] %v1894
    %1938 = vst [vmem:[#allocation2 + $0xc8] sm:$0xff] %v1896
    %1939 = vst [vmem:[#allocation2 + $0xd0] sm:$0xff] %v1899
    %1940 = vst [vmem:[#allocation2 + $0xd8] sm:$0xff] %v1901
    %1941 = vst [vmem:[#allocation2 + $0xe0] sm:$0xff] %v1904
    %1942 = vst [vmem:[#allocation2 + $0xe8] sm:$0xff] %v1906
    %1943 = vst [vmem:[#allocation2 + $0xf0] sm:$0xff] %v1909
    %1944 = vst [vmem:[#allocation2 + $0xf8] sm:$0xff] %v1911
    // Predicated region
    $region46: #{roi_relation_head_forward.3} parent=1 // pred_check
      _
    $region47: #{roi_relation_head_forward.3} parent=1 // pred_check_branch
      %1946 = sbr.rel (0) target = $region49
    $region48: #{roi_relation_head_forward.3} parent=1 // pred_region
      // Predicated region
      $region50: #{roi_relation_head_forward.3} parent=48 // pred_check
        _
      $region51: #{roi_relation_head_forward.3} parent=48 // pred_check_branch
        %1948 = sbr.rel (0) target = $region53
      $region52: #{roi_relation_head_forward.3} parent=48 // pred_region
        // Predicated region
        $region54: #{roi_relation_head_forward.3} parent=52 // pred_check
          _
        $region55: #{roi_relation_head_forward.3} parent=52 // pred_check_branch
          %1950 = sbr.rel (0) target = $region57
        $region56: #{roi_relation_head_forward.3} parent=52 // pred_region
          // Predicated region
          $region69: #{roi_relation_head_forward.3} parent=56 // pred_check
            _
          $region70: #{roi_relation_head_forward.3} parent=56 // pred_check_branch
            %1978 = sbr.rel (0) target = $region72
          $region71: #{roi_relation_head_forward.3} parent=56 // pred_region
            loop: start=0, step=1, limit=1
            $region73: #{roi_relation_head_forward.3} parent=71 // loop_pre_header
              _
            $region74: #{roi_relation_head_forward.3} parent=71 // loop_header
              %s1980 = sphi 0, %s1984
              %p1981 = scmp.ge.s32.totalorder %s1980, 1
              %s1985 = sphi [#allocation2], [#allocation2]
              %s1986 = sphi %s11, %s11
            $region75: #{roi_relation_head_forward.3} parent=71 // loop_header_branch
              %1983 = sbr.rel (%p1981) target = $region79
            $region76: #{roi_relation_head_forward.3} parent=71 // loop_body
              %v1987 = vld [vmem:[%s1985] sm:$0xff]
              %1988 = vst [vmem:[%s1986] sm:$0xff] %v1987
              %v1989 = vld [vmem:[%s1985 + $0x8] sm:$0xff]
              %1990 = vst [vmem:[%s1986 + $0x8] sm:$0xff] %v1989
              %v1991 = vld [vmem:[%s1985 + $0x10] sm:$0xff]
              %1992 = vst [vmem:[%s1986 + $0x10] sm:$0xff] %v1991
              %v1993 = vld [vmem:[%s1985 + $0x18] sm:$0xff]
              %1994 = vst [vmem:[%s1986 + $0x18] sm:$0xff] %v1993
              %v1995 = vld [vmem:[%s1985 + $0x20] sm:$0xff]
              %1996 = vst [vmem:[%s1986 + $0x20] sm:$0xff] %v1995
              %v1997 = vld [vmem:[%s1985 + $0x28] sm:$0xff]
              %1998 = vst [vmem:[%s1986 + $0x28] sm:$0xff] %v1997
              %v1999 = vld [vmem:[%s1985 + $0x30] sm:$0xff]
              %2000 = vst [vmem:[%s1986 + $0x30] sm:$0xff] %v1999
            $region77: #{roi_relation_head_forward.3} parent=71 // loop_footer
              %s1984 = sadd.s32 1, %s1980
            $region78: #{roi_relation_head_forward.3} parent=71 // loop_footer_branch
              %1979 = sbr.rel target = $region74
            $region79: #{roi_relation_head_forward.3} parent=71 // loop_exit
              _
          $region72: #{roi_relation_head_forward.3} parent=56 // pred_fallthru
            _
          // Predicated region
          $region80: #{roi_relation_head_forward.3} parent=56 // pred_check
            _
          $region81: #{roi_relation_head_forward.3} parent=56 // pred_check_branch
            %2002 = sbr.rel target = $region83
          $region82: #{roi_relation_head_forward.3} parent=56 // pred_region
            _
          $region83: #{roi_relation_head_forward.3} parent=56 // pred_fallthru
            _
        $region57: #{roi_relation_head_forward.3} parent=52 // pred_fallthru
          _
        // Predicated region
        $region58: #{roi_relation_head_forward.3} parent=52 // pred_check
          _
        $region59: #{roi_relation_head_forward.3} parent=52 // pred_check_branch
          %1952 = sbr.rel target = $region61
        $region60: #{roi_relation_head_forward.3} parent=52 // pred_region
          %s1954 = ssub.s32 256, 1
          loop: start=0, step=1, limit=1
          $region62: #{roi_relation_head_forward.3} parent=60 // loop_pre_header
            _
          $region63: #{roi_relation_head_forward.3} parent=60 // loop_header
            %s1956 = sphi 0, %s1960
            %p1957 = scmp.ge.s32.totalorder %s1956, 1
            %s1961 = sphi [#allocation2], [#allocation2]
            %s1962 = sphi %s11, %s11
          $region64: #{roi_relation_head_forward.3} parent=60 // loop_header_branch
            %1959 = sbr.rel (%p1957) target = $region68
          $region65: #{roi_relation_head_forward.3} parent=60 // loop_body
            %v1963 = vld [vmem:[%s1961] sm:%s1954]
            %1964 = vst [vmem:[%s1962] sm:%s1954] %v1963
            %v1965 = vld [vmem:[%s1961 + $0x8] sm:%s1954]
            %1966 = vst [vmem:[%s1962 + $0x8] sm:%s1954] %v1965
            %v1967 = vld [vmem:[%s1961 + $0x10] sm:%s1954]
            %1968 = vst [vmem:[%s1962 + $0x10] sm:%s1954] %v1967
            %v1969 = vld [vmem:[%s1961 + $0x18] sm:%s1954]
            %1970 = vst [vmem:[%s1962 + $0x18] sm:%s1954] %v1969
            %v1971 = vld [vmem:[%s1961 + $0x20] sm:%s1954]
            %1972 = vst [vmem:[%s1962 + $0x20] sm:%s1954] %v1971
            %v1973 = vld [vmem:[%s1961 + $0x28] sm:%s1954]
            %1974 = vst [vmem:[%s1962 + $0x28] sm:%s1954] %v1973
            %v1975 = vld [vmem:[%s1961 + $0x30] sm:%s1954]
            %1976 = vst [vmem:[%s1962 + $0x30] sm:%s1954] %v1975
          $region66: #{roi_relation_head_forward.3} parent=60 // loop_footer
            %s1960 = sadd.s32 1, %s1956
          $region67: #{roi_relation_head_forward.3} parent=60 // loop_footer_branch
            %1955 = sbr.rel target = $region63
          $region68: #{roi_relation_head_forward.3} parent=60 // loop_exit
            _
        $region61: #{roi_relation_head_forward.3} parent=52 // pred_fallthru
          _
      $region53: #{roi_relation_head_forward.3} parent=48 // pred_fallthru
        _
      %2003 = vnop
    $region49: #{roi_relation_head_forward.3} parent=1 // pred_fallthru
      _
    // Predicated region
    $region84: #{roi_relation_head_forward.3} parent=1 // pred_check
      _
    $region85: #{roi_relation_head_forward.3} parent=1 // pred_check_branch
      %2005 = sbr.rel (0) target = $region87
    $region86: #{roi_relation_head_forward.3} parent=1 // pred_region
      _
    $region87: #{roi_relation_head_forward.3} parent=1 // pred_fallthru
      _

</llo_original>
